<compile_context>
chip_gen: v6e
topology: v6e:2x2x1
jax: 0.10.0
libtpu: 0.0.40
codegen_flags: <defaults>
</compile_context>

<pallas_src>
import functools

import jax
import jax.numpy as jnp
import numpy as np
from jax.experimental import pallas as pl
from jax.experimental.pallas import tpu as pltpu

M = 19          # number of branches, fixed by the module
_BN_EPS = 1e-5  # nn.BatchNorm1d default eps


def _round_up(a, b):
    return (a + b - 1) // b * b


# ----------------------------------------------------------------------------- kernel
def _sk_kernel(x_ref, g_ref, mu_ref, var_ref,
               w1_ref, b1_ref, gamma_ref, beta_ref, w2_ref, b2_ref,
               wfv_ref, bfv_ref, wg_ref, out_ref, a_scr):
    """One (TB, dim) batch tile.

    x_ref, g_ref : (M, TB, dim) bf16, branch-major
    mu/var       : (1, d) f32   full-batch BatchNorm statistics (precomputed)
    w1, w2       : bf16         self.fc weights
    wfv          : (M, d, dim)  bf16  folded fcs[i] -> g_fcs[i] 'vector' weight
    bfv          : (M, 1, dim)  f32   folded bias
    wg           : (M, dim, dim) bf16 g_fcs[i] columns acting on g[:, i, :]
    a_scr        : (M, TB, dim) f32   VMEM scratch for per-branch logits
    out          : (TB, dim) f32
    """
    # ---- self.fc path: branch sum -> Linear -> ReLU -> BatchNorm -> Linear ----
    # x is streamed one branch at a time (no (M,TB,dim) f32 temp).
    fea_u = x_ref[0].astype(jnp.float32)
    for i in range(1, M):
        fea_u = fea_u + x_ref[i].astype(jnp.float32)

    h = jnp.dot(fea_u.astype(jnp.bfloat16), w1_ref[...],
                preferred_element_type=jnp.float32) + b1_ref[...]
    h = jnp.maximum(h, 0.0)
    h = (h - mu_ref[...]) * jax.lax.rsqrt(var_ref[...] + _BN_EPS) * gamma_ref[...] + beta_ref[...]
    fea_z = jnp.dot(h.astype(jnp.bfloat16), w2_ref[...],
                    preferred_element_type=jnp.float32) + b2_ref[...]
    fea_zb = fea_z.astype(jnp.bfloat16)                       # (TB, d) shared by all branches

    # ---- pass 1: per-branch logits (streamed, bf16 MXU, f32 accumulate) + running max ----
    m = None
    for i in range(M):
        a_i = (jnp.dot(fea_zb, wfv_ref[i], preferred_element_type=jnp.float32)
               + jnp.dot(g_ref[i], wg_ref[i], preferred_element_type=jnp.float32)
               + bfv_ref[i])
        a_scr[i] = a_i
        m = a_i if m is None else jnp.maximum(m, a_i)

    # ---- pass 2: one exp per branch, fused weighted sum of x (two-pass softmax) ----
    l = jnp.zeros_like(m)
    acc = jnp.zeros_like(m)
    for i in range(M):
        p = jnp.exp(a_scr[i] - m)
        l = l + p
        acc = acc + p * x_ref[i].astype(jnp.float32)

    out_ref[...] = (acc * pl.reciprocal(l, approx=True)).astype(out_ref.dtype)


# ----------------------------------------------------------------------------- wrapper
def selective_ts_with_g_forward(x, g, params, dim):
    """x, g: (bs, 19*dim) -> fea_v: (bs, dim).  Matches the PyTorch module's default
    (training-mode BatchNorm, full-batch statistics) forward pass."""
    single = (x.ndim == 1)
    if single:
        x = x[None]
        g = g[None]
    bs = x.shape[0]
    d = params["w1"].shape[1]
    bf16 = jnp.bfloat16

    # bf16 weights for the MXU (f32 accumulation everywhere).
    w1_b = params["w1"].astype(bf16)
    w2_b = params["w2"].astype(bf16)
    wg_b = params["wg"].astype(bf16)
    # Fold fcs[i] -> g_fcs[i] 'vector' path:  a_v[i] = fea_z @ (wf[i]@wv[i]) + (bf[i]@wv[i] + bg[i])
    wfv_b = jnp.einsum("mde,mek->mdk", params["wf"], params["wv"]).astype(bf16)    # (M, d, dim)
    bfv = (jnp.einsum("md,mdk->mk", params["bf"], params["wv"])
           + params["bg"]).reshape(M, 1, dim)                                       # (M, 1, dim) f32

    # Branch-major bf16 streamed inputs (halves HBM->VMEM bytes).
    # TODO(synk): when dim % 128 == 0 the kernel could consume (tb, 19*dim) blocks of the
    # original layout directly (aligned lane slices) and skip this transpose/cast pass.
    x3 = jnp.transpose(x.reshape(bs, M, dim), (1, 0, 2)).astype(bf16)   # (M, bs, dim)
    g3 = jnp.transpose(g.reshape(bs, M, dim), (1, 0, 2)).astype(bf16)

    # Full-batch BatchNorm statistics (training-mode semantics), computed once over the
    # real batch with the same precision recipe the kernel uses -> tiling-independent.
    # TODO(synk): fold this stats pass into a small first-pass Pallas kernel to avoid the
    # extra HBM read of x at large batch sizes (eval-mode running stats not supported).
    fea_u = jnp.sum(x3.astype(jnp.float32), axis=0)                                 # (bs, dim)
    h = jnp.maximum(jnp.dot(fea_u.astype(bf16), w1_b,
                            preferred_element_type=jnp.float32) + params["b1"], 0.0)
    mu = jnp.mean(h, axis=0, keepdims=True)
    var = jnp.mean(jnp.square(h - mu), axis=0, keepdims=True)

    # ---- batch tiling: >=2 grid steps when bs allows, rows padded to sublane multiples ----
    if dim <= 128:
        tb_cap = 512
    elif dim <= 512:
        tb_cap = 256
    else:
        tb_cap = 128
    if bs <= 8:
        tb = 8
    else:
        tb = min(tb_cap, _round_up((bs + 1) // 2, 8))
    bs_p = _round_up(bs, tb)
    if bs_p != bs:
        x3 = jnp.pad(x3, ((0, 0), (0, bs_p - bs), (0, 0)))
        g3 = jnp.pad(g3, ((0, 0), (0, bs_p - bs), (0, 0)))
    n_tiles = bs_p // tb

    weights = (mu, var, w1_b, params["b1"], params["gamma"], params["beta"],
               w2_b, params["b2"], wfv_b, bfv, wg_b)

    # VMEM budget: double-buffered x/g tiles + logits scratch + output tile + weights
    # (counted x2 to stay safe even if single-buffering is not honored), capped below the
    # physical VMEM of the current generation.
    tile_bytes = 2 * 2 * (M * tb * dim * 2) + 2 * tb * dim * 4 + M * tb * dim * 4
    weight_bytes = sum(int(np.prod(w.shape)) * jnp.dtype(w.dtype).itemsize for w in weights)
    try:
        vmem_cap = int(pltpu.get_tpu_info().vmem_capacity_bytes)
    except Exception:
        vmem_cap = 64 * 1024 * 1024
    vmem_limit = int(min(max(tile_bytes + 2 * weight_bytes + (4 << 20), 32 << 20),
                         int(vmem_cap * 0.85)))
    # TODO(synk): for very large dim the (19, dim, dim) wg stack should be streamed
    # per-branch (extra grid axis / manual double-buffered DMA) instead of kept resident.

    def _wspec(a):
        nd = a.ndim
        return pl.BlockSpec(tuple(a.shape), lambda b, _n=nd: (0,) * _n,
                            pipeline_mode=pl.Buffered(1))   # grid-invariant: single buffer

    out_p = pl.pallas_call(
        _sk_kernel,
        out_shape=jax.ShapeDtypeStruct((bs_p, dim), jnp.float32),
        grid=(n_tiles,),
        in_specs=[pl.BlockSpec((M, tb, dim), lambda b: (0, b, 0)),
                  pl.BlockSpec((M, tb, dim), lambda b: (0, b, 0))]
                 + [_wspec(w) for w in weights],
        out_specs=pl.BlockSpec((tb, dim), lambda b: (b, 0)),
        scratch_shapes=[pltpu.VMEM((M, tb, dim), jnp.float32)],
        compiler_params=pltpu.CompilerParams(
            dimension_semantics=("parallel",),
            vmem_limit_bytes=vmem_limit),
    )(x3, g3, *weights)

    out = out_p[:bs]
    return out[0] if single else out


# ----------------------------------------------------------------------------- params
def init_params(key, dim, r=2):
    d = dim // r
    ks = jax.random.split(key, 9)

    def u(k, shape, fan_in):
        bound = 1.0 / np.sqrt(fan_in)
        return jax.random.uniform(k, shape, jnp.float32, -bound, bound)

    return dict(
        # self.fc
        w1=u(ks[0], (dim, d), dim), b1=u(ks[1], (1, d), dim),
        gamma=jnp.ones((1, d), jnp.float32), beta=jnp.zeros((1, d), jnp.float32),
        w2=u(ks[2], (d, d), d), b2=u(ks[3], (1, d), d),
        # self.fcs (stacked over the 19 branches)
        wf=u(ks[4], (M, d, d), d), bf=u(ks[5], (M, d), d),
        # self.g_fcs (Linear(dim + d, dim)) split into the `vector` part and the `g` part
        wv=u(ks[6], (M, d, dim), dim + d),
        wg=u(ks[7], (M, dim, dim), dim + d),
        bg=u(ks[8], (M, dim), dim + d),
    )


# --------------------------------------------------- reference (plain JAX, mirrors the
# kernel's precision choices but is structurally faithful to the PyTorch module)
def _reference(x, g, params, dim):
    bs = x.shape[0]
    f32 = jnp.float32
    bf16 = jnp.bfloat16
    x3 = x.reshape(bs, M, dim).astype(bf16)
    g3 = g.reshape(bs, M, dim).astype(bf16)
    w1 = params["w1"].astype(bf16)
    w2 = params["w2"].astype(bf16)
    wg = params["wg"].astype(bf16)
    wfv = jnp.einsum("mde,mek->mdk", params["wf"], params["wv"]).astype(bf16)
    bfv = jnp.einsum("md,mdk->mk", params["bf"], params["wv"]) + params["bg"]   # (M, dim)

    fea_u = jnp.sum(x3.astype(f32), axis=1)
    h = jnp.dot(fea_u.astype(bf16), w1, preferred_element_type=f32) + params["b1"]
    h = jnp.maximum(h, 0.0)
    mu = jnp.mean(h, axis=0, keepdims=True)
    var = jnp.mean(jnp.square(h - mu), axis=0, keepdims=True)
    h = (h - mu) / jnp.sqrt(var + _BN_EPS) * params["gamma"] + params["beta"]
    fea_z = jnp.dot(h.astype(bf16), w2, preferred_element_type=f32) + params["b2"]
    fea_zb = fea_z.astype(bf16)

    logits = []
    for i in range(M):
        a_i = (jnp.dot(fea_zb, wfv[i], preferred_element_type=f32)
               + jnp.dot(g3[:, i, :], wg[i], preferred_element_type=f32)
               + bfv[i])
        logits.append(a_i)
    a = jnp.stack(logits, axis=1)                      # (bs, M, dim)
    attn = jax.nn.softmax(a, axis=1)
    return jnp.sum(x3.astype(f32) * attn, axis=1)


# ----------------------------------------------------------------------------- main
if __name__ == "__main__":
    dim, r, bs = 32, 2, 4
    key = jax.random.PRNGKey(0)
    kx, kg, kp = jax.random.split(key, 3)

    params = init_params(kp, dim, r)
    x = jax.random.normal(kx, (bs, M * dim), jnp.float32)   # (4, 608)
    g = jax.random.normal(kg, (bs, M * dim), jnp.float32)   # (4, 608)

    fwd = jax.jit(functools.partial(selective_ts_with_g_forward, dim=dim))
    out = jax.block_until_ready(fwd(x, g, params))

    ref = _reference(x, g, params, dim)
    # Tolerance covers the bf16 MXU operands (mirrored in the reference) plus the
    # EUP approximate reciprocal used for the softmax normalization.
    np.testing.assert_allclose(np.asarray(out), np.asarray(ref), rtol=1e-2, atol=1e-2)

    print("KERNEL_OK")
</pallas_src>

<mosaic_0001>
module attributes {stable_mosaic.version = 11 : i64} {
  func.func @_sk_kernel(%arg0: i32, %arg1: memref<19x8x32xbf16, #tpu.memory_space<vmem>>, %arg2: memref<19x8x32xbf16, #tpu.memory_space<vmem>>, %arg3: memref<1x16xf32, #tpu.memory_space<vmem>>, %arg4: memref<1x16xf32, #tpu.memory_space<vmem>>, %arg5: memref<32x16xbf16, #tpu.memory_space<vmem>>, %arg6: memref<1x16xf32, #tpu.memory_space<vmem>>, %arg7: memref<1x16xf32, #tpu.memory_space<vmem>>, %arg8: memref<1x16xf32, #tpu.memory_space<vmem>>, %arg9: memref<16x16xbf16, #tpu.memory_space<vmem>>, %arg10: memref<1x16xf32, #tpu.memory_space<vmem>>, %arg11: memref<19x16x32xbf16, #tpu.memory_space<vmem>>, %arg12: memref<19x1x32xf32, #tpu.memory_space<vmem>>, %arg13: memref<19x32x32xbf16, #tpu.memory_space<vmem>>, %arg14: memref<8x32xf32, #tpu.memory_space<vmem>>, %arg15: memref<19x8x32xf32, #tpu.memory_space<vmem>>) attributes {dimension_semantics = [#tpu.dimension_semantics<parallel>], iteration_bounds = array<i64: 1>, scalar_prefetch = 0 : i64, scratch_operands = 1 : i64, tpu.core_type = #tpu.core_type<tc>, window_params = [{transform_indices = @transform_0, window_bounds = array<i64: 19, 8, 32>}, {transform_indices = @transform_1, window_bounds = array<i64: 19, 8, 32>}, {pipeline_mode = #tpu.pipeline_mode<synchronous>, transform_indices = @transform_2, window_bounds = array<i64: 1, 16>}, {pipeline_mode = #tpu.pipeline_mode<synchronous>, transform_indices = @transform_3, window_bounds = array<i64: 1, 16>}, {pipeline_mode = #tpu.pipeline_mode<synchronous>, transform_indices = @transform_4, window_bounds = array<i64: 32, 16>}, {pipeline_mode = #tpu.pipeline_mode<synchronous>, transform_indices = @transform_5, window_bounds = array<i64: 1, 16>}, {pipeline_mode = #tpu.pipeline_mode<synchronous>, transform_indices = @transform_6, window_bounds = array<i64: 1, 16>}, {pipeline_mode = #tpu.pipeline_mode<synchronous>, transform_indices = @transform_7, window_bounds = array<i64: 1, 16>}, {pipeline_mode = #tpu.pipeline_mode<synchronous>, transform_indices = @transform_8, window_bounds = array<i64: 16, 16>}, {pipeline_mode = #tpu.pipeline_mode<synchronous>, transform_indices = @transform_9, window_bounds = array<i64: 1, 16>}, {pipeline_mode = #tpu.pipeline_mode<synchronous>, transform_indices = @transform_10, window_bounds = array<i64: 19, 16, 32>}, {pipeline_mode = #tpu.pipeline_mode<synchronous>, transform_indices = @transform_11, window_bounds = array<i64: 19, 1, 32>}, {pipeline_mode = #tpu.pipeline_mode<synchronous>, transform_indices = @transform_12, window_bounds = array<i64: 19, 32, 32>}, {transform_indices = @transform_13, window_bounds = array<i64: 8, 32>}]} {
    %c0 = arith.constant 0 : index
    %c0_0 = arith.constant 0 : index
    %c0_1 = arith.constant 0 : index
    %0 = vector.load %arg1[%c0, %c0_0, %c0_1] : memref<19x8x32xbf16, #tpu.memory_space<vmem>>, vector<1x8x32xbf16>
    %1 = vector.shape_cast %0 : vector<1x8x32xbf16> to vector<8x32xbf16>
    %2 = arith.extf %1 : vector<8x32xbf16> to vector<8x32xf32>
    %c1 = arith.constant 1 : index
    %c0_2 = arith.constant 0 : index
    %c0_3 = arith.constant 0 : index
    %3 = vector.load %arg1[%c1, %c0_2, %c0_3] : memref<19x8x32xbf16, #tpu.memory_space<vmem>>, vector<1x8x32xbf16>
    %4 = vector.shape_cast %3 : vector<1x8x32xbf16> to vector<8x32xbf16>
    %5 = arith.extf %4 : vector<8x32xbf16> to vector<8x32xf32>
    %6 = arith.addf %2, %5 : vector<8x32xf32>
    %c2 = arith.constant 2 : index
    %c0_4 = arith.constant 0 : index
    %c0_5 = arith.constant 0 : index
    %7 = vector.load %arg1[%c2, %c0_4, %c0_5] : memref<19x8x32xbf16, #tpu.memory_space<vmem>>, vector<1x8x32xbf16>
    %8 = vector.shape_cast %7 : vector<1x8x32xbf16> to vector<8x32xbf16>
    %9 = arith.extf %8 : vector<8x32xbf16> to vector<8x32xf32>
    %10 = arith.addf %6, %9 : vector<8x32xf32>
    %c3 = arith.constant 3 : index
    %c0_6 = arith.constant 0 : index
    %c0_7 = arith.constant 0 : index
    %11 = vector.load %arg1[%c3, %c0_6, %c0_7] : memref<19x8x32xbf16, #tpu.memory_space<vmem>>, vector<1x8x32xbf16>
    %12 = vector.shape_cast %11 : vector<1x8x32xbf16> to vector<8x32xbf16>
    %13 = arith.extf %12 : vector<8x32xbf16> to vector<8x32xf32>
    %14 = arith.addf %10, %13 : vector<8x32xf32>
    %c4 = arith.constant 4 : index
    %c0_8 = arith.constant 0 : index
    %c0_9 = arith.constant 0 : index
    %15 = vector.load %arg1[%c4, %c0_8, %c0_9] : memref<19x8x32xbf16, #tpu.memory_space<vmem>>, vector<1x8x32xbf16>
    %16 = vector.shape_cast %15 : vector<1x8x32xbf16> to vector<8x32xbf16>
    %17 = arith.extf %16 : vector<8x32xbf16> to vector<8x32xf32>
    %18 = arith.addf %14, %17 : vector<8x32xf32>
    %c5 = arith.constant 5 : index
    %c0_10 = arith.constant 0 : index
    %c0_11 = arith.constant 0 : index
    %19 = vector.load %arg1[%c5, %c0_10, %c0_11] : memref<19x8x32xbf16, #tpu.memory_space<vmem>>, vector<1x8x32xbf16>
    %20 = vector.shape_cast %19 : vector<1x8x32xbf16> to vector<8x32xbf16>
    %21 = arith.extf %20 : vector<8x32xbf16> to vector<8x32xf32>
    %22 = arith.addf %18, %21 : vector<8x32xf32>
    %c6 = arith.constant 6 : index
    %c0_12 = arith.constant 0 : index
    %c0_13 = arith.constant 0 : index
    %23 = vector.load %arg1[%c6, %c0_12, %c0_13] : memref<19x8x32xbf16, #tpu.memory_space<vmem>>, vector<1x8x32xbf16>
    %24 = vector.shape_cast %23 : vector<1x8x32xbf16> to vector<8x32xbf16>
    %25 = arith.extf %24 : vector<8x32xbf16> to vector<8x32xf32>
    %26 = arith.addf %22, %25 : vector<8x32xf32>
    %c7 = arith.constant 7 : index
    %c0_14 = arith.constant 0 : index
    %c0_15 = arith.constant 0 : index
    %27 = vector.load %arg1[%c7, %c0_14, %c0_15] : memref<19x8x32xbf16, #tpu.memory_space<vmem>>, vector<1x8x32xbf16>
    %28 = vector.shape_cast %27 : vector<1x8x32xbf16> to vector<8x32xbf16>
    %29 = arith.extf %28 : vector<8x32xbf16> to vector<8x32xf32>
    %30 = arith.addf %26, %29 : vector<8x32xf32>
    %c8 = arith.constant 8 : index
    %c0_16 = arith.constant 0 : index
    %c0_17 = arith.constant 0 : index
    %31 = vector.load %arg1[%c8, %c0_16, %c0_17] : memref<19x8x32xbf16, #tpu.memory_space<vmem>>, vector<1x8x32xbf16>
    %32 = vector.shape_cast %31 : vector<1x8x32xbf16> to vector<8x32xbf16>
    %33 = arith.extf %32 : vector<8x32xbf16> to vector<8x32xf32>
    %34 = arith.addf %30, %33 : vector<8x32xf32>
    %c9 = arith.constant 9 : index
    %c0_18 = arith.constant 0 : index
    %c0_19 = arith.constant 0 : index
    %35 = vector.load %arg1[%c9, %c0_18, %c0_19] : memref<19x8x32xbf16, #tpu.memory_space<vmem>>, vector<1x8x32xbf16>
    %36 = vector.shape_cast %35 : vector<1x8x32xbf16> to vector<8x32xbf16>
    %37 = arith.extf %36 : vector<8x32xbf16> to vector<8x32xf32>
    %38 = arith.addf %34, %37 : vector<8x32xf32>
    %c10 = arith.constant 10 : index
    %c0_20 = arith.constant 0 : index
    %c0_21 = arith.constant 0 : index
    %39 = vector.load %arg1[%c10, %c0_20, %c0_21] : memref<19x8x32xbf16, #tpu.memory_space<vmem>>, vector<1x8x32xbf16>
    %40 = vector.shape_cast %39 : vector<1x8x32xbf16> to vector<8x32xbf16>
    %41 = arith.extf %40 : vector<8x32xbf16> to vector<8x32xf32>
    %42 = arith.addf %38, %41 : vector<8x32xf32>
    %c11 = arith.constant 11 : index
    %c0_22 = arith.constant 0 : index
    %c0_23 = arith.constant 0 : index
    %43 = vector.load %arg1[%c11, %c0_22, %c0_23] : memref<19x8x32xbf16, #tpu.memory_space<vmem>>, vector<1x8x32xbf16>
    %44 = vector.shape_cast %43 : vector<1x8x32xbf16> to vector<8x32xbf16>
    %45 = arith.extf %44 : vector<8x32xbf16> to vector<8x32xf32>
    %46 = arith.addf %42, %45 : vector<8x32xf32>
    %c12 = arith.constant 12 : index
    %c0_24 = arith.constant 0 : index
    %c0_25 = arith.constant 0 : index
    %47 = vector.load %arg1[%c12, %c0_24, %c0_25] : memref<19x8x32xbf16, #tpu.memory_space<vmem>>, vector<1x8x32xbf16>
    %48 = vector.shape_cast %47 : vector<1x8x32xbf16> to vector<8x32xbf16>
    %49 = arith.extf %48 : vector<8x32xbf16> to vector<8x32xf32>
    %50 = arith.addf %46, %49 : vector<8x32xf32>
    %c13 = arith.constant 13 : index
    %c0_26 = arith.constant 0 : index
    %c0_27 = arith.constant 0 : index
    %51 = vector.load %arg1[%c13, %c0_26, %c0_27] : memref<19x8x32xbf16, #tpu.memory_space<vmem>>, vector<1x8x32xbf16>
    %52 = vector.shape_cast %51 : vector<1x8x32xbf16> to vector<8x32xbf16>
    %53 = arith.extf %52 : vector<8x32xbf16> to vector<8x32xf32>
    %54 = arith.addf %50, %53 : vector<8x32xf32>
    %c14 = arith.constant 14 : index
    %c0_28 = arith.constant 0 : index
    %c0_29 = arith.constant 0 : index
    %55 = vector.load %arg1[%c14, %c0_28, %c0_29] : memref<19x8x32xbf16, #tpu.memory_space<vmem>>, vector<1x8x32xbf16>
    %56 = vector.shape_cast %55 : vector<1x8x32xbf16> to vector<8x32xbf16>
    %57 = arith.extf %56 : vector<8x32xbf16> to vector<8x32xf32>
    %58 = arith.addf %54, %57 : vector<8x32xf32>
    %c15 = arith.constant 15 : index
    %c0_30 = arith.constant 0 : index
    %c0_31 = arith.constant 0 : index
    %59 = vector.load %arg1[%c15, %c0_30, %c0_31] : memref<19x8x32xbf16, #tpu.memory_space<vmem>>, vector<1x8x32xbf16>
    %60 = vector.shape_cast %59 : vector<1x8x32xbf16> to vector<8x32xbf16>
    %61 = arith.extf %60 : vector<8x32xbf16> to vector<8x32xf32>
    %62 = arith.addf %58, %61 : vector<8x32xf32>
    %c16 = arith.constant 16 : index
    %c0_32 = arith.constant 0 : index
    %c0_33 = arith.constant 0 : index
    %63 = vector.load %arg1[%c16, %c0_32, %c0_33] : memref<19x8x32xbf16, #tpu.memory_space<vmem>>, vector<1x8x32xbf16>
    %64 = vector.shape_cast %63 : vector<1x8x32xbf16> to vector<8x32xbf16>
    %65 = arith.extf %64 : vector<8x32xbf16> to vector<8x32xf32>
    %66 = arith.addf %62, %65 : vector<8x32xf32>
    %c17 = arith.constant 17 : index
    %c0_34 = arith.constant 0 : index
    %c0_35 = arith.constant 0 : index
    %67 = vector.load %arg1[%c17, %c0_34, %c0_35] : memref<19x8x32xbf16, #tpu.memory_space<vmem>>, vector<1x8x32xbf16>
    %68 = vector.shape_cast %67 : vector<1x8x32xbf16> to vector<8x32xbf16>
    %69 = arith.extf %68 : vector<8x32xbf16> to vector<8x32xf32>
    %70 = arith.addf %66, %69 : vector<8x32xf32>
    %c18 = arith.constant 18 : index
    %c0_36 = arith.constant 0 : index
    %c0_37 = arith.constant 0 : index
    %71 = vector.load %arg1[%c18, %c0_36, %c0_37] : memref<19x8x32xbf16, #tpu.memory_space<vmem>>, vector<1x8x32xbf16>
    %72 = vector.shape_cast %71 : vector<1x8x32xbf16> to vector<8x32xbf16>
    %73 = arith.extf %72 : vector<8x32xbf16> to vector<8x32xf32>
    %74 = arith.addf %70, %73 : vector<8x32xf32>
    %75 = arith.truncf %74 : vector<8x32xf32> to vector<8x32xbf16>
    %c0_38 = arith.constant 0 : index
    %c0_39 = arith.constant 0 : index
    %76 = vector.load %arg5[%c0_38, %c0_39] : memref<32x16xbf16, #tpu.memory_space<vmem>>, vector<32x16xbf16>
    %cst = arith.constant dense<0.000000e+00> : vector<8x16xf32>
    %77 = tpu.matmul %75, %76, %cst {dimension_numbers = #tpu.dot_dimension_numbers<[1], [0], [0], [1], [0, 0, 1, 1], [], []>} : vector<8x32xbf16>, vector<32x16xbf16>, vector<8x16xf32> -> vector<8x16xf32>
    %c0_40 = arith.constant 0 : index
    %c0_41 = arith.constant 0 : index
    %78 = vector.load %arg6[%c0_40, %c0_41] : memref<1x16xf32, #tpu.memory_space<vmem>>, vector<1x16xf32>
    %79 = vector.broadcast %78 : vector<1x16xf32> to vector<8x16xf32>
    %80 = arith.addf %77, %79 : vector<8x16xf32>
    %cst_42 = arith.constant 0.000000e+00 : f32
    %81 = vector.broadcast %cst_42 : f32 to vector<8x16xf32>
    %82 = arith.maximumf %80, %81 : vector<8x16xf32>
    %c0_43 = arith.constant 0 : index
    %c0_44 = arith.constant 0 : index
    %83 = vector.load %arg3[%c0_43, %c0_44] : memref<1x16xf32, #tpu.memory_space<vmem>>, vector<1x16xf32>
    %84 = vector.broadcast %83 : vector<1x16xf32> to vector<8x16xf32>
    %85 = arith.subf %82, %84 : vector<8x16xf32>
    %c0_45 = arith.constant 0 : index
    %c0_46 = arith.constant 0 : index
    %86 = vector.load %arg4[%c0_45, %c0_46] : memref<1x16xf32, #tpu.memory_space<vmem>>, vector<1x16xf32>
    %cst_47 = arith.constant 9.99999974E-6 : f32
    %87 = vector.broadcast %cst_47 : f32 to vector<1x16xf32>
    %88 = arith.addf %86, %87 : vector<1x16xf32>
    %89 = math.rsqrt %88 : vector<1x16xf32>
    %90 = vector.broadcast %89 : vector<1x16xf32> to vector<8x16xf32>
    %91 = arith.mulf %85, %90 : vector<8x16xf32>
    %c0_48 = arith.constant 0 : index
    %c0_49 = arith.constant 0 : index
    %92 = vector.load %arg7[%c0_48, %c0_49] : memref<1x16xf32, #tpu.memory_space<vmem>>, vector<1x16xf32>
    %93 = vector.broadcast %92 : vector<1x16xf32> to vector<8x16xf32>
    %94 = arith.mulf %91, %93 : vector<8x16xf32>
    %c0_50 = arith.constant 0 : index
    %c0_51 = arith.constant 0 : index
    %95 = vector.load %arg8[%c0_50, %c0_51] : memref<1x16xf32, #tpu.memory_space<vmem>>, vector<1x16xf32>
    %96 = vector.broadcast %95 : vector<1x16xf32> to vector<8x16xf32>
    %97 = arith.addf %94, %96 : vector<8x16xf32>
    %98 = arith.truncf %97 : vector<8x16xf32> to vector<8x16xbf16>
    %c0_52 = arith.constant 0 : index
    %c0_53 = arith.constant 0 : index
    %99 = vector.load %arg9[%c0_52, %c0_53] : memref<16x16xbf16, #tpu.memory_space<vmem>>, vector<16x16xbf16>
    %cst_54 = arith.constant dense<0.000000e+00> : vector<8x16xf32>
    %100 = tpu.matmul %98, %99, %cst_54 {dimension_numbers = #tpu.dot_dimension_numbers<[1], [0], [0], [1], [0, 0, 1, 1], [], []>} : vector<8x16xbf16>, vector<16x16xbf16>, vector<8x16xf32> -> vector<8x16xf32>
    %c0_55 = arith.constant 0 : index
    %c0_56 = arith.constant 0 : index
    %101 = vector.load %arg10[%c0_55, %c0_56] : memref<1x16xf32, #tpu.memory_space<vmem>>, vector<1x16xf32>
    %102 = vector.broadcast %101 : vector<1x16xf32> to vector<8x16xf32>
    %103 = arith.addf %100, %102 : vector<8x16xf32>
    %104 = arith.truncf %103 : vector<8x16xf32> to vector<8x16xbf16>
    %c0_57 = arith.constant 0 : index
    %c0_58 = arith.constant 0 : index
    %c0_59 = arith.constant 0 : index
    %105 = vector.load %arg11[%c0_57, %c0_58, %c0_59] : memref<19x16x32xbf16, #tpu.memory_space<vmem>>, vector<1x16x32xbf16>
    %106 = vector.shape_cast %105 : vector<1x16x32xbf16> to vector<16x32xbf16>
    %cst_60 = arith.constant dense<0.000000e+00> : vector<8x32xf32>
    %107 = tpu.matmul %104, %106, %cst_60 {dimension_numbers = #tpu.dot_dimension_numbers<[1], [0], [0], [1], [0, 0, 1, 1], [], []>} : vector<8x16xbf16>, vector<16x32xbf16>, vector<8x32xf32> -> vector<8x32xf32>
    %c0_61 = arith.constant 0 : index
    %c0_62 = arith.constant 0 : index
    %c0_63 = arith.constant 0 : index
    %108 = vector.load %arg2[%c0_61, %c0_62, %c0_63] : memref<19x8x32xbf16, #tpu.memory_space<vmem>>, vector<1x8x32xbf16>
    %109 = vector.shape_cast %108 : vector<1x8x32xbf16> to vector<8x32xbf16>
    %c0_64 = arith.constant 0 : index
    %c0_65 = arith.constant 0 : index
    %c0_66 = arith.constant 0 : index
    %110 = vector.load %arg13[%c0_64, %c0_65, %c0_66] : memref<19x32x32xbf16, #tpu.memory_space<vmem>>, vector<1x32x32xbf16>
    %111 = vector.shape_cast %110 : vector<1x32x32xbf16> to vector<32x32xbf16>
    %cst_67 = arith.constant dense<0.000000e+00> : vector<8x32xf32>
    %112 = tpu.matmul %109, %111, %cst_67 {dimension_numbers = #tpu.dot_dimension_numbers<[1], [0], [0], [1], [0, 0, 1, 1], [], []>} : vector<8x32xbf16>, vector<32x32xbf16>, vector<8x32xf32> -> vector<8x32xf32>
    %113 = arith.addf %107, %112 : vector<8x32xf32>
    %c0_68 = arith.constant 0 : index
    %c0_69 = arith.constant 0 : index
    %c0_70 = arith.constant 0 : index
    %114 = vector.load %arg12[%c0_68, %c0_69, %c0_70] : memref<19x1x32xf32, #tpu.memory_space<vmem>>, vector<1x1x32xf32>
    %115 = vector.shape_cast %114 : vector<1x1x32xf32> to vector<1x32xf32>
    %116 = vector.broadcast %115 : vector<1x32xf32> to vector<8x32xf32>
    %117 = arith.addf %113, %116 : vector<8x32xf32>
    %c0_71 = arith.constant 0 : index
    %c0_72 = arith.constant 0 : index
    %c0_73 = arith.constant 0 : index
    %118 = vector.load %arg15[%c0_71, %c0_72, %c0_73] : memref<19x8x32xf32, #tpu.memory_space<vmem>>, vector<1x8x32xf32>
    %119 = vector.shape_cast %118 : vector<1x8x32xf32> to vector<8x32xf32>
    %120 = vector.shape_cast %117 : vector<8x32xf32> to vector<1x8x32xf32>
    tpu.vector_store %arg15[%c0_71, %c0_72, %c0_73], %120 {strides = array<i32>} : memref<19x8x32xf32, #tpu.memory_space<vmem>>, vector<1x8x32xf32>,
    %c1_74 = arith.constant 1 : index
    %c0_75 = arith.constant 0 : index
    %c0_76 = arith.constant 0 : index
    %121 = vector.load %arg11[%c1_74, %c0_75, %c0_76] : memref<19x16x32xbf16, #tpu.memory_space<vmem>>, vector<1x16x32xbf16>
    %122 = vector.shape_cast %121 : vector<1x16x32xbf16> to vector<16x32xbf16>
    %cst_77 = arith.constant dense<0.000000e+00> : vector<8x32xf32>
    %123 = tpu.matmul %104, %122, %cst_77 {dimension_numbers = #tpu.dot_dimension_numbers<[1], [0], [0], [1], [0, 0, 1, 1], [], []>} : vector<8x16xbf16>, vector<16x32xbf16>, vector<8x32xf32> -> vector<8x32xf32>
    %c1_78 = arith.constant 1 : index
    %c0_79 = arith.constant 0 : index
    %c0_80 = arith.constant 0 : index
    %124 = vector.load %arg2[%c1_78, %c0_79, %c0_80] : memref<19x8x32xbf16, #tpu.memory_space<vmem>>, vector<1x8x32xbf16>
    %125 = vector.shape_cast %124 : vector<1x8x32xbf16> to vector<8x32xbf16>
    %c1_81 = arith.constant 1 : index
    %c0_82 = arith.constant 0 : index
    %c0_83 = arith.constant 0 : index
    %126 = vector.load %arg13[%c1_81, %c0_82, %c0_83] : memref<19x32x32xbf16, #tpu.memory_space<vmem>>, vector<1x32x32xbf16>
    %127 = vector.shape_cast %126 : vector<1x32x32xbf16> to vector<32x32xbf16>
    %cst_84 = arith.constant dense<0.000000e+00> : vector<8x32xf32>
    %128 = tpu.matmul %125, %127, %cst_84 {dimension_numbers = #tpu.dot_dimension_numbers<[1], [0], [0], [1], [0, 0, 1, 1], [], []>} : vector<8x32xbf16>, vector<32x32xbf16>, vector<8x32xf32> -> vector<8x32xf32>
    %129 = arith.addf %123, %128 : vector<8x32xf32>
    %c1_85 = arith.constant 1 : index
    %c0_86 = arith.constant 0 : index
    %c0_87 = arith.constant 0 : index
    %130 = vector.load %arg12[%c1_85, %c0_86, %c0_87] : memref<19x1x32xf32, #tpu.memory_space<vmem>>, vector<1x1x32xf32>
    %131 = vector.shape_cast %130 : vector<1x1x32xf32> to vector<1x32xf32>
    %132 = vector.broadcast %131 : vector<1x32xf32> to vector<8x32xf32>
    %133 = arith.addf %129, %132 : vector<8x32xf32>
    %c1_88 = arith.constant 1 : index
    %c0_89 = arith.constant 0 : index
    %c0_90 = arith.constant 0 : index
    %134 = vector.load %arg15[%c1_88, %c0_89, %c0_90] : memref<19x8x32xf32, #tpu.memory_space<vmem>>, vector<1x8x32xf32>
    %135 = vector.shape_cast %134 : vector<1x8x32xf32> to vector<8x32xf32>
    %136 = vector.shape_cast %133 : vector<8x32xf32> to vector<1x8x32xf32>
    tpu.vector_store %arg15[%c1_88, %c0_89, %c0_90], %136 {strides = array<i32>} : memref<19x8x32xf32, #tpu.memory_space<vmem>>, vector<1x8x32xf32>,
    %137 = arith.maximumf %117, %133 : vector<8x32xf32>
    %c2_91 = arith.constant 2 : index
    %c0_92 = arith.constant 0 : index
    %c0_93 = arith.constant 0 : index
    %138 = vector.load %arg11[%c2_91, %c0_92, %c0_93] : memref<19x16x32xbf16, #tpu.memory_space<vmem>>, vector<1x16x32xbf16>
    %139 = vector.shape_cast %138 : vector<1x16x32xbf16> to vector<16x32xbf16>
    %cst_94 = arith.constant dense<0.000000e+00> : vector<8x32xf32>
    %140 = tpu.matmul %104, %139, %cst_94 {dimension_numbers = #tpu.dot_dimension_numbers<[1], [0], [0], [1], [0, 0, 1, 1], [], []>} : vector<8x16xbf16>, vector<16x32xbf16>, vector<8x32xf32> -> vector<8x32xf32>
    %c2_95 = arith.constant 2 : index
    %c0_96 = arith.constant 0 : index
    %c0_97 = arith.constant 0 : index
    %141 = vector.load %arg2[%c2_95, %c0_96, %c0_97] : memref<19x8x32xbf16, #tpu.memory_space<vmem>>, vector<1x8x32xbf16>
    %142 = vector.shape_cast %141 : vector<1x8x32xbf16> to vector<8x32xbf16>
    %c2_98 = arith.constant 2 : index
    %c0_99 = arith.constant 0 : index
    %c0_100 = arith.constant 0 : index
    %143 = vector.load %arg13[%c2_98, %c0_99, %c0_100] : memref<19x32x32xbf16, #tpu.memory_space<vmem>>, vector<1x32x32xbf16>
    %144 = vector.shape_cast %143 : vector<1x32x32xbf16> to vector<32x32xbf16>
    %cst_101 = arith.constant dense<0.000000e+00> : vector<8x32xf32>
    %145 = tpu.matmul %142, %144, %cst_101 {dimension_numbers = #tpu.dot_dimension_numbers<[1], [0], [0], [1], [0, 0, 1, 1], [], []>} : vector<8x32xbf16>, vector<32x32xbf16>, vector<8x32xf32> -> vector<8x32xf32>
    %146 = arith.addf %140, %145 : vector<8x32xf32>
    %c2_102 = arith.constant 2 : index
    %c0_103 = arith.constant 0 : index
    %c0_104 = arith.constant 0 : index
    %147 = vector.load %arg12[%c2_102, %c0_103, %c0_104] : memref<19x1x32xf32, #tpu.memory_space<vmem>>, vector<1x1x32xf32>
    %148 = vector.shape_cast %147 : vector<1x1x32xf32> to vector<1x32xf32>
    %149 = vector.broadcast %148 : vector<1x32xf32> to vector<8x32xf32>
    %150 = arith.addf %146, %149 : vector<8x32xf32>
    %c2_105 = arith.constant 2 : index
    %c0_106 = arith.constant 0 : index
    %c0_107 = arith.constant 0 : index
    %151 = vector.load %arg15[%c2_105, %c0_106, %c0_107] : memref<19x8x32xf32, #tpu.memory_space<vmem>>, vector<1x8x32xf32>
    %152 = vector.shape_cast %151 : vector<1x8x32xf32> to vector<8x32xf32>
    %153 = vector.shape_cast %150 : vector<8x32xf32> to vector<1x8x32xf32>
    tpu.vector_store %arg15[%c2_105, %c0_106, %c0_107], %153 {strides = array<i32>} : memref<19x8x32xf32, #tpu.memory_space<vmem>>, vector<1x8x32xf32>,
    %154 = arith.maximumf %137, %150 : vector<8x32xf32>
    %c3_108 = arith.constant 3 : index
    %c0_109 = arith.constant 0 : index
    %c0_110 = arith.constant 0 : index
    %155 = vector.load %arg11[%c3_108, %c0_109, %c0_110] : memref<19x16x32xbf16, #tpu.memory_space<vmem>>, vector<1x16x32xbf16>
    %156 = vector.shape_cast %155 : vector<1x16x32xbf16> to vector<16x32xbf16>
    %cst_111 = arith.constant dense<0.000000e+00> : vector<8x32xf32>
    %157 = tpu.matmul %104, %156, %cst_111 {dimension_numbers = #tpu.dot_dimension_numbers<[1], [0], [0], [1], [0, 0, 1, 1], [], []>} : vector<8x16xbf16>, vector<16x32xbf16>, vector<8x32xf32> -> vector<8x32xf32>
    %c3_112 = arith.constant 3 : index
    %c0_113 = arith.constant 0 : index
    %c0_114 = arith.constant 0 : index
    %158 = vector.load %arg2[%c3_112, %c0_113, %c0_114] : memref<19x8x32xbf16, #tpu.memory_space<vmem>>, vector<1x8x32xbf16>
    %159 = vector.shape_cast %158 : vector<1x8x32xbf16> to vector<8x32xbf16>
    %c3_115 = arith.constant 3 : index
    %c0_116 = arith.constant 0 : index
    %c0_117 = arith.constant 0 : index
    %160 = vector.load %arg13[%c3_115, %c0_116, %c0_117] : memref<19x32x32xbf16, #tpu.memory_space<vmem>>, vector<1x32x32xbf16>
    %161 = vector.shape_cast %160 : vector<1x32x32xbf16> to vector<32x32xbf16>
    %cst_118 = arith.constant dense<0.000000e+00> : vector<8x32xf32>
    %162 = tpu.matmul %159, %161, %cst_118 {dimension_numbers = #tpu.dot_dimension_numbers<[1], [0], [0], [1], [0, 0, 1, 1], [], []>} : vector<8x32xbf16>, vector<32x32xbf16>, vector<8x32xf32> -> vector<8x32xf32>
    %163 = arith.addf %157, %162 : vector<8x32xf32>
    %c3_119 = arith.constant 3 : index
    %c0_120 = arith.constant 0 : index
    %c0_121 = arith.constant 0 : index
    %164 = vector.load %arg12[%c3_119, %c0_120, %c0_121] : memref<19x1x32xf32, #tpu.memory_space<vmem>>, vector<1x1x32xf32>
    %165 = vector.shape_cast %164 : vector<1x1x32xf32> to vector<1x32xf32>
    %166 = vector.broadcast %165 : vector<1x32xf32> to vector<8x32xf32>
    %167 = arith.addf %163, %166 : vector<8x32xf32>
    %c3_122 = arith.constant 3 : index
    %c0_123 = arith.constant 0 : index
    %c0_124 = arith.constant 0 : index
    %168 = vector.load %arg15[%c3_122, %c0_123, %c0_124] : memref<19x8x32xf32, #tpu.memory_space<vmem>>, vector<1x8x32xf32>
    %169 = vector.shape_cast %168 : vector<1x8x32xf32> to vector<8x32xf32>
    %170 = vector.shape_cast %167 : vector<8x32xf32> to vector<1x8x32xf32>
    tpu.vector_store %arg15[%c3_122, %c0_123, %c0_124], %170 {strides = array<i32>} : memref<19x8x32xf32, #tpu.memory_space<vmem>>, vector<1x8x32xf32>,
    %171 = arith.maximumf %154, %167 : vector<8x32xf32>
    %c4_125 = arith.constant 4 : index
    %c0_126 = arith.constant 0 : index
    %c0_127 = arith.constant 0 : index
    %172 = vector.load %arg11[%c4_125, %c0_126, %c0_127] : memref<19x16x32xbf16, #tpu.memory_space<vmem>>, vector<1x16x32xbf16>
    %173 = vector.shape_cast %172 : vector<1x16x32xbf16> to vector<16x32xbf16>
    %cst_128 = arith.constant dense<0.000000e+00> : vector<8x32xf32>
    %174 = tpu.matmul %104, %173, %cst_128 {dimension_numbers = #tpu.dot_dimension_numbers<[1], [0], [0], [1], [0, 0, 1, 1], [], []>} : vector<8x16xbf16>, vector<16x32xbf16>, vector<8x32xf32> -> vector<8x32xf32>
    %c4_129 = arith.constant 4 : index
    %c0_130 = arith.constant 0 : index
    %c0_131 = arith.constant 0 : index
    %175 = vector.load %arg2[%c4_129, %c0_130, %c0_131] : memref<19x8x32xbf16, #tpu.memory_space<vmem>>, vector<1x8x32xbf16>
    %176 = vector.shape_cast %175 : vector<1x8x32xbf16> to vector<8x32xbf16>
    %c4_132 = arith.constant 4 : index
    %c0_133 = arith.constant 0 : index
    %c0_134 = arith.constant 0 : index
    %177 = vector.load %arg13[%c4_132, %c0_133, %c0_134] : memref<19x32x32xbf16, #tpu.memory_space<vmem>>, vector<1x32x32xbf16>
    %178 = vector.shape_cast %177 : vector<1x32x32xbf16> to vector<32x32xbf16>
    %cst_135 = arith.constant dense<0.000000e+00> : vector<8x32xf32>
    %179 = tpu.matmul %176, %178, %cst_135 {dimension_numbers = #tpu.dot_dimension_numbers<[1], [0], [0], [1], [0, 0, 1, 1], [], []>} : vector<8x32xbf16>, vector<32x32xbf16>, vector<8x32xf32> -> vector<8x32xf32>
    %180 = arith.addf %174, %179 : vector<8x32xf32>
    %c4_136 = arith.constant 4 : index
    %c0_137 = arith.constant 0 : index
    %c0_138 = arith.constant 0 : index
    %181 = vector.load %arg12[%c4_136, %c0_137, %c0_138] : memref<19x1x32xf32, #tpu.memory_space<vmem>>, vector<1x1x32xf32>
    %182 = vector.shape_cast %181 : vector<1x1x32xf32> to vector<1x32xf32>
    %183 = vector.broadcast %182 : vector<1x32xf32> to vector<8x32xf32>
    %184 = arith.addf %180, %183 : vector<8x32xf32>
    %c4_139 = arith.constant 4 : index
    %c0_140 = arith.constant 0 : index
    %c0_141 = arith.constant 0 : index
    %185 = vector.load %arg15[%c4_139, %c0_140, %c0_141] : memref<19x8x32xf32, #tpu.memory_space<vmem>>, vector<1x8x32xf32>
    %186 = vector.shape_cast %185 : vector<1x8x32xf32> to vector<8x32xf32>
    %187 = vector.shape_cast %184 : vector<8x32xf32> to vector<1x8x32xf32>
    tpu.vector_store %arg15[%c4_139, %c0_140, %c0_141], %187 {strides = array<i32>} : memref<19x8x32xf32, #tpu.memory_space<vmem>>, vector<1x8x32xf32>,
    %188 = arith.maximumf %171, %184 : vector<8x32xf32>
    %c5_142 = arith.constant 5 : index
    %c0_143 = arith.constant 0 : index
    %c0_144 = arith.constant 0 : index
    %189 = vector.load %arg11[%c5_142, %c0_143, %c0_144] : memref<19x16x32xbf16, #tpu.memory_space<vmem>>, vector<1x16x32xbf16>
    %190 = vector.shape_cast %189 : vector<1x16x32xbf16> to vector<16x32xbf16>
    %cst_145 = arith.constant dense<0.000000e+00> : vector<8x32xf32>
    %191 = tpu.matmul %104, %190, %cst_145 {dimension_numbers = #tpu.dot_dimension_numbers<[1], [0], [0], [1], [0, 0, 1, 1], [], []>} : vector<8x16xbf16>, vector<16x32xbf16>, vector<8x32xf32> -> vector<8x32xf32>
    %c5_146 = arith.constant 5 : index
    %c0_147 = arith.constant 0 : index
    %c0_148 = arith.constant 0 : index
    %192 = vector.load %arg2[%c5_146, %c0_147, %c0_148] : memref<19x8x32xbf16, #tpu.memory_space<vmem>>, vector<1x8x32xbf16>
    %193 = vector.shape_cast %192 : vector<1x8x32xbf16> to vector<8x32xbf16>
    %c5_149 = arith.constant 5 : index
    %c0_150 = arith.constant 0 : index
    %c0_151 = arith.constant 0 : index
    %194 = vector.load %arg13[%c5_149, %c0_150, %c0_151] : memref<19x32x32xbf16, #tpu.memory_space<vmem>>, vector<1x32x32xbf16>
    %195 = vector.shape_cast %194 : vector<1x32x32xbf16> to vector<32x32xbf16>
    %cst_152 = arith.constant dense<0.000000e+00> : vector<8x32xf32>
    %196 = tpu.matmul %193, %195, %cst_152 {dimension_numbers = #tpu.dot_dimension_numbers<[1], [0], [0], [1], [0, 0, 1, 1], [], []>} : vector<8x32xbf16>, vector<32x32xbf16>, vector<8x32xf32> -> vector<8x32xf32>
    %197 = arith.addf %191, %196 : vector<8x32xf32>
    %c5_153 = arith.constant 5 : index
    %c0_154 = arith.constant 0 : index
    %c0_155 = arith.constant 0 : index
    %198 = vector.load %arg12[%c5_153, %c0_154, %c0_155] : memref<19x1x32xf32, #tpu.memory_space<vmem>>, vector<1x1x32xf32>
    %199 = vector.shape_cast %198 : vector<1x1x32xf32> to vector<1x32xf32>
    %200 = vector.broadcast %199 : vector<1x32xf32> to vector<8x32xf32>
    %201 = arith.addf %197, %200 : vector<8x32xf32>
    %c5_156 = arith.constant 5 : index
    %c0_157 = arith.constant 0 : index
    %c0_158 = arith.constant 0 : index
    %202 = vector.load %arg15[%c5_156, %c0_157, %c0_158] : memref<19x8x32xf32, #tpu.memory_space<vmem>>, vector<1x8x32xf32>
    %203 = vector.shape_cast %202 : vector<1x8x32xf32> to vector<8x32xf32>
    %204 = vector.shape_cast %201 : vector<8x32xf32> to vector<1x8x32xf32>
    tpu.vector_store %arg15[%c5_156, %c0_157, %c0_158], %204 {strides = array<i32>} : memref<19x8x32xf32, #tpu.memory_space<vmem>>, vector<1x8x32xf32>,
    %205 = arith.maximumf %188, %201 : vector<8x32xf32>
    %c6_159 = arith.constant 6 : index
    %c0_160 = arith.constant 0 : index
    %c0_161 = arith.constant 0 : index
    %206 = vector.load %arg11[%c6_159, %c0_160, %c0_161] : memref<19x16x32xbf16, #tpu.memory_space<vmem>>, vector<1x16x32xbf16>
    %207 = vector.shape_cast %206 : vector<1x16x32xbf16> to vector<16x32xbf16>
    %cst_162 = arith.constant dense<0.000000e+00> : vector<8x32xf32>
    %208 = tpu.matmul %104, %207, %cst_162 {dimension_numbers = #tpu.dot_dimension_numbers<[1], [0], [0], [1], [0, 0, 1, 1], [], []>} : vector<8x16xbf16>, vector<16x32xbf16>, vector<8x32xf32> -> vector<8x32xf32>
    %c6_163 = arith.constant 6 : index
    %c0_164 = arith.constant 0 : index
    %c0_165 = arith.constant 0 : index
    %209 = vector.load %arg2[%c6_163, %c0_164, %c0_165] : memref<19x8x32xbf16, #tpu.memory_space<vmem>>, vector<1x8x32xbf16>
    %210 = vector.shape_cast %209 : vector<1x8x32xbf16> to vector<8x32xbf16>
    %c6_166 = arith.constant 6 : index
    %c0_167 = arith.constant 0 : index
    %c0_168 = arith.constant 0 : index
    %211 = vector.load %arg13[%c6_166, %c0_167, %c0_168] : memref<19x32x32xbf16, #tpu.memory_space<vmem>>, vector<1x32x32xbf16>
    %212 = vector.shape_cast %211 : vector<1x32x32xbf16> to vector<32x32xbf16>
    %cst_169 = arith.constant dense<0.000000e+00> : vector<8x32xf32>
    %213 = tpu.matmul %210, %212, %cst_169 {dimension_numbers = #tpu.dot_dimension_numbers<[1], [0], [0], [1], [0, 0, 1, 1], [], []>} : vector<8x32xbf16>, vector<32x32xbf16>, vector<8x32xf32> -> vector<8x32xf32>
    %214 = arith.addf %208, %213 : vector<8x32xf32>
    %c6_170 = arith.constant 6 : index
    %c0_171 = arith.constant 0 : index
    %c0_172 = arith.constant 0 : index
    %215 = vector.load %arg12[%c6_170, %c0_171, %c0_172] : memref<19x1x32xf32, #tpu.memory_space<vmem>>, vector<1x1x32xf32>
    %216 = vector.shape_cast %215 : vector<1x1x32xf32> to vector<1x32xf32>
    %217 = vector.broadcast %216 : vector<1x32xf32> to vector<8x32xf32>
    %218 = arith.addf %214, %217 : vector<8x32xf32>
    %c6_173 = arith.constant 6 : index
    %c0_174 = arith.constant 0 : index
    %c0_175 = arith.constant 0 : index
    %219 = vector.load %arg15[%c6_173, %c0_174, %c0_175] : memref<19x8x32xf32, #tpu.memory_space<vmem>>, vector<1x8x32xf32>
    %220 = vector.shape_cast %219 : vector<1x8x32xf32> to vector<8x32xf32>
    %221 = vector.shape_cast %218 : vector<8x32xf32> to vector<1x8x32xf32>
    tpu.vector_store %arg15[%c6_173, %c0_174, %c0_175], %221 {strides = array<i32>} : memref<19x8x32xf32, #tpu.memory_space<vmem>>, vector<1x8x32xf32>,
    %222 = arith.maximumf %205, %218 : vector<8x32xf32>
    %c7_176 = arith.constant 7 : index
    %c0_177 = arith.constant 0 : index
    %c0_178 = arith.constant 0 : index
    %223 = vector.load %arg11[%c7_176, %c0_177, %c0_178] : memref<19x16x32xbf16, #tpu.memory_space<vmem>>, vector<1x16x32xbf16>
    %224 = vector.shape_cast %223 : vector<1x16x32xbf16> to vector<16x32xbf16>
    %cst_179 = arith.constant dense<0.000000e+00> : vector<8x32xf32>
    %225 = tpu.matmul %104, %224, %cst_179 {dimension_numbers = #tpu.dot_dimension_numbers<[1], [0], [0], [1], [0, 0, 1, 1], [], []>} : vector<8x16xbf16>, vector<16x32xbf16>, vector<8x32xf32> -> vector<8x32xf32>
    %c7_180 = arith.constant 7 : index
    %c0_181 = arith.constant 0 : index
    %c0_182 = arith.constant 0 : index
    %226 = vector.load %arg2[%c7_180, %c0_181, %c0_182] : memref<19x8x32xbf16, #tpu.memory_space<vmem>>, vector<1x8x32xbf16>
    %227 = vector.shape_cast %226 : vector<1x8x32xbf16> to vector<8x32xbf16>
    %c7_183 = arith.constant 7 : index
    %c0_184 = arith.constant 0 : index
    %c0_185 = arith.constant 0 : index
    %228 = vector.load %arg13[%c7_183, %c0_184, %c0_185] : memref<19x32x32xbf16, #tpu.memory_space<vmem>>, vector<1x32x32xbf16>
    %229 = vector.shape_cast %228 : vector<1x32x32xbf16> to vector<32x32xbf16>
    %cst_186 = arith.constant dense<0.000000e+00> : vector<8x32xf32>
    %230 = tpu.matmul %227, %229, %cst_186 {dimension_numbers = #tpu.dot_dimension_numbers<[1], [0], [0], [1], [0, 0, 1, 1], [], []>} : vector<8x32xbf16>, vector<32x32xbf16>, vector<8x32xf32> -> vector<8x32xf32>
    %231 = arith.addf %225, %230 : vector<8x32xf32>
    %c7_187 = arith.constant 7 : index
    %c0_188 = arith.constant 0 : index
    %c0_189 = arith.constant 0 : index
    %232 = vector.load %arg12[%c7_187, %c0_188, %c0_189] : memref<19x1x32xf32, #tpu.memory_space<vmem>>, vector<1x1x32xf32>
    %233 = vector.shape_cast %232 : vector<1x1x32xf32> to vector<1x32xf32>
    %234 = vector.broadcast %233 : vector<1x32xf32> to vector<8x32xf32>
    %235 = arith.addf %231, %234 : vector<8x32xf32>
    %c7_190 = arith.constant 7 : index
    %c0_191 = arith.constant 0 : index
    %c0_192 = arith.constant 0 : index
    %236 = vector.load %arg15[%c7_190, %c0_191, %c0_192] : memref<19x8x32xf32, #tpu.memory_space<vmem>>, vector<1x8x32xf32>
    %237 = vector.shape_cast %236 : vector<1x8x32xf32> to vector<8x32xf32>
    %238 = vector.shape_cast %235 : vector<8x32xf32> to vector<1x8x32xf32>
    tpu.vector_store %arg15[%c7_190, %c0_191, %c0_192], %238 {strides = array<i32>} : memref<19x8x32xf32, #tpu.memory_space<vmem>>, vector<1x8x32xf32>,
    %239 = arith.maximumf %222, %235 : vector<8x32xf32>
    %c8_193 = arith.constant 8 : index
    %c0_194 = arith.constant 0 : index
    %c0_195 = arith.constant 0 : index
    %240 = vector.load %arg11[%c8_193, %c0_194, %c0_195] : memref<19x16x32xbf16, #tpu.memory_space<vmem>>, vector<1x16x32xbf16>
    %241 = vector.shape_cast %240 : vector<1x16x32xbf16> to vector<16x32xbf16>
    %cst_196 = arith.constant dense<0.000000e+00> : vector<8x32xf32>
    %242 = tpu.matmul %104, %241, %cst_196 {dimension_numbers = #tpu.dot_dimension_numbers<[1], [0], [0], [1], [0, 0, 1, 1], [], []>} : vector<8x16xbf16>, vector<16x32xbf16>, vector<8x32xf32> -> vector<8x32xf32>
    %c8_197 = arith.constant 8 : index
    %c0_198 = arith.constant 0 : index
    %c0_199 = arith.constant 0 : index
    %243 = vector.load %arg2[%c8_197, %c0_198, %c0_199] : memref<19x8x32xbf16, #tpu.memory_space<vmem>>, vector<1x8x32xbf16>
    %244 = vector.shape_cast %243 : vector<1x8x32xbf16> to vector<8x32xbf16>
    %c8_200 = arith.constant 8 : index
    %c0_201 = arith.constant 0 : index
    %c0_202 = arith.constant 0 : index
    %245 = vector.load %arg13[%c8_200, %c0_201, %c0_202] : memref<19x32x32xbf16, #tpu.memory_space<vmem>>, vector<1x32x32xbf16>
    %246 = vector.shape_cast %245 : vector<1x32x32xbf16> to vector<32x32xbf16>
    %cst_203 = arith.constant dense<0.000000e+00> : vector<8x32xf32>
    %247 = tpu.matmul %244, %246, %cst_203 {dimension_numbers = #tpu.dot_dimension_numbers<[1], [0], [0], [1], [0, 0, 1, 1], [], []>} : vector<8x32xbf16>, vector<32x32xbf16>, vector<8x32xf32> -> vector<8x32xf32>
    %248 = arith.addf %242, %247 : vector<8x32xf32>
    %c8_204 = arith.constant 8 : index
    %c0_205 = arith.constant 0 : index
    %c0_206 = arith.constant 0 : index
    %249 = vector.load %arg12[%c8_204, %c0_205, %c0_206] : memref<19x1x32xf32, #tpu.memory_space<vmem>>, vector<1x1x32xf32>
    %250 = vector.shape_cast %249 : vector<1x1x32xf32> to vector<1x32xf32>
    %251 = vector.broadcast %250 : vector<1x32xf32> to vector<8x32xf32>
    %252 = arith.addf %248, %251 : vector<8x32xf32>
    %c8_207 = arith.constant 8 : index
    %c0_208 = arith.constant 0 : index
    %c0_209 = arith.constant 0 : index
    %253 = vector.load %arg15[%c8_207, %c0_208, %c0_209] : memref<19x8x32xf32, #tpu.memory_space<vmem>>, vector<1x8x32xf32>
    %254 = vector.shape_cast %253 : vector<1x8x32xf32> to vector<8x32xf32>
    %255 = vector.shape_cast %252 : vector<8x32xf32> to vector<1x8x32xf32>
    tpu.vector_store %arg15[%c8_207, %c0_208, %c0_209], %255 {strides = array<i32>} : memref<19x8x32xf32, #tpu.memory_space<vmem>>, vector<1x8x32xf32>,
    %256 = arith.maximumf %239, %252 : vector<8x32xf32>
    %c9_210 = arith.constant 9 : index
    %c0_211 = arith.constant 0 : index
    %c0_212 = arith.constant 0 : index
    %257 = vector.load %arg11[%c9_210, %c0_211, %c0_212] : memref<19x16x32xbf16, #tpu.memory_space<vmem>>, vector<1x16x32xbf16>
    %258 = vector.shape_cast %257 : vector<1x16x32xbf16> to vector<16x32xbf16>
    %cst_213 = arith.constant dense<0.000000e+00> : vector<8x32xf32>
    %259 = tpu.matmul %104, %258, %cst_213 {dimension_numbers = #tpu.dot_dimension_numbers<[1], [0], [0], [1], [0, 0, 1, 1], [], []>} : vector<8x16xbf16>, vector<16x32xbf16>, vector<8x32xf32> -> vector<8x32xf32>
    %c9_214 = arith.constant 9 : index
    %c0_215 = arith.constant 0 : index
    %c0_216 = arith.constant 0 : index
    %260 = vector.load %arg2[%c9_214, %c0_215, %c0_216] : memref<19x8x32xbf16, #tpu.memory_space<vmem>>, vector<1x8x32xbf16>
    %261 = vector.shape_cast %260 : vector<1x8x32xbf16> to vector<8x32xbf16>
    %c9_217 = arith.constant 9 : index
    %c0_218 = arith.constant 0 : index
    %c0_219 = arith.constant 0 : index
    %262 = vector.load %arg13[%c9_217, %c0_218, %c0_219] : memref<19x32x32xbf16, #tpu.memory_space<vmem>>, vector<1x32x32xbf16>
    %263 = vector.shape_cast %262 : vector<1x32x32xbf16> to vector<32x32xbf16>
    %cst_220 = arith.constant dense<0.000000e+00> : vector<8x32xf32>
    %264 = tpu.matmul %261, %263, %cst_220 {dimension_numbers = #tpu.dot_dimension_numbers<[1], [0], [0], [1], [0, 0, 1, 1], [], []>} : vector<8x32xbf16>, vector<32x32xbf16>, vector<8x32xf32> -> vector<8x32xf32>
    %265 = arith.addf %259, %264 : vector<8x32xf32>
    %c9_221 = arith.constant 9 : index
    %c0_222 = arith.constant 0 : index
    %c0_223 = arith.constant 0 : index
    %266 = vector.load %arg12[%c9_221, %c0_222, %c0_223] : memref<19x1x32xf32, #tpu.memory_space<vmem>>, vector<1x1x32xf32>
    %267 = vector.shape_cast %266 : vector<1x1x32xf32> to vector<1x32xf32>
    %268 = vector.broadcast %267 : vector<1x32xf32> to vector<8x32xf32>
    %269 = arith.addf %265, %268 : vector<8x32xf32>
    %c9_224 = arith.constant 9 : index
    %c0_225 = arith.constant 0 : index
    %c0_226 = arith.constant 0 : index
    %270 = vector.load %arg15[%c9_224, %c0_225, %c0_226] : memref<19x8x32xf32, #tpu.memory_space<vmem>>, vector<1x8x32xf32>
    %271 = vector.shape_cast %270 : vector<1x8x32xf32> to vector<8x32xf32>
    %272 = vector.shape_cast %269 : vector<8x32xf32> to vector<1x8x32xf32>
    tpu.vector_store %arg15[%c9_224, %c0_225, %c0_226], %272 {strides = array<i32>} : memref<19x8x32xf32, #tpu.memory_space<vmem>>, vector<1x8x32xf32>,
    %273 = arith.maximumf %256, %269 : vector<8x32xf32>
    %c10_227 = arith.constant 10 : index
    %c0_228 = arith.constant 0 : index
    %c0_229 = arith.constant 0 : index
    %274 = vector.load %arg11[%c10_227, %c0_228, %c0_229] : memref<19x16x32xbf16, #tpu.memory_space<vmem>>, vector<1x16x32xbf16>
    %275 = vector.shape_cast %274 : vector<1x16x32xbf16> to vector<16x32xbf16>
    %cst_230 = arith.constant dense<0.000000e+00> : vector<8x32xf32>
    %276 = tpu.matmul %104, %275, %cst_230 {dimension_numbers = #tpu.dot_dimension_numbers<[1], [0], [0], [1], [0, 0, 1, 1], [], []>} : vector<8x16xbf16>, vector<16x32xbf16>, vector<8x32xf32> -> vector<8x32xf32>
    %c10_231 = arith.constant 10 : index
    %c0_232 = arith.constant 0 : index
    %c0_233 = arith.constant 0 : index
    %277 = vector.load %arg2[%c10_231, %c0_232, %c0_233] : memref<19x8x32xbf16, #tpu.memory_space<vmem>>, vector<1x8x32xbf16>
    %278 = vector.shape_cast %277 : vector<1x8x32xbf16> to vector<8x32xbf16>
    %c10_234 = arith.constant 10 : index
    %c0_235 = arith.constant 0 : index
    %c0_236 = arith.constant 0 : index
    %279 = vector.load %arg13[%c10_234, %c0_235, %c0_236] : memref<19x32x32xbf16, #tpu.memory_space<vmem>>, vector<1x32x32xbf16>
    %280 = vector.shape_cast %279 : vector<1x32x32xbf16> to vector<32x32xbf16>
    %cst_237 = arith.constant dense<0.000000e+00> : vector<8x32xf32>
    %281 = tpu.matmul %278, %280, %cst_237 {dimension_numbers = #tpu.dot_dimension_numbers<[1], [0], [0], [1], [0, 0, 1, 1], [], []>} : vector<8x32xbf16>, vector<32x32xbf16>, vector<8x32xf32> -> vector<8x32xf32>
    %282 = arith.addf %276, %281 : vector<8x32xf32>
    %c10_238 = arith.constant 10 : index
    %c0_239 = arith.constant 0 : index
    %c0_240 = arith.constant 0 : index
    %283 = vector.load %arg12[%c10_238, %c0_239, %c0_240] : memref<19x1x32xf32, #tpu.memory_space<vmem>>, vector<1x1x32xf32>
    %284 = vector.shape_cast %283 : vector<1x1x32xf32> to vector<1x32xf32>
    %285 = vector.broadcast %284 : vector<1x32xf32> to vector<8x32xf32>
    %286 = arith.addf %282, %285 : vector<8x32xf32>
    %c10_241 = arith.constant 10 : index
    %c0_242 = arith.constant 0 : index
    %c0_243 = arith.constant 0 : index
    %287 = vector.load %arg15[%c10_241, %c0_242, %c0_243] : memref<19x8x32xf32, #tpu.memory_space<vmem>>, vector<1x8x32xf32>
    %288 = vector.shape_cast %287 : vector<1x8x32xf32> to vector<8x32xf32>
    %289 = vector.shape_cast %286 : vector<8x32xf32> to vector<1x8x32xf32>
    tpu.vector_store %arg15[%c10_241, %c0_242, %c0_243], %289 {strides = array<i32>} : memref<19x8x32xf32, #tpu.memory_space<vmem>>, vector<1x8x32xf32>,
    %290 = arith.maximumf %273, %286 : vector<8x32xf32>
    %c11_244 = arith.constant 11 : index
    %c0_245 = arith.constant 0 : index
    %c0_246 = arith.constant 0 : index
    %291 = vector.load %arg11[%c11_244, %c0_245, %c0_246] : memref<19x16x32xbf16, #tpu.memory_space<vmem>>, vector<1x16x32xbf16>
    %292 = vector.shape_cast %291 : vector<1x16x32xbf16> to vector<16x32xbf16>
    %cst_247 = arith.constant dense<0.000000e+00> : vector<8x32xf32>
    %293 = tpu.matmul %104, %292, %cst_247 {dimension_numbers = #tpu.dot_dimension_numbers<[1], [0], [0], [1], [0, 0, 1, 1], [], []>} : vector<8x16xbf16>, vector<16x32xbf16>, vector<8x32xf32> -> vector<8x32xf32>
    %c11_248 = arith.constant 11 : index
    %c0_249 = arith.constant 0 : index
    %c0_250 = arith.constant 0 : index
    %294 = vector.load %arg2[%c11_248, %c0_249, %c0_250] : memref<19x8x32xbf16, #tpu.memory_space<vmem>>, vector<1x8x32xbf16>
    %295 = vector.shape_cast %294 : vector<1x8x32xbf16> to vector<8x32xbf16>
    %c11_251 = arith.constant 11 : index
    %c0_252 = arith.constant 0 : index
    %c0_253 = arith.constant 0 : index
    %296 = vector.load %arg13[%c11_251, %c0_252, %c0_253] : memref<19x32x32xbf16, #tpu.memory_space<vmem>>, vector<1x32x32xbf16>
    %297 = vector.shape_cast %296 : vector<1x32x32xbf16> to vector<32x32xbf16>
    %cst_254 = arith.constant dense<0.000000e+00> : vector<8x32xf32>
    %298 = tpu.matmul %295, %297, %cst_254 {dimension_numbers = #tpu.dot_dimension_numbers<[1], [0], [0], [1], [0, 0, 1, 1], [], []>} : vector<8x32xbf16>, vector<32x32xbf16>, vector<8x32xf32> -> vector<8x32xf32>
    %299 = arith.addf %293, %298 : vector<8x32xf32>
    %c11_255 = arith.constant 11 : index
    %c0_256 = arith.constant 0 : index
    %c0_257 = arith.constant 0 : index
    %300 = vector.load %arg12[%c11_255, %c0_256, %c0_257] : memref<19x1x32xf32, #tpu.memory_space<vmem>>, vector<1x1x32xf32>
    %301 = vector.shape_cast %300 : vector<1x1x32xf32> to vector<1x32xf32>
    %302 = vector.broadcast %301 : vector<1x32xf32> to vector<8x32xf32>
    %303 = arith.addf %299, %302 : vector<8x32xf32>
    %c11_258 = arith.constant 11 : index
    %c0_259 = arith.constant 0 : index
    %c0_260 = arith.constant 0 : index
    %304 = vector.load %arg15[%c11_258, %c0_259, %c0_260] : memref<19x8x32xf32, #tpu.memory_space<vmem>>, vector<1x8x32xf32>
    %305 = vector.shape_cast %304 : vector<1x8x32xf32> to vector<8x32xf32>
    %306 = vector.shape_cast %303 : vector<8x32xf32> to vector<1x8x32xf32>
    tpu.vector_store %arg15[%c11_258, %c0_259, %c0_260], %306 {strides = array<i32>} : memref<19x8x32xf32, #tpu.memory_space<vmem>>, vector<1x8x32xf32>,
    %307 = arith.maximumf %290, %303 : vector<8x32xf32>
    %c12_261 = arith.constant 12 : index
    %c0_262 = arith.constant 0 : index
    %c0_263 = arith.constant 0 : index
    %308 = vector.load %arg11[%c12_261, %c0_262, %c0_263] : memref<19x16x32xbf16, #tpu.memory_space<vmem>>, vector<1x16x32xbf16>
    %309 = vector.shape_cast %308 : vector<1x16x32xbf16> to vector<16x32xbf16>
    %cst_264 = arith.constant dense<0.000000e+00> : vector<8x32xf32>
    %310 = tpu.matmul %104, %309, %cst_264 {dimension_numbers = #tpu.dot_dimension_numbers<[1], [0], [0], [1], [0, 0, 1, 1], [], []>} : vector<8x16xbf16>, vector<16x32xbf16>, vector<8x32xf32> -> vector<8x32xf32>
    %c12_265 = arith.constant 12 : index
    %c0_266 = arith.constant 0 : index
    %c0_267 = arith.constant 0 : index
    %311 = vector.load %arg2[%c12_265, %c0_266, %c0_267] : memref<19x8x32xbf16, #tpu.memory_space<vmem>>, vector<1x8x32xbf16>
    %312 = vector.shape_cast %311 : vector<1x8x32xbf16> to vector<8x32xbf16>
    %c12_268 = arith.constant 12 : index
    %c0_269 = arith.constant 0 : index
    %c0_270 = arith.constant 0 : index
    %313 = vector.load %arg13[%c12_268, %c0_269, %c0_270] : memref<19x32x32xbf16, #tpu.memory_space<vmem>>, vector<1x32x32xbf16>
    %314 = vector.shape_cast %313 : vector<1x32x32xbf16> to vector<32x32xbf16>
    %cst_271 = arith.constant dense<0.000000e+00> : vector<8x32xf32>
    %315 = tpu.matmul %312, %314, %cst_271 {dimension_numbers = #tpu.dot_dimension_numbers<[1], [0], [0], [1], [0, 0, 1, 1], [], []>} : vector<8x32xbf16>, vector<32x32xbf16>, vector<8x32xf32> -> vector<8x32xf32>
    %316 = arith.addf %310, %315 : vector<8x32xf32>
    %c12_272 = arith.constant 12 : index
    %c0_273 = arith.constant 0 : index
    %c0_274 = arith.constant 0 : index
    %317 = vector.load %arg12[%c12_272, %c0_273, %c0_274] : memref<19x1x32xf32, #tpu.memory_space<vmem>>, vector<1x1x32xf32>
    %318 = vector.shape_cast %317 : vector<1x1x32xf32> to vector<1x32xf32>
    %319 = vector.broadcast %318 : vector<1x32xf32> to vector<8x32xf32>
    %320 = arith.addf %316, %319 : vector<8x32xf32>
    %c12_275 = arith.constant 12 : index
    %c0_276 = arith.constant 0 : index
    %c0_277 = arith.constant 0 : index
    %321 = vector.load %arg15[%c12_275, %c0_276, %c0_277] : memref<19x8x32xf32, #tpu.memory_space<vmem>>, vector<1x8x32xf32>
    %322 = vector.shape_cast %321 : vector<1x8x32xf32> to vector<8x32xf32>
    %323 = vector.shape_cast %320 : vector<8x32xf32> to vector<1x8x32xf32>
    tpu.vector_store %arg15[%c12_275, %c0_276, %c0_277], %323 {strides = array<i32>} : memref<19x8x32xf32, #tpu.memory_space<vmem>>, vector<1x8x32xf32>,
    %324 = arith.maximumf %307, %320 : vector<8x32xf32>
    %c13_278 = arith.constant 13 : index
    %c0_279 = arith.constant 0 : index
    %c0_280 = arith.constant 0 : index
    %325 = vector.load %arg11[%c13_278, %c0_279, %c0_280] : memref<19x16x32xbf16, #tpu.memory_space<vmem>>, vector<1x16x32xbf16>
    %326 = vector.shape_cast %325 : vector<1x16x32xbf16> to vector<16x32xbf16>
    %cst_281 = arith.constant dense<0.000000e+00> : vector<8x32xf32>
    %327 = tpu.matmul %104, %326, %cst_281 {dimension_numbers = #tpu.dot_dimension_numbers<[1], [0], [0], [1], [0, 0, 1, 1], [], []>} : vector<8x16xbf16>, vector<16x32xbf16>, vector<8x32xf32> -> vector<8x32xf32>
    %c13_282 = arith.constant 13 : index
    %c0_283 = arith.constant 0 : index
    %c0_284 = arith.constant 0 : index
    %328 = vector.load %arg2[%c13_282, %c0_283, %c0_284] : memref<19x8x32xbf16, #tpu.memory_space<vmem>>, vector<1x8x32xbf16>
    %329 = vector.shape_cast %328 : vector<1x8x32xbf16> to vector<8x32xbf16>
    %c13_285 = arith.constant 13 : index
    %c0_286 = arith.constant 0 : index
    %c0_287 = arith.constant 0 : index
    %330 = vector.load %arg13[%c13_285, %c0_286, %c0_287] : memref<19x32x32xbf16, #tpu.memory_space<vmem>>, vector<1x32x32xbf16>
    %331 = vector.shape_cast %330 : vector<1x32x32xbf16> to vector<32x32xbf16>
    %cst_288 = arith.constant dense<0.000000e+00> : vector<8x32xf32>
    %332 = tpu.matmul %329, %331, %cst_288 {dimension_numbers = #tpu.dot_dimension_numbers<[1], [0], [0], [1], [0, 0, 1, 1], [], []>} : vector<8x32xbf16>, vector<32x32xbf16>, vector<8x32xf32> -> vector<8x32xf32>
    %333 = arith.addf %327, %332 : vector<8x32xf32>
    %c13_289 = arith.constant 13 : index
    %c0_290 = arith.constant 0 : index
    %c0_291 = arith.constant 0 : index
    %334 = vector.load %arg12[%c13_289, %c0_290, %c0_291] : memref<19x1x32xf32, #tpu.memory_space<vmem>>, vector<1x1x32xf32>
    %335 = vector.shape_cast %334 : vector<1x1x32xf32> to vector<1x32xf32>
    %336 = vector.broadcast %335 : vector<1x32xf32> to vector<8x32xf32>
    %337 = arith.addf %333, %336 : vector<8x32xf32>
    %c13_292 = arith.constant 13 : index
    %c0_293 = arith.constant 0 : index
    %c0_294 = arith.constant 0 : index
    %338 = vector.load %arg15[%c13_292, %c0_293, %c0_294] : memref<19x8x32xf32, #tpu.memory_space<vmem>>, vector<1x8x32xf32>
    %339 = vector.shape_cast %338 : vector<1x8x32xf32> to vector<8x32xf32>
    %340 = vector.shape_cast %337 : vector<8x32xf32> to vector<1x8x32xf32>
    tpu.vector_store %arg15[%c13_292, %c0_293, %c0_294], %340 {strides = array<i32>} : memref<19x8x32xf32, #tpu.memory_space<vmem>>, vector<1x8x32xf32>,
    %341 = arith.maximumf %324, %337 : vector<8x32xf32>
    %c14_295 = arith.constant 14 : index
    %c0_296 = arith.constant 0 : index
    %c0_297 = arith.constant 0 : index
    %342 = vector.load %arg11[%c14_295, %c0_296, %c0_297] : memref<19x16x32xbf16, #tpu.memory_space<vmem>>, vector<1x16x32xbf16>
    %343 = vector.shape_cast %342 : vector<1x16x32xbf16> to vector<16x32xbf16>
    %cst_298 = arith.constant dense<0.000000e+00> : vector<8x32xf32>
    %344 = tpu.matmul %104, %343, %cst_298 {dimension_numbers = #tpu.dot_dimension_numbers<[1], [0], [0], [1], [0, 0, 1, 1], [], []>} : vector<8x16xbf16>, vector<16x32xbf16>, vector<8x32xf32> -> vector<8x32xf32>
    %c14_299 = arith.constant 14 : index
    %c0_300 = arith.constant 0 : index
    %c0_301 = arith.constant 0 : index
    %345 = vector.load %arg2[%c14_299, %c0_300, %c0_301] : memref<19x8x32xbf16, #tpu.memory_space<vmem>>, vector<1x8x32xbf16>
    %346 = vector.shape_cast %345 : vector<1x8x32xbf16> to vector<8x32xbf16>
    %c14_302 = arith.constant 14 : index
    %c0_303 = arith.constant 0 : index
    %c0_304 = arith.constant 0 : index
    %347 = vector.load %arg13[%c14_302, %c0_303, %c0_304] : memref<19x32x32xbf16, #tpu.memory_space<vmem>>, vector<1x32x32xbf16>
    %348 = vector.shape_cast %347 : vector<1x32x32xbf16> to vector<32x32xbf16>
    %cst_305 = arith.constant dense<0.000000e+00> : vector<8x32xf32>
    %349 = tpu.matmul %346, %348, %cst_305 {dimension_numbers = #tpu.dot_dimension_numbers<[1], [0], [0], [1], [0, 0, 1, 1], [], []>} : vector<8x32xbf16>, vector<32x32xbf16>, vector<8x32xf32> -> vector<8x32xf32>
    %350 = arith.addf %344, %349 : vector<8x32xf32>
    %c14_306 = arith.constant 14 : index
    %c0_307 = arith.constant 0 : index
    %c0_308 = arith.constant 0 : index
    %351 = vector.load %arg12[%c14_306, %c0_307, %c0_308] : memref<19x1x32xf32, #tpu.memory_space<vmem>>, vector<1x1x32xf32>
    %352 = vector.shape_cast %351 : vector<1x1x32xf32> to vector<1x32xf32>
    %353 = vector.broadcast %352 : vector<1x32xf32> to vector<8x32xf32>
    %354 = arith.addf %350, %353 : vector<8x32xf32>
    %c14_309 = arith.constant 14 : index
    %c0_310 = arith.constant 0 : index
    %c0_311 = arith.constant 0 : index
    %355 = vector.load %arg15[%c14_309, %c0_310, %c0_311] : memref<19x8x32xf32, #tpu.memory_space<vmem>>, vector<1x8x32xf32>
    %356 = vector.shape_cast %355 : vector<1x8x32xf32> to vector<8x32xf32>
    %357 = vector.shape_cast %354 : vector<8x32xf32> to vector<1x8x32xf32>
    tpu.vector_store %arg15[%c14_309, %c0_310, %c0_311], %357 {strides = array<i32>} : memref<19x8x32xf32, #tpu.memory_space<vmem>>, vector<1x8x32xf32>,
    %358 = arith.maximumf %341, %354 : vector<8x32xf32>
    %c15_312 = arith.constant 15 : index
    %c0_313 = arith.constant 0 : index
    %c0_314 = arith.constant 0 : index
    %359 = vector.load %arg11[%c15_312, %c0_313, %c0_314] : memref<19x16x32xbf16, #tpu.memory_space<vmem>>, vector<1x16x32xbf16>
    %360 = vector.shape_cast %359 : vector<1x16x32xbf16> to vector<16x32xbf16>
    %cst_315 = arith.constant dense<0.000000e+00> : vector<8x32xf32>
    %361 = tpu.matmul %104, %360, %cst_315 {dimension_numbers = #tpu.dot_dimension_numbers<[1], [0], [0], [1], [0, 0, 1, 1], [], []>} : vector<8x16xbf16>, vector<16x32xbf16>, vector<8x32xf32> -> vector<8x32xf32>
    %c15_316 = arith.constant 15 : index
    %c0_317 = arith.constant 0 : index
    %c0_318 = arith.constant 0 : index
    %362 = vector.load %arg2[%c15_316, %c0_317, %c0_318] : memref<19x8x32xbf16, #tpu.memory_space<vmem>>, vector<1x8x32xbf16>
    %363 = vector.shape_cast %362 : vector<1x8x32xbf16> to vector<8x32xbf16>
    %c15_319 = arith.constant 15 : index
    %c0_320 = arith.constant 0 : index
    %c0_321 = arith.constant 0 : index
    %364 = vector.load %arg13[%c15_319, %c0_320, %c0_321] : memref<19x32x32xbf16, #tpu.memory_space<vmem>>, vector<1x32x32xbf16>
    %365 = vector.shape_cast %364 : vector<1x32x32xbf16> to vector<32x32xbf16>
    %cst_322 = arith.constant dense<0.000000e+00> : vector<8x32xf32>
    %366 = tpu.matmul %363, %365, %cst_322 {dimension_numbers = #tpu.dot_dimension_numbers<[1], [0], [0], [1], [0, 0, 1, 1], [], []>} : vector<8x32xbf16>, vector<32x32xbf16>, vector<8x32xf32> -> vector<8x32xf32>
    %367 = arith.addf %361, %366 : vector<8x32xf32>
    %c15_323 = arith.constant 15 : index
    %c0_324 = arith.constant 0 : index
    %c0_325 = arith.constant 0 : index
    %368 = vector.load %arg12[%c15_323, %c0_324, %c0_325] : memref<19x1x32xf32, #tpu.memory_space<vmem>>, vector<1x1x32xf32>
    %369 = vector.shape_cast %368 : vector<1x1x32xf32> to vector<1x32xf32>
    %370 = vector.broadcast %369 : vector<1x32xf32> to vector<8x32xf32>
    %371 = arith.addf %367, %370 : vector<8x32xf32>
    %c15_326 = arith.constant 15 : index
    %c0_327 = arith.constant 0 : index
    %c0_328 = arith.constant 0 : index
    %372 = vector.load %arg15[%c15_326, %c0_327, %c0_328] : memref<19x8x32xf32, #tpu.memory_space<vmem>>, vector<1x8x32xf32>
    %373 = vector.shape_cast %372 : vector<1x8x32xf32> to vector<8x32xf32>
    %374 = vector.shape_cast %371 : vector<8x32xf32> to vector<1x8x32xf32>
    tpu.vector_store %arg15[%c15_326, %c0_327, %c0_328], %374 {strides = array<i32>} : memref<19x8x32xf32, #tpu.memory_space<vmem>>, vector<1x8x32xf32>,
    %375 = arith.maximumf %358, %371 : vector<8x32xf32>
    %c16_329 = arith.constant 16 : index
    %c0_330 = arith.constant 0 : index
    %c0_331 = arith.constant 0 : index
    %376 = vector.load %arg11[%c16_329, %c0_330, %c0_331] : memref<19x16x32xbf16, #tpu.memory_space<vmem>>, vector<1x16x32xbf16>
    %377 = vector.shape_cast %376 : vector<1x16x32xbf16> to vector<16x32xbf16>
    %cst_332 = arith.constant dense<0.000000e+00> : vector<8x32xf32>
    %378 = tpu.matmul %104, %377, %cst_332 {dimension_numbers = #tpu.dot_dimension_numbers<[1], [0], [0], [1], [0, 0, 1, 1], [], []>} : vector<8x16xbf16>, vector<16x32xbf16>, vector<8x32xf32> -> vector<8x32xf32>
    %c16_333 = arith.constant 16 : index
    %c0_334 = arith.constant 0 : index
    %c0_335 = arith.constant 0 : index
    %379 = vector.load %arg2[%c16_333, %c0_334, %c0_335] : memref<19x8x32xbf16, #tpu.memory_space<vmem>>, vector<1x8x32xbf16>
    %380 = vector.shape_cast %379 : vector<1x8x32xbf16> to vector<8x32xbf16>
    %c16_336 = arith.constant 16 : index
    %c0_337 = arith.constant 0 : index
    %c0_338 = arith.constant 0 : index
    %381 = vector.load %arg13[%c16_336, %c0_337, %c0_338] : memref<19x32x32xbf16, #tpu.memory_space<vmem>>, vector<1x32x32xbf16>
    %382 = vector.shape_cast %381 : vector<1x32x32xbf16> to vector<32x32xbf16>
    %cst_339 = arith.constant dense<0.000000e+00> : vector<8x32xf32>
    %383 = tpu.matmul %380, %382, %cst_339 {dimension_numbers = #tpu.dot_dimension_numbers<[1], [0], [0], [1], [0, 0, 1, 1], [], []>} : vector<8x32xbf16>, vector<32x32xbf16>, vector<8x32xf32> -> vector<8x32xf32>
    %384 = arith.addf %378, %383 : vector<8x32xf32>
    %c16_340 = arith.constant 16 : index
    %c0_341 = arith.constant 0 : index
    %c0_342 = arith.constant 0 : index
    %385 = vector.load %arg12[%c16_340, %c0_341, %c0_342] : memref<19x1x32xf32, #tpu.memory_space<vmem>>, vector<1x1x32xf32>
    %386 = vector.shape_cast %385 : vector<1x1x32xf32> to vector<1x32xf32>
    %387 = vector.broadcast %386 : vector<1x32xf32> to vector<8x32xf32>
    %388 = arith.addf %384, %387 : vector<8x32xf32>
    %c16_343 = arith.constant 16 : index
    %c0_344 = arith.constant 0 : index
    %c0_345 = arith.constant 0 : index
    %389 = vector.load %arg15[%c16_343, %c0_344, %c0_345] : memref<19x8x32xf32, #tpu.memory_space<vmem>>, vector<1x8x32xf32>
    %390 = vector.shape_cast %389 : vector<1x8x32xf32> to vector<8x32xf32>
    %391 = vector.shape_cast %388 : vector<8x32xf32> to vector<1x8x32xf32>
    tpu.vector_store %arg15[%c16_343, %c0_344, %c0_345], %391 {strides = array<i32>} : memref<19x8x32xf32, #tpu.memory_space<vmem>>, vector<1x8x32xf32>,
    %392 = arith.maximumf %375, %388 : vector<8x32xf32>
    %c17_346 = arith.constant 17 : index
    %c0_347 = arith.constant 0 : index
    %c0_348 = arith.constant 0 : index
    %393 = vector.load %arg11[%c17_346, %c0_347, %c0_348] : memref<19x16x32xbf16, #tpu.memory_space<vmem>>, vector<1x16x32xbf16>
    %394 = vector.shape_cast %393 : vector<1x16x32xbf16> to vector<16x32xbf16>
    %cst_349 = arith.constant dense<0.000000e+00> : vector<8x32xf32>
    %395 = tpu.matmul %104, %394, %cst_349 {dimension_numbers = #tpu.dot_dimension_numbers<[1], [0], [0], [1], [0, 0, 1, 1], [], []>} : vector<8x16xbf16>, vector<16x32xbf16>, vector<8x32xf32> -> vector<8x32xf32>
    %c17_350 = arith.constant 17 : index
    %c0_351 = arith.constant 0 : index
    %c0_352 = arith.constant 0 : index
    %396 = vector.load %arg2[%c17_350, %c0_351, %c0_352] : memref<19x8x32xbf16, #tpu.memory_space<vmem>>, vector<1x8x32xbf16>
    %397 = vector.shape_cast %396 : vector<1x8x32xbf16> to vector<8x32xbf16>
    %c17_353 = arith.constant 17 : index
    %c0_354 = arith.constant 0 : index
    %c0_355 = arith.constant 0 : index
    %398 = vector.load %arg13[%c17_353, %c0_354, %c0_355] : memref<19x32x32xbf16, #tpu.memory_space<vmem>>, vector<1x32x32xbf16>
    %399 = vector.shape_cast %398 : vector<1x32x32xbf16> to vector<32x32xbf16>
    %cst_356 = arith.constant dense<0.000000e+00> : vector<8x32xf32>
    %400 = tpu.matmul %397, %399, %cst_356 {dimension_numbers = #tpu.dot_dimension_numbers<[1], [0], [0], [1], [0, 0, 1, 1], [], []>} : vector<8x32xbf16>, vector<32x32xbf16>, vector<8x32xf32> -> vector<8x32xf32>
    %401 = arith.addf %395, %400 : vector<8x32xf32>
    %c17_357 = arith.constant 17 : index
    %c0_358 = arith.constant 0 : index
    %c0_359 = arith.constant 0 : index
    %402 = vector.load %arg12[%c17_357, %c0_358, %c0_359] : memref<19x1x32xf32, #tpu.memory_space<vmem>>, vector<1x1x32xf32>
    %403 = vector.shape_cast %402 : vector<1x1x32xf32> to vector<1x32xf32>
    %404 = vector.broadcast %403 : vector<1x32xf32> to vector<8x32xf32>
    %405 = arith.addf %401, %404 : vector<8x32xf32>
    %c17_360 = arith.constant 17 : index
    %c0_361 = arith.constant 0 : index
    %c0_362 = arith.constant 0 : index
    %406 = vector.load %arg15[%c17_360, %c0_361, %c0_362] : memref<19x8x32xf32, #tpu.memory_space<vmem>>, vector<1x8x32xf32>
    %407 = vector.shape_cast %406 : vector<1x8x32xf32> to vector<8x32xf32>
    %408 = vector.shape_cast %405 : vector<8x32xf32> to vector<1x8x32xf32>
    tpu.vector_store %arg15[%c17_360, %c0_361, %c0_362], %408 {strides = array<i32>} : memref<19x8x32xf32, #tpu.memory_space<vmem>>, vector<1x8x32xf32>,
    %409 = arith.maximumf %392, %405 : vector<8x32xf32>
    %c18_363 = arith.constant 18 : index
    %c0_364 = arith.constant 0 : index
    %c0_365 = arith.constant 0 : index
    %410 = vector.load %arg11[%c18_363, %c0_364, %c0_365] : memref<19x16x32xbf16, #tpu.memory_space<vmem>>, vector<1x16x32xbf16>
    %411 = vector.shape_cast %410 : vector<1x16x32xbf16> to vector<16x32xbf16>
    %cst_366 = arith.constant dense<0.000000e+00> : vector<8x32xf32>
    %412 = tpu.matmul %104, %411, %cst_366 {dimension_numbers = #tpu.dot_dimension_numbers<[1], [0], [0], [1], [0, 0, 1, 1], [], []>} : vector<8x16xbf16>, vector<16x32xbf16>, vector<8x32xf32> -> vector<8x32xf32>
    %c18_367 = arith.constant 18 : index
    %c0_368 = arith.constant 0 : index
    %c0_369 = arith.constant 0 : index
    %413 = vector.load %arg2[%c18_367, %c0_368, %c0_369] : memref<19x8x32xbf16, #tpu.memory_space<vmem>>, vector<1x8x32xbf16>
    %414 = vector.shape_cast %413 : vector<1x8x32xbf16> to vector<8x32xbf16>
    %c18_370 = arith.constant 18 : index
    %c0_371 = arith.constant 0 : index
    %c0_372 = arith.constant 0 : index
    %415 = vector.load %arg13[%c18_370, %c0_371, %c0_372] : memref<19x32x32xbf16, #tpu.memory_space<vmem>>, vector<1x32x32xbf16>
    %416 = vector.shape_cast %415 : vector<1x32x32xbf16> to vector<32x32xbf16>
    %cst_373 = arith.constant dense<0.000000e+00> : vector<8x32xf32>
    %417 = tpu.matmul %414, %416, %cst_373 {dimension_numbers = #tpu.dot_dimension_numbers<[1], [0], [0], [1], [0, 0, 1, 1], [], []>} : vector<8x32xbf16>, vector<32x32xbf16>, vector<8x32xf32> -> vector<8x32xf32>
    %418 = arith.addf %412, %417 : vector<8x32xf32>
    %c18_374 = arith.constant 18 : index
    %c0_375 = arith.constant 0 : index
    %c0_376 = arith.constant 0 : index
    %419 = vector.load %arg12[%c18_374, %c0_375, %c0_376] : memref<19x1x32xf32, #tpu.memory_space<vmem>>, vector<1x1x32xf32>
    %420 = vector.shape_cast %419 : vector<1x1x32xf32> to vector<1x32xf32>
    %421 = vector.broadcast %420 : vector<1x32xf32> to vector<8x32xf32>
    %422 = arith.addf %418, %421 : vector<8x32xf32>
    %c18_377 = arith.constant 18 : index
    %c0_378 = arith.constant 0 : index
    %c0_379 = arith.constant 0 : index
    %423 = vector.load %arg15[%c18_377, %c0_378, %c0_379] : memref<19x8x32xf32, #tpu.memory_space<vmem>>, vector<1x8x32xf32>
    %424 = vector.shape_cast %423 : vector<1x8x32xf32> to vector<8x32xf32>
    %425 = vector.shape_cast %422 : vector<8x32xf32> to vector<1x8x32xf32>
    tpu.vector_store %arg15[%c18_377, %c0_378, %c0_379], %425 {strides = array<i32>} : memref<19x8x32xf32, #tpu.memory_space<vmem>>, vector<1x8x32xf32>,
    %426 = arith.maximumf %409, %422 : vector<8x32xf32>
    %cst_380 = arith.constant 0.000000e+00 : f32
    %427 = vector.broadcast %cst_380 : f32 to vector<8x32xf32>
    %cst_381 = arith.constant 0.000000e+00 : f32
    %428 = vector.broadcast %cst_381 : f32 to vector<8x32xf32>
    %c0_382 = arith.constant 0 : index
    %c0_383 = arith.constant 0 : index
    %c0_384 = arith.constant 0 : index
    %429 = vector.load %arg15[%c0_382, %c0_383, %c0_384] : memref<19x8x32xf32, #tpu.memory_space<vmem>>, vector<1x8x32xf32>
    %430 = vector.shape_cast %429 : vector<1x8x32xf32> to vector<8x32xf32>
    %431 = arith.subf %430, %426 : vector<8x32xf32>
    %432 = math.exp %431 : vector<8x32xf32>
    %433 = arith.addf %427, %432 : vector<8x32xf32>
    %c0_385 = arith.constant 0 : index
    %c0_386 = arith.constant 0 : index
    %c0_387 = arith.constant 0 : index
    %434 = vector.load %arg1[%c0_385, %c0_386, %c0_387] : memref<19x8x32xbf16, #tpu.memory_space<vmem>>, vector<1x8x32xbf16>
    %435 = vector.shape_cast %434 : vector<1x8x32xbf16> to vector<8x32xbf16>
    %436 = arith.extf %435 : vector<8x32xbf16> to vector<8x32xf32>
    %437 = arith.mulf %432, %436 : vector<8x32xf32>
    %438 = arith.addf %428, %437 : vector<8x32xf32>
    %c1_388 = arith.constant 1 : index
    %c0_389 = arith.constant 0 : index
    %c0_390 = arith.constant 0 : index
    %439 = vector.load %arg15[%c1_388, %c0_389, %c0_390] : memref<19x8x32xf32, #tpu.memory_space<vmem>>, vector<1x8x32xf32>
    %440 = vector.shape_cast %439 : vector<1x8x32xf32> to vector<8x32xf32>
    %441 = arith.subf %440, %426 : vector<8x32xf32>
    %442 = math.exp %441 : vector<8x32xf32>
    %443 = arith.addf %433, %442 : vector<8x32xf32>
    %c1_391 = arith.constant 1 : index
    %c0_392 = arith.constant 0 : index
    %c0_393 = arith.constant 0 : index
    %444 = vector.load %arg1[%c1_391, %c0_392, %c0_393] : memref<19x8x32xbf16, #tpu.memory_space<vmem>>, vector<1x8x32xbf16>
    %445 = vector.shape_cast %444 : vector<1x8x32xbf16> to vector<8x32xbf16>
    %446 = arith.extf %445 : vector<8x32xbf16> to vector<8x32xf32>
    %447 = arith.mulf %442, %446 : vector<8x32xf32>
    %448 = arith.addf %438, %447 : vector<8x32xf32>
    %c2_394 = arith.constant 2 : index
    %c0_395 = arith.constant 0 : index
    %c0_396 = arith.constant 0 : index
    %449 = vector.load %arg15[%c2_394, %c0_395, %c0_396] : memref<19x8x32xf32, #tpu.memory_space<vmem>>, vector<1x8x32xf32>
    %450 = vector.shape_cast %449 : vector<1x8x32xf32> to vector<8x32xf32>
    %451 = arith.subf %450, %426 : vector<8x32xf32>
    %452 = math.exp %451 : vector<8x32xf32>
    %453 = arith.addf %443, %452 : vector<8x32xf32>
    %c2_397 = arith.constant 2 : index
    %c0_398 = arith.constant 0 : index
    %c0_399 = arith.constant 0 : index
    %454 = vector.load %arg1[%c2_397, %c0_398, %c0_399] : memref<19x8x32xbf16, #tpu.memory_space<vmem>>, vector<1x8x32xbf16>
    %455 = vector.shape_cast %454 : vector<1x8x32xbf16> to vector<8x32xbf16>
    %456 = arith.extf %455 : vector<8x32xbf16> to vector<8x32xf32>
    %457 = arith.mulf %452, %456 : vector<8x32xf32>
    %458 = arith.addf %448, %457 : vector<8x32xf32>
    %c3_400 = arith.constant 3 : index
    %c0_401 = arith.constant 0 : index
    %c0_402 = arith.constant 0 : index
    %459 = vector.load %arg15[%c3_400, %c0_401, %c0_402] : memref<19x8x32xf32, #tpu.memory_space<vmem>>, vector<1x8x32xf32>
    %460 = vector.shape_cast %459 : vector<1x8x32xf32> to vector<8x32xf32>
    %461 = arith.subf %460, %426 : vector<8x32xf32>
    %462 = math.exp %461 : vector<8x32xf32>
    %463 = arith.addf %453, %462 : vector<8x32xf32>
    %c3_403 = arith.constant 3 : index
    %c0_404 = arith.constant 0 : index
    %c0_405 = arith.constant 0 : index
    %464 = vector.load %arg1[%c3_403, %c0_404, %c0_405] : memref<19x8x32xbf16, #tpu.memory_space<vmem>>, vector<1x8x32xbf16>
    %465 = vector.shape_cast %464 : vector<1x8x32xbf16> to vector<8x32xbf16>
    %466 = arith.extf %465 : vector<8x32xbf16> to vector<8x32xf32>
    %467 = arith.mulf %462, %466 : vector<8x32xf32>
    %468 = arith.addf %458, %467 : vector<8x32xf32>
    %c4_406 = arith.constant 4 : index
    %c0_407 = arith.constant 0 : index
    %c0_408 = arith.constant 0 : index
    %469 = vector.load %arg15[%c4_406, %c0_407, %c0_408] : memref<19x8x32xf32, #tpu.memory_space<vmem>>, vector<1x8x32xf32>
    %470 = vector.shape_cast %469 : vector<1x8x32xf32> to vector<8x32xf32>
    %471 = arith.subf %470, %426 : vector<8x32xf32>
    %472 = math.exp %471 : vector<8x32xf32>
    %473 = arith.addf %463, %472 : vector<8x32xf32>
    %c4_409 = arith.constant 4 : index
    %c0_410 = arith.constant 0 : index
    %c0_411 = arith.constant 0 : index
    %474 = vector.load %arg1[%c4_409, %c0_410, %c0_411] : memref<19x8x32xbf16, #tpu.memory_space<vmem>>, vector<1x8x32xbf16>
    %475 = vector.shape_cast %474 : vector<1x8x32xbf16> to vector<8x32xbf16>
    %476 = arith.extf %475 : vector<8x32xbf16> to vector<8x32xf32>
    %477 = arith.mulf %472, %476 : vector<8x32xf32>
    %478 = arith.addf %468, %477 : vector<8x32xf32>
    %c5_412 = arith.constant 5 : index
    %c0_413 = arith.constant 0 : index
    %c0_414 = arith.constant 0 : index
    %479 = vector.load %arg15[%c5_412, %c0_413, %c0_414] : memref<19x8x32xf32, #tpu.memory_space<vmem>>, vector<1x8x32xf32>
    %480 = vector.shape_cast %479 : vector<1x8x32xf32> to vector<8x32xf32>
    %481 = arith.subf %480, %426 : vector<8x32xf32>
    %482 = math.exp %481 : vector<8x32xf32>
    %483 = arith.addf %473, %482 : vector<8x32xf32>
    %c5_415 = arith.constant 5 : index
    %c0_416 = arith.constant 0 : index
    %c0_417 = arith.constant 0 : index
    %484 = vector.load %arg1[%c5_415, %c0_416, %c0_417] : memref<19x8x32xbf16, #tpu.memory_space<vmem>>, vector<1x8x32xbf16>
    %485 = vector.shape_cast %484 : vector<1x8x32xbf16> to vector<8x32xbf16>
    %486 = arith.extf %485 : vector<8x32xbf16> to vector<8x32xf32>
    %487 = arith.mulf %482, %486 : vector<8x32xf32>
    %488 = arith.addf %478, %487 : vector<8x32xf32>
    %c6_418 = arith.constant 6 : index
    %c0_419 = arith.constant 0 : index
    %c0_420 = arith.constant 0 : index
    %489 = vector.load %arg15[%c6_418, %c0_419, %c0_420] : memref<19x8x32xf32, #tpu.memory_space<vmem>>, vector<1x8x32xf32>
    %490 = vector.shape_cast %489 : vector<1x8x32xf32> to vector<8x32xf32>
    %491 = arith.subf %490, %426 : vector<8x32xf32>
    %492 = math.exp %491 : vector<8x32xf32>
    %493 = arith.addf %483, %492 : vector<8x32xf32>
    %c6_421 = arith.constant 6 : index
    %c0_422 = arith.constant 0 : index
    %c0_423 = arith.constant 0 : index
    %494 = vector.load %arg1[%c6_421, %c0_422, %c0_423] : memref<19x8x32xbf16, #tpu.memory_space<vmem>>, vector<1x8x32xbf16>
    %495 = vector.shape_cast %494 : vector<1x8x32xbf16> to vector<8x32xbf16>
    %496 = arith.extf %495 : vector<8x32xbf16> to vector<8x32xf32>
    %497 = arith.mulf %492, %496 : vector<8x32xf32>
    %498 = arith.addf %488, %497 : vector<8x32xf32>
    %c7_424 = arith.constant 7 : index
    %c0_425 = arith.constant 0 : index
    %c0_426 = arith.constant 0 : index
    %499 = vector.load %arg15[%c7_424, %c0_425, %c0_426] : memref<19x8x32xf32, #tpu.memory_space<vmem>>, vector<1x8x32xf32>
    %500 = vector.shape_cast %499 : vector<1x8x32xf32> to vector<8x32xf32>
    %501 = arith.subf %500, %426 : vector<8x32xf32>
    %502 = math.exp %501 : vector<8x32xf32>
    %503 = arith.addf %493, %502 : vector<8x32xf32>
    %c7_427 = arith.constant 7 : index
    %c0_428 = arith.constant 0 : index
    %c0_429 = arith.constant 0 : index
    %504 = vector.load %arg1[%c7_427, %c0_428, %c0_429] : memref<19x8x32xbf16, #tpu.memory_space<vmem>>, vector<1x8x32xbf16>
    %505 = vector.shape_cast %504 : vector<1x8x32xbf16> to vector<8x32xbf16>
    %506 = arith.extf %505 : vector<8x32xbf16> to vector<8x32xf32>
    %507 = arith.mulf %502, %506 : vector<8x32xf32>
    %508 = arith.addf %498, %507 : vector<8x32xf32>
    %c8_430 = arith.constant 8 : index
    %c0_431 = arith.constant 0 : index
    %c0_432 = arith.constant 0 : index
    %509 = vector.load %arg15[%c8_430, %c0_431, %c0_432] : memref<19x8x32xf32, #tpu.memory_space<vmem>>, vector<1x8x32xf32>
    %510 = vector.shape_cast %509 : vector<1x8x32xf32> to vector<8x32xf32>
    %511 = arith.subf %510, %426 : vector<8x32xf32>
    %512 = math.exp %511 : vector<8x32xf32>
    %513 = arith.addf %503, %512 : vector<8x32xf32>
    %c8_433 = arith.constant 8 : index
    %c0_434 = arith.constant 0 : index
    %c0_435 = arith.constant 0 : index
    %514 = vector.load %arg1[%c8_433, %c0_434, %c0_435] : memref<19x8x32xbf16, #tpu.memory_space<vmem>>, vector<1x8x32xbf16>
    %515 = vector.shape_cast %514 : vector<1x8x32xbf16> to vector<8x32xbf16>
    %516 = arith.extf %515 : vector<8x32xbf16> to vector<8x32xf32>
    %517 = arith.mulf %512, %516 : vector<8x32xf32>
    %518 = arith.addf %508, %517 : vector<8x32xf32>
    %c9_436 = arith.constant 9 : index
    %c0_437 = arith.constant 0 : index
    %c0_438 = arith.constant 0 : index
    %519 = vector.load %arg15[%c9_436, %c0_437, %c0_438] : memref<19x8x32xf32, #tpu.memory_space<vmem>>, vector<1x8x32xf32>
    %520 = vector.shape_cast %519 : vector<1x8x32xf32> to vector<8x32xf32>
    %521 = arith.subf %520, %426 : vector<8x32xf32>
    %522 = math.exp %521 : vector<8x32xf32>
    %523 = arith.addf %513, %522 : vector<8x32xf32>
    %c9_439 = arith.constant 9 : index
    %c0_440 = arith.constant 0 : index
    %c0_441 = arith.constant 0 : index
    %524 = vector.load %arg1[%c9_439, %c0_440, %c0_441] : memref<19x8x32xbf16, #tpu.memory_space<vmem>>, vector<1x8x32xbf16>
    %525 = vector.shape_cast %524 : vector<1x8x32xbf16> to vector<8x32xbf16>
    %526 = arith.extf %525 : vector<8x32xbf16> to vector<8x32xf32>
    %527 = arith.mulf %522, %526 : vector<8x32xf32>
    %528 = arith.addf %518, %527 : vector<8x32xf32>
    %c10_442 = arith.constant 10 : index
    %c0_443 = arith.constant 0 : index
    %c0_444 = arith.constant 0 : index
    %529 = vector.load %arg15[%c10_442, %c0_443, %c0_444] : memref<19x8x32xf32, #tpu.memory_space<vmem>>, vector<1x8x32xf32>
    %530 = vector.shape_cast %529 : vector<1x8x32xf32> to vector<8x32xf32>
    %531 = arith.subf %530, %426 : vector<8x32xf32>
    %532 = math.exp %531 : vector<8x32xf32>
    %533 = arith.addf %523, %532 : vector<8x32xf32>
    %c10_445 = arith.constant 10 : index
    %c0_446 = arith.constant 0 : index
    %c0_447 = arith.constant 0 : index
    %534 = vector.load %arg1[%c10_445, %c0_446, %c0_447] : memref<19x8x32xbf16, #tpu.memory_space<vmem>>, vector<1x8x32xbf16>
    %535 = vector.shape_cast %534 : vector<1x8x32xbf16> to vector<8x32xbf16>
    %536 = arith.extf %535 : vector<8x32xbf16> to vector<8x32xf32>
    %537 = arith.mulf %532, %536 : vector<8x32xf32>
    %538 = arith.addf %528, %537 : vector<8x32xf32>
    %c11_448 = arith.constant 11 : index
    %c0_449 = arith.constant 0 : index
    %c0_450 = arith.constant 0 : index
    %539 = vector.load %arg15[%c11_448, %c0_449, %c0_450] : memref<19x8x32xf32, #tpu.memory_space<vmem>>, vector<1x8x32xf32>
    %540 = vector.shape_cast %539 : vector<1x8x32xf32> to vector<8x32xf32>
    %541 = arith.subf %540, %426 : vector<8x32xf32>
    %542 = math.exp %541 : vector<8x32xf32>
    %543 = arith.addf %533, %542 : vector<8x32xf32>
    %c11_451 = arith.constant 11 : index
    %c0_452 = arith.constant 0 : index
    %c0_453 = arith.constant 0 : index
    %544 = vector.load %arg1[%c11_451, %c0_452, %c0_453] : memref<19x8x32xbf16, #tpu.memory_space<vmem>>, vector<1x8x32xbf16>
    %545 = vector.shape_cast %544 : vector<1x8x32xbf16> to vector<8x32xbf16>
    %546 = arith.extf %545 : vector<8x32xbf16> to vector<8x32xf32>
    %547 = arith.mulf %542, %546 : vector<8x32xf32>
    %548 = arith.addf %538, %547 : vector<8x32xf32>
    %c12_454 = arith.constant 12 : index
    %c0_455 = arith.constant 0 : index
    %c0_456 = arith.constant 0 : index
    %549 = vector.load %arg15[%c12_454, %c0_455, %c0_456] : memref<19x8x32xf32, #tpu.memory_space<vmem>>, vector<1x8x32xf32>
    %550 = vector.shape_cast %549 : vector<1x8x32xf32> to vector<8x32xf32>
    %551 = arith.subf %550, %426 : vector<8x32xf32>
    %552 = math.exp %551 : vector<8x32xf32>
    %553 = arith.addf %543, %552 : vector<8x32xf32>
    %c12_457 = arith.constant 12 : index
    %c0_458 = arith.constant 0 : index
    %c0_459 = arith.constant 0 : index
    %554 = vector.load %arg1[%c12_457, %c0_458, %c0_459] : memref<19x8x32xbf16, #tpu.memory_space<vmem>>, vector<1x8x32xbf16>
    %555 = vector.shape_cast %554 : vector<1x8x32xbf16> to vector<8x32xbf16>
    %556 = arith.extf %555 : vector<8x32xbf16> to vector<8x32xf32>
    %557 = arith.mulf %552, %556 : vector<8x32xf32>
    %558 = arith.addf %548, %557 : vector<8x32xf32>
    %c13_460 = arith.constant 13 : index
    %c0_461 = arith.constant 0 : index
    %c0_462 = arith.constant 0 : index
    %559 = vector.load %arg15[%c13_460, %c0_461, %c0_462] : memref<19x8x32xf32, #tpu.memory_space<vmem>>, vector<1x8x32xf32>
    %560 = vector.shape_cast %559 : vector<1x8x32xf32> to vector<8x32xf32>
    %561 = arith.subf %560, %426 : vector<8x32xf32>
    %562 = math.exp %561 : vector<8x32xf32>
    %563 = arith.addf %553, %562 : vector<8x32xf32>
    %c13_463 = arith.constant 13 : index
    %c0_464 = arith.constant 0 : index
    %c0_465 = arith.constant 0 : index
    %564 = vector.load %arg1[%c13_463, %c0_464, %c0_465] : memref<19x8x32xbf16, #tpu.memory_space<vmem>>, vector<1x8x32xbf16>
    %565 = vector.shape_cast %564 : vector<1x8x32xbf16> to vector<8x32xbf16>
    %566 = arith.extf %565 : vector<8x32xbf16> to vector<8x32xf32>
    %567 = arith.mulf %562, %566 : vector<8x32xf32>
    %568 = arith.addf %558, %567 : vector<8x32xf32>
    %c14_466 = arith.constant 14 : index
    %c0_467 = arith.constant 0 : index
    %c0_468 = arith.constant 0 : index
    %569 = vector.load %arg15[%c14_466, %c0_467, %c0_468] : memref<19x8x32xf32, #tpu.memory_space<vmem>>, vector<1x8x32xf32>
    %570 = vector.shape_cast %569 : vector<1x8x32xf32> to vector<8x32xf32>
    %571 = arith.subf %570, %426 : vector<8x32xf32>
    %572 = math.exp %571 : vector<8x32xf32>
    %573 = arith.addf %563, %572 : vector<8x32xf32>
    %c14_469 = arith.constant 14 : index
    %c0_470 = arith.constant 0 : index
    %c0_471 = arith.constant 0 : index
    %574 = vector.load %arg1[%c14_469, %c0_470, %c0_471] : memref<19x8x32xbf16, #tpu.memory_space<vmem>>, vector<1x8x32xbf16>
    %575 = vector.shape_cast %574 : vector<1x8x32xbf16> to vector<8x32xbf16>
    %576 = arith.extf %575 : vector<8x32xbf16> to vector<8x32xf32>
    %577 = arith.mulf %572, %576 : vector<8x32xf32>
    %578 = arith.addf %568, %577 : vector<8x32xf32>
    %c15_472 = arith.constant 15 : index
    %c0_473 = arith.constant 0 : index
    %c0_474 = arith.constant 0 : index
    %579 = vector.load %arg15[%c15_472, %c0_473, %c0_474] : memref<19x8x32xf32, #tpu.memory_space<vmem>>, vector<1x8x32xf32>
    %580 = vector.shape_cast %579 : vector<1x8x32xf32> to vector<8x32xf32>
    %581 = arith.subf %580, %426 : vector<8x32xf32>
    %582 = math.exp %581 : vector<8x32xf32>
    %583 = arith.addf %573, %582 : vector<8x32xf32>
    %c15_475 = arith.constant 15 : index
    %c0_476 = arith.constant 0 : index
    %c0_477 = arith.constant 0 : index
    %584 = vector.load %arg1[%c15_475, %c0_476, %c0_477] : memref<19x8x32xbf16, #tpu.memory_space<vmem>>, vector<1x8x32xbf16>
    %585 = vector.shape_cast %584 : vector<1x8x32xbf16> to vector<8x32xbf16>
    %586 = arith.extf %585 : vector<8x32xbf16> to vector<8x32xf32>
    %587 = arith.mulf %582, %586 : vector<8x32xf32>
    %588 = arith.addf %578, %587 : vector<8x32xf32>
    %c16_478 = arith.constant 16 : index
    %c0_479 = arith.constant 0 : index
    %c0_480 = arith.constant 0 : index
    %589 = vector.load %arg15[%c16_478, %c0_479, %c0_480] : memref<19x8x32xf32, #tpu.memory_space<vmem>>, vector<1x8x32xf32>
    %590 = vector.shape_cast %589 : vector<1x8x32xf32> to vector<8x32xf32>
    %591 = arith.subf %590, %426 : vector<8x32xf32>
    %592 = math.exp %591 : vector<8x32xf32>
    %593 = arith.addf %583, %592 : vector<8x32xf32>
    %c16_481 = arith.constant 16 : index
    %c0_482 = arith.constant 0 : index
    %c0_483 = arith.constant 0 : index
    %594 = vector.load %arg1[%c16_481, %c0_482, %c0_483] : memref<19x8x32xbf16, #tpu.memory_space<vmem>>, vector<1x8x32xbf16>
    %595 = vector.shape_cast %594 : vector<1x8x32xbf16> to vector<8x32xbf16>
    %596 = arith.extf %595 : vector<8x32xbf16> to vector<8x32xf32>
    %597 = arith.mulf %592, %596 : vector<8x32xf32>
    %598 = arith.addf %588, %597 : vector<8x32xf32>
    %c17_484 = arith.constant 17 : index
    %c0_485 = arith.constant 0 : index
    %c0_486 = arith.constant 0 : index
    %599 = vector.load %arg15[%c17_484, %c0_485, %c0_486] : memref<19x8x32xf32, #tpu.memory_space<vmem>>, vector<1x8x32xf32>
    %600 = vector.shape_cast %599 : vector<1x8x32xf32> to vector<8x32xf32>
    %601 = arith.subf %600, %426 : vector<8x32xf32>
    %602 = math.exp %601 : vector<8x32xf32>
    %603 = arith.addf %593, %602 : vector<8x32xf32>
    %c17_487 = arith.constant 17 : index
    %c0_488 = arith.constant 0 : index
    %c0_489 = arith.constant 0 : index
    %604 = vector.load %arg1[%c17_487, %c0_488, %c0_489] : memref<19x8x32xbf16, #tpu.memory_space<vmem>>, vector<1x8x32xbf16>
    %605 = vector.shape_cast %604 : vector<1x8x32xbf16> to vector<8x32xbf16>
    %606 = arith.extf %605 : vector<8x32xbf16> to vector<8x32xf32>
    %607 = arith.mulf %602, %606 : vector<8x32xf32>
    %608 = arith.addf %598, %607 : vector<8x32xf32>
    %c18_490 = arith.constant 18 : index
    %c0_491 = arith.constant 0 : index
    %c0_492 = arith.constant 0 : index
    %609 = vector.load %arg15[%c18_490, %c0_491, %c0_492] : memref<19x8x32xf32, #tpu.memory_space<vmem>>, vector<1x8x32xf32>
    %610 = vector.shape_cast %609 : vector<1x8x32xf32> to vector<8x32xf32>
    %611 = arith.subf %610, %426 : vector<8x32xf32>
    %612 = math.exp %611 : vector<8x32xf32>
    %613 = arith.addf %603, %612 : vector<8x32xf32>
    %c18_493 = arith.constant 18 : index
    %c0_494 = arith.constant 0 : index
    %c0_495 = arith.constant 0 : index
    %614 = vector.load %arg1[%c18_493, %c0_494, %c0_495] : memref<19x8x32xbf16, #tpu.memory_space<vmem>>, vector<1x8x32xbf16>
    %615 = vector.shape_cast %614 : vector<1x8x32xbf16> to vector<8x32xbf16>
    %616 = arith.extf %615 : vector<8x32xbf16> to vector<8x32xf32>
    %617 = arith.mulf %612, %616 : vector<8x32xf32>
    %618 = arith.addf %608, %617 : vector<8x32xf32>
    %619 = tpu.reciprocal %613 {approx = true} : vector<8x32xf32> -> vector<8x32xf32>
    %620 = arith.mulf %618, %619 : vector<8x32xf32>
    %c0_496 = arith.constant 0 : index
    %c0_497 = arith.constant 0 : index
    %621 = vector.load %arg14[%c0_496, %c0_497] : memref<8x32xf32, #tpu.memory_space<vmem>>, vector<8x32xf32>
    tpu.vector_store %arg14[%c0_496, %c0_497], %620 {strides = array<i32>} : memref<8x32xf32, #tpu.memory_space<vmem>>, vector<8x32xf32>,
    return
  }
  func.func @transform_0(%arg0: i32) -> (i32, i32, i32) {
    %c0_i32 = arith.constant 0 : i32
    %c0_i32_0 = arith.constant 0 : i32
    %c0_i32_1 = arith.constant 0 : i32
    return %c0_i32, %arg0, %c0_i32_0 : i32, i32, i32
  }
  func.func @transform_1(%arg0: i32) -> (i32, i32, i32) {
    %c0_i32 = arith.constant 0 : i32
    %c0_i32_0 = arith.constant 0 : i32
    %c0_i32_1 = arith.constant 0 : i32
    return %c0_i32, %arg0, %c0_i32_0 : i32, i32, i32
  }
  func.func @transform_2(%arg0: i32) -> (i32, i32) {
    %c0_i32 = arith.constant 0 : i32
    %c0_i32_0 = arith.constant 0 : i32
    %c0_i32_1 = arith.constant 0 : i32
    return %c0_i32, %c0_i32_0 : i32, i32
  }
  func.func @transform_3(%arg0: i32) -> (i32, i32) {
    %c0_i32 = arith.constant 0 : i32
    %c0_i32_0 = arith.constant 0 : i32
    %c0_i32_1 = arith.constant 0 : i32
    return %c0_i32, %c0_i32_0 : i32, i32
  }
  func.func @transform_4(%arg0: i32) -> (i32, i32) {
    %c0_i32 = arith.constant 0 : i32
    %c0_i32_0 = arith.constant 0 : i32
    %c0_i32_1 = arith.constant 0 : i32
    return %c0_i32, %c0_i32_0 : i32, i32
  }
  func.func @transform_5(%arg0: i32) -> (i32, i32) {
    %c0_i32 = arith.constant 0 : i32
    %c0_i32_0 = arith.constant 0 : i32
    %c0_i32_1 = arith.constant 0 : i32
    return %c0_i32, %c0_i32_0 : i32, i32
  }
  func.func @transform_6(%arg0: i32) -> (i32, i32) {
    %c0_i32 = arith.constant 0 : i32
    %c0_i32_0 = arith.constant 0 : i32
    %c0_i32_1 = arith.constant 0 : i32
    return %c0_i32, %c0_i32_0 : i32, i32
  }
  func.func @transform_7(%arg0: i32) -> (i32, i32) {
    %c0_i32 = arith.constant 0 : i32
    %c0_i32_0 = arith.constant 0 : i32
    %c0_i32_1 = arith.constant 0 : i32
    return %c0_i32, %c0_i32_0 : i32, i32
  }
  func.func @transform_8(%arg0: i32) -> (i32, i32) {
    %c0_i32 = arith.constant 0 : i32
    %c0_i32_0 = arith.constant 0 : i32
    %c0_i32_1 = arith.constant 0 : i32
    return %c0_i32, %c0_i32_0 : i32, i32
  }
  func.func @transform_9(%arg0: i32) -> (i32, i32) {
    %c0_i32 = arith.constant 0 : i32
    %c0_i32_0 = arith.constant 0 : i32
    %c0_i32_1 = arith.constant 0 : i32
    return %c0_i32, %c0_i32_0 : i32, i32
  }
  func.func @transform_10(%arg0: i32) -> (i32, i32, i32) {
    %c0_i32 = arith.constant 0 : i32
    %c0_i32_0 = arith.constant 0 : i32
    %c0_i32_1 = arith.constant 0 : i32
    %c0_i32_2 = arith.constant 0 : i32
    return %c0_i32, %c0_i32_0, %c0_i32_1 : i32, i32, i32
  }
  func.func @transform_11(%arg0: i32) -> (i32, i32, i32) {
    %c0_i32 = arith.constant 0 : i32
    %c0_i32_0 = arith.constant 0 : i32
    %c0_i32_1 = arith.constant 0 : i32
    %c0_i32_2 = arith.constant 0 : i32
    return %c0_i32, %c0_i32_0, %c0_i32_1 : i32, i32, i32
  }
  func.func @transform_12(%arg0: i32) -> (i32, i32, i32) {
    %c0_i32 = arith.constant 0 : i32
    %c0_i32_0 = arith.constant 0 : i32
    %c0_i32_1 = arith.constant 0 : i32
    %c0_i32_2 = arith.constant 0 : i32
    return %c0_i32, %c0_i32_0, %c0_i32_1 : i32, i32, i32
  }
  func.func @transform_13(%arg0: i32) -> (i32, i32) {
    %c0_i32 = arith.constant 0 : i32
    %c0_i32_0 = arith.constant 0 : i32
    return %arg0, %c0_i32 : i32, i32
  }
}

</mosaic_0001>

<llo_original>
// kernel: selective_ts_with_g_forward.1
$region0: #{selective_ts_with_g_forward.1}
  #allocation0 [shape = 'u32[]', space=smem, size = 0x4, offset = 0x4, fixed_abs, tag = 'smem constant byte address 0x4 - core index']
  #allocation1 [shape = 'u32[144,128]{1,0:T(1,128)}', space=vmem, size = 0x12000, scoped, tag = 'internal scratch']
  #allocation2 [shape = 'f32[19,8,32]{2,1,0:T(8,128)}', space=vmem, size = 0x13000, scoped, tag = 'scratch operand']
  %s0 = inlined_call_operand.vmem [shape: bf16[19,8,32], index: 0, kind: input, shape index: {}]
  %s1 = inlined_call_operand.vmem [shape: bf16[19,8,32], index: 1, kind: input, shape index: {}]
  %s2 = inlined_call_operand.vmem [shape: f32[1,16], index: 2, kind: input, shape index: {}]
  %s3 = inlined_call_operand.vmem [shape: f32[1,16], index: 3, kind: input, shape index: {}]
  %s4 = inlined_call_operand.vmem [shape: bf16[32,16], index: 4, kind: input, shape index: {}]
  %s5 = inlined_call_operand.vmem [shape: f32[1,16], index: 5, kind: input, shape index: {}]
  %s6 = inlined_call_operand.vmem [shape: f32[1,16], index: 6, kind: input, shape index: {}]
  %s7 = inlined_call_operand.vmem [shape: f32[1,16], index: 7, kind: input, shape index: {}]
  %s8 = inlined_call_operand.vmem [shape: bf16[16,16], index: 8, kind: input, shape index: {}]
  %s9 = inlined_call_operand.vmem [shape: f32[1,16], index: 9, kind: input, shape index: {}]
  %s10 = inlined_call_operand.vmem [shape: bf16[19,16,32], index: 10, kind: input, shape index: {}]
  %s11 = inlined_call_operand.vmem [shape: f32[19,1,32], index: 11, kind: input, shape index: {}]
  %s12 = inlined_call_operand.vmem [shape: bf16[19,32,32], index: 12, kind: input, shape index: {}]
  %s13 = inlined_call_operand.vmem [shape: f32[8,32], index: 13, kind: output, shape index: {}]
  %s14 = sld [smem:[#allocation0]]
  $region62: #{selective_ts_with_g_forward.1} parent=0
    _
  %s16 = ssub.s32 1, %s14
  %s17 = scalar_select 0, %s16, %s14
  // Predicated region
  $region2: #{selective_ts_with_g_forward.1} parent=0 // pred_check
    _
  $region3: #{selective_ts_with_g_forward.1} parent=0 // pred_check_branch
    %19 = sbr.rel (0) target = $region5
  $region4: #{selective_ts_with_g_forward.1} parent=0 // pred_region
    _
  $region5: #{selective_ts_with_g_forward.1} parent=0 // pred_fallthru
    _
  // Predicated region
  $region6: #{selective_ts_with_g_forward.1} parent=0 // pred_check
    _
  $region7: #{selective_ts_with_g_forward.1} parent=0 // pred_check_branch
    %21 = sbr.rel (0) target = $region9
  $region8: #{selective_ts_with_g_forward.1} parent=0 // pred_region
    _
  $region9: #{selective_ts_with_g_forward.1} parent=0 // pred_fallthru
    _
  // Predicated region
  $region10: #{selective_ts_with_g_forward.1} parent=0 // pred_check
    _
  $region11: #{selective_ts_with_g_forward.1} parent=0 // pred_check_branch
    %23 = sbr.rel (0) target = $region13
  $region12: #{selective_ts_with_g_forward.1} parent=0 // pred_region
    _
  $region13: #{selective_ts_with_g_forward.1} parent=0 // pred_fallthru
    _
  // Predicated region
  $region14: #{selective_ts_with_g_forward.1} parent=0 // pred_check
    _
  $region15: #{selective_ts_with_g_forward.1} parent=0 // pred_check_branch
    %25 = sbr.rel (0) target = $region17
  $region16: #{selective_ts_with_g_forward.1} parent=0 // pred_region
    _
  $region17: #{selective_ts_with_g_forward.1} parent=0 // pred_fallthru
    _
  // Predicated region
  $region18: #{selective_ts_with_g_forward.1} parent=0 // pred_check
    _
  $region19: #{selective_ts_with_g_forward.1} parent=0 // pred_check_branch
    %27 = sbr.rel (0) target = $region21
  $region20: #{selective_ts_with_g_forward.1} parent=0 // pred_region
    _
  $region21: #{selective_ts_with_g_forward.1} parent=0 // pred_fallthru
    _
  // Predicated region
  $region22: #{selective_ts_with_g_forward.1} parent=0 // pred_check
    _
  $region23: #{selective_ts_with_g_forward.1} parent=0 // pred_check_branch
    %29 = sbr.rel (0) target = $region25
  $region24: #{selective_ts_with_g_forward.1} parent=0 // pred_region
    _
  $region25: #{selective_ts_with_g_forward.1} parent=0 // pred_fallthru
    _
  // Predicated region
  $region26: #{selective_ts_with_g_forward.1} parent=0 // pred_check
    _
  $region27: #{selective_ts_with_g_forward.1} parent=0 // pred_check_branch
    %31 = sbr.rel (0) target = $region29
  $region28: #{selective_ts_with_g_forward.1} parent=0 // pred_region
    _
  $region29: #{selective_ts_with_g_forward.1} parent=0 // pred_fallthru
    _
  // Predicated region
  $region30: #{selective_ts_with_g_forward.1} parent=0 // pred_check
    _
  $region31: #{selective_ts_with_g_forward.1} parent=0 // pred_check_branch
    %33 = sbr.rel (0) target = $region33
  $region32: #{selective_ts_with_g_forward.1} parent=0 // pred_region
    _
  $region33: #{selective_ts_with_g_forward.1} parent=0 // pred_fallthru
    _
  // Predicated region
  $region34: #{selective_ts_with_g_forward.1} parent=0 // pred_check
    _
  $region35: #{selective_ts_with_g_forward.1} parent=0 // pred_check_branch
    %35 = sbr.rel (0) target = $region37
  $region36: #{selective_ts_with_g_forward.1} parent=0 // pred_region
    _
  $region37: #{selective_ts_with_g_forward.1} parent=0 // pred_fallthru
    _
  // Predicated region
  $region38: #{selective_ts_with_g_forward.1} parent=0 // pred_check
    _
  $region39: #{selective_ts_with_g_forward.1} parent=0 // pred_check_branch
    %37 = sbr.rel (0) target = $region41
  $region40: #{selective_ts_with_g_forward.1} parent=0 // pred_region
    _
  $region41: #{selective_ts_with_g_forward.1} parent=0 // pred_fallthru
    _
  // Predicated region
  $region42: #{selective_ts_with_g_forward.1} parent=0 // pred_check
    _
  $region43: #{selective_ts_with_g_forward.1} parent=0 // pred_check_branch
    %39 = sbr.rel (0) target = $region45
  $region44: #{selective_ts_with_g_forward.1} parent=0 // pred_region
    _
  $region45: #{selective_ts_with_g_forward.1} parent=0 // pred_fallthru
    _
  // Predicated region
  $region46: #{selective_ts_with_g_forward.1} parent=0 // pred_check
    _
  $region47: #{selective_ts_with_g_forward.1} parent=0 // pred_check_branch
    %41 = sbr.rel (0) target = $region49
  $region48: #{selective_ts_with_g_forward.1} parent=0 // pred_region
    _
  $region49: #{selective_ts_with_g_forward.1} parent=0 // pred_fallthru
    _
  // Predicated region
  $region50: #{selective_ts_with_g_forward.1} parent=0 // pred_check
    _
  $region51: #{selective_ts_with_g_forward.1} parent=0 // pred_check_branch
    %43 = sbr.rel (0) target = $region53
  $region52: #{selective_ts_with_g_forward.1} parent=0 // pred_region
    _
  $region53: #{selective_ts_with_g_forward.1} parent=0 // pred_fallthru
    _
  %v45 = vld [vmem:[%s0] sm:$0xf]
  %v46 = vunpack.c.l.bf16 %v45
  %s47 = scalar_lea.vmem %s0, 4
  %v48 = vld [vmem:[%s47] sm:$0xf]
  %v49 = vunpack.c.l.bf16 %v48
  %v50 = vadd.f32 %v46, %v49
  %s51 = scalar_lea.vmem %s0, 8
  %v52 = vld [vmem:[%s51] sm:$0xf]
  %v53 = vunpack.c.l.bf16 %v52
  %v54 = vadd.f32 %v50, %v53
  %s55 = scalar_lea.vmem %s0, 12
  %v56 = vld [vmem:[%s55] sm:$0xf]
  %v57 = vunpack.c.l.bf16 %v56
  %v58 = vadd.f32 %v54, %v57
  %s59 = scalar_lea.vmem %s0, 16
  %v60 = vld [vmem:[%s59] sm:$0xf]
  %v61 = vunpack.c.l.bf16 %v60
  %v62 = vadd.f32 %v58, %v61
  %s63 = scalar_lea.vmem %s0, 20
  %v64 = vld [vmem:[%s63] sm:$0xf]
  %v65 = vunpack.c.l.bf16 %v64
  %v66 = vadd.f32 %v62, %v65
  %s67 = scalar_lea.vmem %s0, 24
  %v68 = vld [vmem:[%s67] sm:$0xf]
  %v69 = vunpack.c.l.bf16 %v68
  %v70 = vadd.f32 %v66, %v69
  %s71 = scalar_lea.vmem %s0, 28
  %v72 = vld [vmem:[%s71] sm:$0xf]
  %v73 = vunpack.c.l.bf16 %v72
  %v74 = vadd.f32 %v70, %v73
  %s75 = scalar_lea.vmem %s0, 32
  %v76 = vld [vmem:[%s75] sm:$0xf]
  %v77 = vunpack.c.l.bf16 %v76
  %v78 = vadd.f32 %v74, %v77
  %s79 = scalar_lea.vmem %s0, 36
  %v80 = vld [vmem:[%s79] sm:$0xf]
  %v81 = vunpack.c.l.bf16 %v80
  %v82 = vadd.f32 %v78, %v81
  %s83 = scalar_lea.vmem %s0, 40
  %v84 = vld [vmem:[%s83] sm:$0xf]
  %v85 = vunpack.c.l.bf16 %v84
  %v86 = vadd.f32 %v82, %v85
  %s87 = scalar_lea.vmem %s0, 44
  %v88 = vld [vmem:[%s87] sm:$0xf]
  %v89 = vunpack.c.l.bf16 %v88
  %v90 = vadd.f32 %v86, %v89
  %s91 = scalar_lea.vmem %s0, 48
  %v92 = vld [vmem:[%s91] sm:$0xf]
  %v93 = vunpack.c.l.bf16 %v92
  %v94 = vadd.f32 %v90, %v93
  %s95 = scalar_lea.vmem %s0, 52
  %v96 = vld [vmem:[%s95] sm:$0xf]
  %v97 = vunpack.c.l.bf16 %v96
  %v98 = vadd.f32 %v94, %v97
  %s99 = scalar_lea.vmem %s0, 56
  %v100 = vld [vmem:[%s99] sm:$0xf]
  %v101 = vunpack.c.l.bf16 %v100
  %v102 = vadd.f32 %v98, %v101
  %s103 = scalar_lea.vmem %s0, 60
  %v104 = vld [vmem:[%s103] sm:$0xf]
  %v105 = vunpack.c.l.bf16 %v104
  %v106 = vadd.f32 %v102, %v105
  %s107 = scalar_lea.vmem %s0, 64
  %v108 = vld [vmem:[%s107] sm:$0xf]
  %v109 = vunpack.c.l.bf16 %v108
  %v110 = vadd.f32 %v106, %v109
  %s111 = scalar_lea.vmem %s0, 68
  %v112 = vld [vmem:[%s111] sm:$0xf]
  %v113 = vunpack.c.l.bf16 %v112
  %v114 = vadd.f32 %v110, %v113
  %s115 = scalar_lea.vmem %s0, 72
  %v116 = vld [vmem:[%s115] sm:$0xf]
  %v117 = vunpack.c.l.bf16 %v116
  %v118 = vadd.f32 %v114, %v117
  %v119 = vpack.c.bf16 %v118, %v118
  %v120 = vld [vmem:[%s4] sm:$0xf]
  %v121 = vld [vmem:[%s4 + $0x4] sm:$0xf]
  %v122 = vld [vmem:[%s4 + $0x8] sm:$0xf]
  %v123 = vld [vmem:[%s4 + $0xc] sm:$0xf]
  %v124 = vld [vmem:[%s5] sm:$0x1]
  %v126 = vlaneseq
  %v127 = vshrl.u32 %v126, 7
  %v128 = vsub.s32 0, %v127
  %v129 = vrot.slane %v124, %v128
  %v135 = vunpack.c.l.b16 %v120
  %v136 = vunpack.c.l.b16 %v121
  %v137 = vunpack.c.l.b16 %v122
  %v138 = vunpack.c.l.b16 %v123
  %v139 = vpack.c.b16 %v136, %v135
  %v140 = vpack.c.b16 %v138, %v137
  %vm143 = vcmask 261120
  %v145 = vsel %vm143, %v119, 0
  %147 = vmatprep.subr.bf16.mxu0 0
  %148 = vmatpush1.bf16.msra.mxu0 0
  %149 = vmatprep.subr.bf16.mxu0 0
  %150 = vmatpush1.bf16.msra.mxu0 0
  %151 = vmatprep.subr.bf16.mxu0 0
  %152 = vmatpush1.bf16.msra.mxu0 0
  %153 = vmatprep.subr.bf16.mxu0 0
  %154 = vmatpush1.bf16.msra.mxu0 0
  %155 = vmatprep.subr.bf16.mxu0 0
  %156 = vmatpush1.bf16.msra.mxu0 0
  %157 = vmatprep.subr.bf16.mxu0 0
  %158 = vmatpush1.bf16.msra.mxu0 0
  %159 = vmatprep.subr.bf16.mxu0 0
  %160 = vmatpush1.bf16.msra.mxu0 %v140
  %161 = vmatprep.subr.bf16.mxu0 0
  %162 = vmatpush1.bf16.msra.mxu0 %v139
  %163 = vmatprep.subr.bf16.mxu0 0
  %164 = vmatpush2.bf16.msra.mxu0 0
  %165 = vmatprep.subr.bf16.mxu0 0
  %166 = vmatpush2.bf16.msra.mxu0 0
  %167 = vmatprep.subr.bf16.mxu0 0
  %168 = vmatpush2.bf16.msra.mxu0 0
  %169 = vmatprep.subr.bf16.mxu0 0
  %170 = vmatpush2.bf16.msra.mxu0 0
  %171 = vmatprep.subr.bf16.mxu0 0
  %172 = vmatpush2.bf16.msra.mxu0 0
  %173 = vmatprep.subr.bf16.mxu0 0
  %174 = vmatpush2.bf16.msra.mxu0 0
  %175 = vmatprep.subr.bf16.mxu0 0
  %176 = vmatpush2.bf16.msra.mxu0 0
  %177 = vmatprep.subr.bf16.mxu0 0
  %178 = vmatpush2.bf16.msra.mxu0 0
  %179 = vmatprep.mubr.bf16.mxu0 0
  %180 = vmatmul.mubr.bf16.gmra.mxu0 %v145
  %v181 = vpop.f32.mrf.mxu0
  %v182 = vadd.f32 %v129, %v181
  %v183 = vpop.f32.mrf.mxu0
  %v184 = vpop.f32.mrf.mxu0
  %v185 = vpop.f32.mrf.mxu0
  %186 = vdwg.mxu0
  %v187 = vmax.f32 %v182, 0.0
  %v188 = vld [vmem:[%s2] sm:$0x1]
  %v190 = vlaneseq
  %v191 = vshrl.u32 %v190, 7
  %v192 = vsub.s32 0, %v191
  %v193 = vrot.slane %v188, %v192
  %v195 = vsub.f32 %v187, %v193
  %v196 = vld [vmem:[%s3] sm:$0x1]
  %v197 = vadd.f32 %v196, 1e-05
  %v198 = vrsqrt.pop %v197
  %v200 = vlaneseq
  %v201 = vshrl.u32 %v200, 7
  %v202 = vsub.s32 0, %v201
  %v203 = vrot.slane %v198, %v202
  %v205 = vmul.f32 %v195, %v203
  %v206 = vld [vmem:[%s6] sm:$0x1]
  %v208 = vlaneseq
  %v209 = vshrl.u32 %v208, 7
  %v210 = vsub.s32 0, %v209
  %v211 = vrot.slane %v206, %v210
  %v213 = vmul.f32 %v205, %v211
  %v214 = vld [vmem:[%s7] sm:$0x1]
  %v216 = vlaneseq
  %v217 = vshrl.u32 %v216, 7
  %v218 = vsub.s32 0, %v217
  %v219 = vrot.slane %v214, %v218
  %v221 = vadd.f32 %v213, %v219
  %v222 = vpack.c.bf16 %v221, %v221
  %v223 = vld [vmem:[%s8] sm:$0xf]
  %v224 = vld [vmem:[%s8 + $0x4] sm:$0xf]
  %v225 = vld [vmem:[%s9] sm:$0x1]
  %v227 = vlaneseq
  %v228 = vshrl.u32 %v227, 7
  %v229 = vsub.s32 0, %v228
  %v230 = vrot.slane %v225, %v229
  %v234 = vunpack.c.l.b16 %v223
  %v235 = vunpack.c.l.b16 %v224
  %v236 = vpack.c.b16 %v235, %v234
  %vm238 = vcmask 130048
  %v240 = vsel %vm238, %v222, 0
  %242 = vmatprep.subr.bf16.mxu0 0
  %243 = vmatpush1.bf16.msra.mxu0 0
  %244 = vmatprep.subr.bf16.mxu0 0
  %245 = vmatpush1.bf16.msra.mxu0 0
  %246 = vmatprep.subr.bf16.mxu0 0
  %247 = vmatpush1.bf16.msra.mxu0 0
  %248 = vmatprep.subr.bf16.mxu0 0
  %249 = vmatpush1.bf16.msra.mxu0 0
  %250 = vmatprep.subr.bf16.mxu0 0
  %251 = vmatpush1.bf16.msra.mxu0 0
  %252 = vmatprep.subr.bf16.mxu0 0
  %253 = vmatpush1.bf16.msra.mxu0 0
  %254 = vmatprep.subr.bf16.mxu0 0
  %255 = vmatpush1.bf16.msra.mxu0 0
  %256 = vmatprep.subr.bf16.mxu0 0
  %257 = vmatpush1.bf16.msra.mxu0 %v236
  %258 = vmatprep.subr.bf16.mxu0 0
  %259 = vmatpush2.bf16.msra.mxu0 0
  %260 = vmatprep.subr.bf16.mxu0 0
  %261 = vmatpush2.bf16.msra.mxu0 0
  %262 = vmatprep.subr.bf16.mxu0 0
  %263 = vmatpush2.bf16.msra.mxu0 0
  %264 = vmatprep.subr.bf16.mxu0 0
  %265 = vmatpush2.bf16.msra.mxu0 0
  %266 = vmatprep.subr.bf16.mxu0 0
  %267 = vmatpush2.bf16.msra.mxu0 0
  %268 = vmatprep.subr.bf16.mxu0 0
  %269 = vmatpush2.bf16.msra.mxu0 0
  %270 = vmatprep.subr.bf16.mxu0 0
  %271 = vmatpush2.bf16.msra.mxu0 0
  %272 = vmatprep.subr.bf16.mxu0 0
  %273 = vmatpush2.bf16.msra.mxu0 0
  %274 = vmatprep.mubr.bf16.mxu0 0
  %275 = vmatmul.mubr.bf16.gmra.mxu0 %v240
  %v276 = vpop.f32.mrf.mxu0
  %v277 = vadd.f32 %v230, %v276
  %v278 = vpop.f32.mrf.mxu0
  %v279 = vpop.f32.mrf.mxu0
  %v280 = vpop.f32.mrf.mxu0
  %281 = vdwg.mxu0
  %v282 = vpack.c.bf16 %v277, %v277
  %v283 = vld [vmem:[%s10] sm:$0xf]
  %v284 = vld [vmem:[%s10 + $0x4] sm:$0xf]
  %v285 = vld [vmem:[%s1] sm:$0xf]
  %v286 = vld [vmem:[%s12] sm:$0xf]
  %v287 = vld [vmem:[%s12 + $0x4] sm:$0xf]
  %v288 = vld [vmem:[%s12 + $0x8] sm:$0xf]
  %v289 = vld [vmem:[%s12 + $0xc] sm:$0xf]
  %v294 = vunpack.c.l.b16 %v286
  %v295 = vunpack.c.l.b16 %v287
  %v296 = vunpack.c.l.b16 %v288
  %v297 = vunpack.c.l.b16 %v289
  %v298 = vpack.c.b16 %v295, %v294
  %v299 = vpack.c.b16 %v297, %v296
  %v303 = vsel %vm143, %v285, 0
  %305 = vmatprep.subr.bf16.mxu0 0
  %306 = vmatpush1.bf16.msra.mxu0 0
  %307 = vmatprep.subr.bf16.mxu0 0
  %308 = vmatpush1.bf16.msra.mxu0 0
  %309 = vmatprep.subr.bf16.mxu0 0
  %310 = vmatpush1.bf16.msra.mxu0 0
  %311 = vmatprep.subr.bf16.mxu0 0
  %312 = vmatpush1.bf16.msra.mxu0 0
  %313 = vmatprep.subr.bf16.mxu0 0
  %314 = vmatpush1.bf16.msra.mxu0 0
  %315 = vmatprep.subr.bf16.mxu0 0
  %316 = vmatpush1.bf16.msra.mxu0 0
  %317 = vmatprep.subr.bf16.mxu0 0
  %318 = vmatpush1.bf16.msra.mxu0 %v299
  %319 = vmatprep.subr.bf16.mxu0 0
  %320 = vmatpush1.bf16.msra.mxu0 %v298
  %321 = vmatprep.subr.bf16.mxu0 0
  %322 = vmatpush2.bf16.msra.mxu0 0
  %323 = vmatprep.subr.bf16.mxu0 0
  %324 = vmatpush2.bf16.msra.mxu0 0
  %325 = vmatprep.subr.bf16.mxu0 0
  %326 = vmatpush2.bf16.msra.mxu0 0
  %327 = vmatprep.subr.bf16.mxu0 0
  %328 = vmatpush2.bf16.msra.mxu0 0
  %329 = vmatprep.subr.bf16.mxu0 0
  %330 = vmatpush2.bf16.msra.mxu0 0
  %331 = vmatprep.subr.bf16.mxu0 0
  %332 = vmatpush2.bf16.msra.mxu0 0
  %333 = vmatprep.subr.bf16.mxu0 0
  %334 = vmatpush2.bf16.msra.mxu0 0
  %335 = vmatprep.subr.bf16.mxu0 0
  %336 = vmatpush2.bf16.msra.mxu0 0
  %337 = vmatprep.mubr.bf16.mxu0 0
  %338 = vmatmul.mubr.bf16.gmra.mxu0 %v303
  %v339 = vpop.f32.mrf.mxu0
  %v340 = vadd.f32 0.0, %v339
  %v341 = vpop.f32.mrf.mxu0
  %v342 = vpop.f32.mrf.mxu0
  %v343 = vpop.f32.mrf.mxu0
  %344 = vdwg.mxu0
  %v347 = vunpack.c.l.b16 %v283
  %v348 = vunpack.c.l.b16 %v284
  %v349 = vpack.c.b16 %v348, %v347
  %v352 = vsel %vm238, %v282, 0
  %354 = vmatprep.subr.bf16.mxu0 0
  %355 = vmatpush1.bf16.msra.mxu0 0
  %356 = vmatprep.subr.bf16.mxu0 0
  %357 = vmatpush1.bf16.msra.mxu0 0
  %358 = vmatprep.subr.bf16.mxu0 0
  %359 = vmatpush1.bf16.msra.mxu0 0
  %360 = vmatprep.subr.bf16.mxu0 0
  %361 = vmatpush1.bf16.msra.mxu0 0
  %362 = vmatprep.subr.bf16.mxu0 0
  %363 = vmatpush1.bf16.msra.mxu0 0
  %364 = vmatprep.subr.bf16.mxu0 0
  %365 = vmatpush1.bf16.msra.mxu0 0
  %366 = vmatprep.subr.bf16.mxu0 0
  %367 = vmatpush1.bf16.msra.mxu0 0
  %368 = vmatprep.subr.bf16.mxu0 0
  %369 = vmatpush1.bf16.msra.mxu0 %v349
  %370 = vmatprep.subr.bf16.mxu0 0
  %371 = vmatpush2.bf16.msra.mxu0 0
  %372 = vmatprep.subr.bf16.mxu0 0
  %373 = vmatpush2.bf16.msra.mxu0 0
  %374 = vmatprep.subr.bf16.mxu0 0
  %375 = vmatpush2.bf16.msra.mxu0 0
  %376 = vmatprep.subr.bf16.mxu0 0
  %377 = vmatpush2.bf16.msra.mxu0 0
  %378 = vmatprep.subr.bf16.mxu0 0
  %379 = vmatpush2.bf16.msra.mxu0 0
  %380 = vmatprep.subr.bf16.mxu0 0
  %381 = vmatpush2.bf16.msra.mxu0 0
  %382 = vmatprep.subr.bf16.mxu0 0
  %383 = vmatpush2.bf16.msra.mxu0 0
  %384 = vmatprep.subr.bf16.mxu0 0
  %385 = vmatpush2.bf16.msra.mxu0 0
  %386 = vmatprep.mubr.bf16.mxu0 0
  %387 = vmatmul.mubr.bf16.gmra.mxu0 %v352
  %v388 = vpop.f32.mrf.mxu0
  %v389 = vadd.f32 %v340, %v388
  %v390 = vpop.f32.mrf.mxu0
  %v391 = vpop.f32.mrf.mxu0
  %v392 = vpop.f32.mrf.mxu0
  %393 = vdwg.mxu0
  %v394 = vld [vmem:[%s11] sm:$0x1]
  %v396 = vlaneseq
  %v397 = vshrl.u32 %v396, 7
  %v398 = vsub.s32 0, %v397
  %v399 = vrot.slane %v394, %v398
  %v401 = vadd.f32 %v389, %v399
  %402 = vst.msk [vmem:[#allocation2] sm:$0xff] %vm143, %v401
  %s403 = scalar_lea.vmem %s10, 8
  %v404 = vld [vmem:[%s403] sm:$0xf]
  %v405 = vld [vmem:[%s403 + $0x4] sm:$0xf]
  %s406 = scalar_lea.vmem %s1, 4
  %v407 = vld [vmem:[%s406] sm:$0xf]
  %s408 = scalar_lea.vmem %s12, 16
  %v409 = vld [vmem:[%s408] sm:$0xf]
  %v410 = vld [vmem:[%s408 + $0x4] sm:$0xf]
  %v411 = vld [vmem:[%s408 + $0x8] sm:$0xf]
  %v412 = vld [vmem:[%s408 + $0xc] sm:$0xf]
  %v417 = vunpack.c.l.b16 %v409
  %v418 = vunpack.c.l.b16 %v410
  %v419 = vunpack.c.l.b16 %v411
  %v420 = vunpack.c.l.b16 %v412
  %v421 = vpack.c.b16 %v418, %v417
  %v422 = vpack.c.b16 %v420, %v419
  %v426 = vsel %vm143, %v407, 0
  %428 = vmatprep.subr.bf16.mxu0 0
  %429 = vmatpush1.bf16.msra.mxu0 0
  %430 = vmatprep.subr.bf16.mxu0 0
  %431 = vmatpush1.bf16.msra.mxu0 0
  %432 = vmatprep.subr.bf16.mxu0 0
  %433 = vmatpush1.bf16.msra.mxu0 0
  %434 = vmatprep.subr.bf16.mxu0 0
  %435 = vmatpush1.bf16.msra.mxu0 0
  %436 = vmatprep.subr.bf16.mxu0 0
  %437 = vmatpush1.bf16.msra.mxu0 0
  %438 = vmatprep.subr.bf16.mxu0 0
  %439 = vmatpush1.bf16.msra.mxu0 0
  %440 = vmatprep.subr.bf16.mxu0 0
  %441 = vmatpush1.bf16.msra.mxu0 %v422
  %442 = vmatprep.subr.bf16.mxu0 0
  %443 = vmatpush1.bf16.msra.mxu0 %v421
  %444 = vmatprep.subr.bf16.mxu0 0
  %445 = vmatpush2.bf16.msra.mxu0 0
  %446 = vmatprep.subr.bf16.mxu0 0
  %447 = vmatpush2.bf16.msra.mxu0 0
  %448 = vmatprep.subr.bf16.mxu0 0
  %449 = vmatpush2.bf16.msra.mxu0 0
  %450 = vmatprep.subr.bf16.mxu0 0
  %451 = vmatpush2.bf16.msra.mxu0 0
  %452 = vmatprep.subr.bf16.mxu0 0
  %453 = vmatpush2.bf16.msra.mxu0 0
  %454 = vmatprep.subr.bf16.mxu0 0
  %455 = vmatpush2.bf16.msra.mxu0 0
  %456 = vmatprep.subr.bf16.mxu0 0
  %457 = vmatpush2.bf16.msra.mxu0 0
  %458 = vmatprep.subr.bf16.mxu0 0
  %459 = vmatpush2.bf16.msra.mxu0 0
  %460 = vmatprep.mubr.bf16.mxu0 0
  %461 = vmatmul.mubr.bf16.gmra.mxu0 %v426
  %v462 = vpop.f32.mrf.mxu0
  %v463 = vadd.f32 0.0, %v462
  %v464 = vpop.f32.mrf.mxu0
  %v465 = vpop.f32.mrf.mxu0
  %v466 = vpop.f32.mrf.mxu0
  %467 = vdwg.mxu0
  %v470 = vunpack.c.l.b16 %v404
  %v471 = vunpack.c.l.b16 %v405
  %v472 = vpack.c.b16 %v471, %v470
  %474 = vmatprep.subr.bf16.mxu0 0
  %475 = vmatpush1.bf16.msra.mxu0 0
  %476 = vmatprep.subr.bf16.mxu0 0
  %477 = vmatpush1.bf16.msra.mxu0 0
  %478 = vmatprep.subr.bf16.mxu0 0
  %479 = vmatpush1.bf16.msra.mxu0 0
  %480 = vmatprep.subr.bf16.mxu0 0
  %481 = vmatpush1.bf16.msra.mxu0 0
  %482 = vmatprep.subr.bf16.mxu0 0
  %483 = vmatpush1.bf16.msra.mxu0 0
  %484 = vmatprep.subr.bf16.mxu0 0
  %485 = vmatpush1.bf16.msra.mxu0 0
  %486 = vmatprep.subr.bf16.mxu0 0
  %487 = vmatpush1.bf16.msra.mxu0 0
  %488 = vmatprep.subr.bf16.mxu0 0
  %489 = vmatpush1.bf16.msra.mxu0 %v472
  %490 = vmatprep.subr.bf16.mxu0 0
  %491 = vmatpush2.bf16.msra.mxu0 0
  %492 = vmatprep.subr.bf16.mxu0 0
  %493 = vmatpush2.bf16.msra.mxu0 0
  %494 = vmatprep.subr.bf16.mxu0 0
  %495 = vmatpush2.bf16.msra.mxu0 0
  %496 = vmatprep.subr.bf16.mxu0 0
  %497 = vmatpush2.bf16.msra.mxu0 0
  %498 = vmatprep.subr.bf16.mxu0 0
  %499 = vmatpush2.bf16.msra.mxu0 0
  %500 = vmatprep.subr.bf16.mxu0 0
  %501 = vmatpush2.bf16.msra.mxu0 0
  %502 = vmatprep.subr.bf16.mxu0 0
  %503 = vmatpush2.bf16.msra.mxu0 0
  %504 = vmatprep.subr.bf16.mxu0 0
  %505 = vmatpush2.bf16.msra.mxu0 0
  %506 = vmatprep.mubr.bf16.mxu0 0
  %507 = vmatmul.mubr.bf16.gmra.mxu0 %v352
  %v508 = vpop.f32.mrf.mxu0
  %v509 = vadd.f32 %v463, %v508
  %v510 = vpop.f32.mrf.mxu0
  %v511 = vpop.f32.mrf.mxu0
  %v512 = vpop.f32.mrf.mxu0
  %513 = vdwg.mxu0
  %s514 = scalar_lea.vmem %s11, 1
  %v515 = vld [vmem:[%s514] sm:$0x1]
  %v517 = vlaneseq
  %v518 = vshrl.u32 %v517, 7
  %v519 = vsub.s32 0, %v518
  %v520 = vrot.slane %v515, %v519
  %v522 = vadd.f32 %v509, %v520
  %s523 = scalar_lea.vmem [#allocation2], 8
  %524 = vst.msk [vmem:[%s523] sm:$0xff] %vm143, %v522
  %v525 = vmax.f32 %v401, %v522
  %s526 = scalar_lea.vmem %s10, 16
  %v527 = vld [vmem:[%s526] sm:$0xf]
  %v528 = vld [vmem:[%s526 + $0x4] sm:$0xf]
  %s529 = scalar_lea.vmem %s1, 8
  %v530 = vld [vmem:[%s529] sm:$0xf]
  %s531 = scalar_lea.vmem %s12, 32
  %v532 = vld [vmem:[%s531] sm:$0xf]
  %v533 = vld [vmem:[%s531 + $0x4] sm:$0xf]
  %v534 = vld [vmem:[%s531 + $0x8] sm:$0xf]
  %v535 = vld [vmem:[%s531 + $0xc] sm:$0xf]
  %v540 = vunpack.c.l.b16 %v532
  %v541 = vunpack.c.l.b16 %v533
  %v542 = vunpack.c.l.b16 %v534
  %v543 = vunpack.c.l.b16 %v535
  %v544 = vpack.c.b16 %v541, %v540
  %v545 = vpack.c.b16 %v543, %v542
  %v549 = vsel %vm143, %v530, 0
  %551 = vmatprep.subr.bf16.mxu0 0
  %552 = vmatpush1.bf16.msra.mxu0 0
  %553 = vmatprep.subr.bf16.mxu0 0
  %554 = vmatpush1.bf16.msra.mxu0 0
  %555 = vmatprep.subr.bf16.mxu0 0
  %556 = vmatpush1.bf16.msra.mxu0 0
  %557 = vmatprep.subr.bf16.mxu0 0
  %558 = vmatpush1.bf16.msra.mxu0 0
  %559 = vmatprep.subr.bf16.mxu0 0
  %560 = vmatpush1.bf16.msra.mxu0 0
  %561 = vmatprep.subr.bf16.mxu0 0
  %562 = vmatpush1.bf16.msra.mxu0 0
  %563 = vmatprep.subr.bf16.mxu0 0
  %564 = vmatpush1.bf16.msra.mxu0 %v545
  %565 = vmatprep.subr.bf16.mxu0 0
  %566 = vmatpush1.bf16.msra.mxu0 %v544
  %567 = vmatprep.subr.bf16.mxu0 0
  %568 = vmatpush2.bf16.msra.mxu0 0
  %569 = vmatprep.subr.bf16.mxu0 0
  %570 = vmatpush2.bf16.msra.mxu0 0
  %571 = vmatprep.subr.bf16.mxu0 0
  %572 = vmatpush2.bf16.msra.mxu0 0
  %573 = vmatprep.subr.bf16.mxu0 0
  %574 = vmatpush2.bf16.msra.mxu0 0
  %575 = vmatprep.subr.bf16.mxu0 0
  %576 = vmatpush2.bf16.msra.mxu0 0
  %577 = vmatprep.subr.bf16.mxu0 0
  %578 = vmatpush2.bf16.msra.mxu0 0
  %579 = vmatprep.subr.bf16.mxu0 0
  %580 = vmatpush2.bf16.msra.mxu0 0
  %581 = vmatprep.subr.bf16.mxu0 0
  %582 = vmatpush2.bf16.msra.mxu0 0
  %583 = vmatprep.mubr.bf16.mxu0 0
  %584 = vmatmul.mubr.bf16.gmra.mxu0 %v549
  %v585 = vpop.f32.mrf.mxu0
  %v586 = vadd.f32 0.0, %v585
  %v587 = vpop.f32.mrf.mxu0
  %v588 = vpop.f32.mrf.mxu0
  %v589 = vpop.f32.mrf.mxu0
  %590 = vdwg.mxu0
  %v593 = vunpack.c.l.b16 %v527
  %v594 = vunpack.c.l.b16 %v528
  %v595 = vpack.c.b16 %v594, %v593
  %597 = vmatprep.subr.bf16.mxu0 0
  %598 = vmatpush1.bf16.msra.mxu0 0
  %599 = vmatprep.subr.bf16.mxu0 0
  %600 = vmatpush1.bf16.msra.mxu0 0
  %601 = vmatprep.subr.bf16.mxu0 0
  %602 = vmatpush1.bf16.msra.mxu0 0
  %603 = vmatprep.subr.bf16.mxu0 0
  %604 = vmatpush1.bf16.msra.mxu0 0
  %605 = vmatprep.subr.bf16.mxu0 0
  %606 = vmatpush1.bf16.msra.mxu0 0
  %607 = vmatprep.subr.bf16.mxu0 0
  %608 = vmatpush1.bf16.msra.mxu0 0
  %609 = vmatprep.subr.bf16.mxu0 0
  %610 = vmatpush1.bf16.msra.mxu0 0
  %611 = vmatprep.subr.bf16.mxu0 0
  %612 = vmatpush1.bf16.msra.mxu0 %v595
  %613 = vmatprep.subr.bf16.mxu0 0
  %614 = vmatpush2.bf16.msra.mxu0 0
  %615 = vmatprep.subr.bf16.mxu0 0
  %616 = vmatpush2.bf16.msra.mxu0 0
  %617 = vmatprep.subr.bf16.mxu0 0
  %618 = vmatpush2.bf16.msra.mxu0 0
  %619 = vmatprep.subr.bf16.mxu0 0
  %620 = vmatpush2.bf16.msra.mxu0 0
  %621 = vmatprep.subr.bf16.mxu0 0
  %622 = vmatpush2.bf16.msra.mxu0 0
  %623 = vmatprep.subr.bf16.mxu0 0
  %624 = vmatpush2.bf16.msra.mxu0 0
  %625 = vmatprep.subr.bf16.mxu0 0
  %626 = vmatpush2.bf16.msra.mxu0 0
  %627 = vmatprep.subr.bf16.mxu0 0
  %628 = vmatpush2.bf16.msra.mxu0 0
  %629 = vmatprep.mubr.bf16.mxu0 0
  %630 = vmatmul.mubr.bf16.gmra.mxu0 %v352
  %v631 = vpop.f32.mrf.mxu0
  %v632 = vadd.f32 %v586, %v631
  %v633 = vpop.f32.mrf.mxu0
  %v634 = vpop.f32.mrf.mxu0
  %v635 = vpop.f32.mrf.mxu0
  %636 = vdwg.mxu0
  %s637 = scalar_lea.vmem %s11, 2
  %v638 = vld [vmem:[%s637] sm:$0x1]
  %v640 = vlaneseq
  %v641 = vshrl.u32 %v640, 7
  %v642 = vsub.s32 0, %v641
  %v643 = vrot.slane %v638, %v642
  %v645 = vadd.f32 %v632, %v643
  %s646 = scalar_lea.vmem [#allocation2], 16
  %647 = vst.msk [vmem:[%s646] sm:$0xff] %vm143, %v645
  %v648 = vmax.f32 %v525, %v645
  %s649 = scalar_lea.vmem %s10, 24
  %v650 = vld [vmem:[%s649] sm:$0xf]
  %v651 = vld [vmem:[%s649 + $0x4] sm:$0xf]
  %s652 = scalar_lea.vmem %s1, 12
  %v653 = vld [vmem:[%s652] sm:$0xf]
  %s654 = scalar_lea.vmem %s12, 48
  %v655 = vld [vmem:[%s654] sm:$0xf]
  %v656 = vld [vmem:[%s654 + $0x4] sm:$0xf]
  %v657 = vld [vmem:[%s654 + $0x8] sm:$0xf]
  %v658 = vld [vmem:[%s654 + $0xc] sm:$0xf]
  %v663 = vunpack.c.l.b16 %v655
  %v664 = vunpack.c.l.b16 %v656
  %v665 = vunpack.c.l.b16 %v657
  %v666 = vunpack.c.l.b16 %v658
  %v667 = vpack.c.b16 %v664, %v663
  %v668 = vpack.c.b16 %v666, %v665
  %v672 = vsel %vm143, %v653, 0
  %674 = vmatprep.subr.bf16.mxu0 0
  %675 = vmatpush1.bf16.msra.mxu0 0
  %676 = vmatprep.subr.bf16.mxu0 0
  %677 = vmatpush1.bf16.msra.mxu0 0
  %678 = vmatprep.subr.bf16.mxu0 0
  %679 = vmatpush1.bf16.msra.mxu0 0
  %680 = vmatprep.subr.bf16.mxu0 0
  %681 = vmatpush1.bf16.msra.mxu0 0
  %682 = vmatprep.subr.bf16.mxu0 0
  %683 = vmatpush1.bf16.msra.mxu0 0
  %684 = vmatprep.subr.bf16.mxu0 0
  %685 = vmatpush1.bf16.msra.mxu0 0
  %686 = vmatprep.subr.bf16.mxu0 0
  %687 = vmatpush1.bf16.msra.mxu0 %v668
  %688 = vmatprep.subr.bf16.mxu0 0
  %689 = vmatpush1.bf16.msra.mxu0 %v667
  %690 = vmatprep.subr.bf16.mxu0 0
  %691 = vmatpush2.bf16.msra.mxu0 0
  %692 = vmatprep.subr.bf16.mxu0 0
  %693 = vmatpush2.bf16.msra.mxu0 0
  %694 = vmatprep.subr.bf16.mxu0 0
  %695 = vmatpush2.bf16.msra.mxu0 0
  %696 = vmatprep.subr.bf16.mxu0 0
  %697 = vmatpush2.bf16.msra.mxu0 0
  %698 = vmatprep.subr.bf16.mxu0 0
  %699 = vmatpush2.bf16.msra.mxu0 0
  %700 = vmatprep.subr.bf16.mxu0 0
  %701 = vmatpush2.bf16.msra.mxu0 0
  %702 = vmatprep.subr.bf16.mxu0 0
  %703 = vmatpush2.bf16.msra.mxu0 0
  %704 = vmatprep.subr.bf16.mxu0 0
  %705 = vmatpush2.bf16.msra.mxu0 0
  %706 = vmatprep.mubr.bf16.mxu0 0
  %707 = vmatmul.mubr.bf16.gmra.mxu0 %v672
  %v708 = vpop.f32.mrf.mxu0
  %v709 = vadd.f32 0.0, %v708
  %v710 = vpop.f32.mrf.mxu0
  %v711 = vpop.f32.mrf.mxu0
  %v712 = vpop.f32.mrf.mxu0
  %713 = vdwg.mxu0
  %v716 = vunpack.c.l.b16 %v650
  %v717 = vunpack.c.l.b16 %v651
  %v718 = vpack.c.b16 %v717, %v716
  %720 = vmatprep.subr.bf16.mxu0 0
  %721 = vmatpush1.bf16.msra.mxu0 0
  %722 = vmatprep.subr.bf16.mxu0 0
  %723 = vmatpush1.bf16.msra.mxu0 0
  %724 = vmatprep.subr.bf16.mxu0 0
  %725 = vmatpush1.bf16.msra.mxu0 0
  %726 = vmatprep.subr.bf16.mxu0 0
  %727 = vmatpush1.bf16.msra.mxu0 0
  %728 = vmatprep.subr.bf16.mxu0 0
  %729 = vmatpush1.bf16.msra.mxu0 0
  %730 = vmatprep.subr.bf16.mxu0 0
  %731 = vmatpush1.bf16.msra.mxu0 0
  %732 = vmatprep.subr.bf16.mxu0 0
  %733 = vmatpush1.bf16.msra.mxu0 0
  %734 = vmatprep.subr.bf16.mxu0 0
  %735 = vmatpush1.bf16.msra.mxu0 %v718
  %736 = vmatprep.subr.bf16.mxu0 0
  %737 = vmatpush2.bf16.msra.mxu0 0
  %738 = vmatprep.subr.bf16.mxu0 0
  %739 = vmatpush2.bf16.msra.mxu0 0
  %740 = vmatprep.subr.bf16.mxu0 0
  %741 = vmatpush2.bf16.msra.mxu0 0
  %742 = vmatprep.subr.bf16.mxu0 0
  %743 = vmatpush2.bf16.msra.mxu0 0
  %744 = vmatprep.subr.bf16.mxu0 0
  %745 = vmatpush2.bf16.msra.mxu0 0
  %746 = vmatprep.subr.bf16.mxu0 0
  %747 = vmatpush2.bf16.msra.mxu0 0
  %748 = vmatprep.subr.bf16.mxu0 0
  %749 = vmatpush2.bf16.msra.mxu0 0
  %750 = vmatprep.subr.bf16.mxu0 0
  %751 = vmatpush2.bf16.msra.mxu0 0
  %752 = vmatprep.mubr.bf16.mxu0 0
  %753 = vmatmul.mubr.bf16.gmra.mxu0 %v352
  %v754 = vpop.f32.mrf.mxu0
  %v755 = vadd.f32 %v709, %v754
  %v756 = vpop.f32.mrf.mxu0
  %v757 = vpop.f32.mrf.mxu0
  %v758 = vpop.f32.mrf.mxu0
  %759 = vdwg.mxu0
  %s760 = scalar_lea.vmem %s11, 3
  %v761 = vld [vmem:[%s760] sm:$0x1]
  %v763 = vlaneseq
  %v764 = vshrl.u32 %v763, 7
  %v765 = vsub.s32 0, %v764
  %v766 = vrot.slane %v761, %v765
  %v768 = vadd.f32 %v755, %v766
  %s769 = scalar_lea.vmem [#allocation2], 24
  %770 = vst.msk [vmem:[%s769] sm:$0xff] %vm143, %v768
  %v771 = vmax.f32 %v648, %v768
  %s772 = scalar_lea.vmem %s10, 32
  %v773 = vld [vmem:[%s772] sm:$0xf]
  %v774 = vld [vmem:[%s772 + $0x4] sm:$0xf]
  %s775 = scalar_lea.vmem %s1, 16
  %v776 = vld [vmem:[%s775] sm:$0xf]
  %s777 = scalar_lea.vmem %s12, 64
  %v778 = vld [vmem:[%s777] sm:$0xf]
  %v779 = vld [vmem:[%s777 + $0x4] sm:$0xf]
  %v780 = vld [vmem:[%s777 + $0x8] sm:$0xf]
  %v781 = vld [vmem:[%s777 + $0xc] sm:$0xf]
  %v786 = vunpack.c.l.b16 %v778
  %v787 = vunpack.c.l.b16 %v779
  %v788 = vunpack.c.l.b16 %v780
  %v789 = vunpack.c.l.b16 %v781
  %v790 = vpack.c.b16 %v787, %v786
  %v791 = vpack.c.b16 %v789, %v788
  %v795 = vsel %vm143, %v776, 0
  %797 = vmatprep.subr.bf16.mxu0 0
  %798 = vmatpush1.bf16.msra.mxu0 0
  %799 = vmatprep.subr.bf16.mxu0 0
  %800 = vmatpush1.bf16.msra.mxu0 0
  %801 = vmatprep.subr.bf16.mxu0 0
  %802 = vmatpush1.bf16.msra.mxu0 0
  %803 = vmatprep.subr.bf16.mxu0 0
  %804 = vmatpush1.bf16.msra.mxu0 0
  %805 = vmatprep.subr.bf16.mxu0 0
  %806 = vmatpush1.bf16.msra.mxu0 0
  %807 = vmatprep.subr.bf16.mxu0 0
  %808 = vmatpush1.bf16.msra.mxu0 0
  %809 = vmatprep.subr.bf16.mxu0 0
  %810 = vmatpush1.bf16.msra.mxu0 %v791
  %811 = vmatprep.subr.bf16.mxu0 0
  %812 = vmatpush1.bf16.msra.mxu0 %v790
  %813 = vmatprep.subr.bf16.mxu0 0
  %814 = vmatpush2.bf16.msra.mxu0 0
  %815 = vmatprep.subr.bf16.mxu0 0
  %816 = vmatpush2.bf16.msra.mxu0 0
  %817 = vmatprep.subr.bf16.mxu0 0
  %818 = vmatpush2.bf16.msra.mxu0 0
  %819 = vmatprep.subr.bf16.mxu0 0
  %820 = vmatpush2.bf16.msra.mxu0 0
  %821 = vmatprep.subr.bf16.mxu0 0
  %822 = vmatpush2.bf16.msra.mxu0 0
  %823 = vmatprep.subr.bf16.mxu0 0
  %824 = vmatpush2.bf16.msra.mxu0 0
  %825 = vmatprep.subr.bf16.mxu0 0
  %826 = vmatpush2.bf16.msra.mxu0 0
  %827 = vmatprep.subr.bf16.mxu0 0
  %828 = vmatpush2.bf16.msra.mxu0 0
  %829 = vmatprep.mubr.bf16.mxu0 0
  %830 = vmatmul.mubr.bf16.gmra.mxu0 %v795
  %v831 = vpop.f32.mrf.mxu0
  %v832 = vadd.f32 0.0, %v831
  %v833 = vpop.f32.mrf.mxu0
  %v834 = vpop.f32.mrf.mxu0
  %v835 = vpop.f32.mrf.mxu0
  %836 = vdwg.mxu0
  %v839 = vunpack.c.l.b16 %v773
  %v840 = vunpack.c.l.b16 %v774
  %v841 = vpack.c.b16 %v840, %v839
  %843 = vmatprep.subr.bf16.mxu0 0
  %844 = vmatpush1.bf16.msra.mxu0 0
  %845 = vmatprep.subr.bf16.mxu0 0
  %846 = vmatpush1.bf16.msra.mxu0 0
  %847 = vmatprep.subr.bf16.mxu0 0
  %848 = vmatpush1.bf16.msra.mxu0 0
  %849 = vmatprep.subr.bf16.mxu0 0
  %850 = vmatpush1.bf16.msra.mxu0 0
  %851 = vmatprep.subr.bf16.mxu0 0
  %852 = vmatpush1.bf16.msra.mxu0 0
  %853 = vmatprep.subr.bf16.mxu0 0
  %854 = vmatpush1.bf16.msra.mxu0 0
  %855 = vmatprep.subr.bf16.mxu0 0
  %856 = vmatpush1.bf16.msra.mxu0 0
  %857 = vmatprep.subr.bf16.mxu0 0
  %858 = vmatpush1.bf16.msra.mxu0 %v841
  %859 = vmatprep.subr.bf16.mxu0 0
  %860 = vmatpush2.bf16.msra.mxu0 0
  %861 = vmatprep.subr.bf16.mxu0 0
  %862 = vmatpush2.bf16.msra.mxu0 0
  %863 = vmatprep.subr.bf16.mxu0 0
  %864 = vmatpush2.bf16.msra.mxu0 0
  %865 = vmatprep.subr.bf16.mxu0 0
  %866 = vmatpush2.bf16.msra.mxu0 0
  %867 = vmatprep.subr.bf16.mxu0 0
  %868 = vmatpush2.bf16.msra.mxu0 0
  %869 = vmatprep.subr.bf16.mxu0 0
  %870 = vmatpush2.bf16.msra.mxu0 0
  %871 = vmatprep.subr.bf16.mxu0 0
  %872 = vmatpush2.bf16.msra.mxu0 0
  %873 = vmatprep.subr.bf16.mxu0 0
  %874 = vmatpush2.bf16.msra.mxu0 0
  %875 = vmatprep.mubr.bf16.mxu0 0
  %876 = vmatmul.mubr.bf16.gmra.mxu0 %v352
  %v877 = vpop.f32.mrf.mxu0
  %v878 = vadd.f32 %v832, %v877
  %v879 = vpop.f32.mrf.mxu0
  %v880 = vpop.f32.mrf.mxu0
  %v881 = vpop.f32.mrf.mxu0
  %882 = vdwg.mxu0
  %s883 = scalar_lea.vmem %s11, 4
  %v884 = vld [vmem:[%s883] sm:$0x1]
  %v886 = vlaneseq
  %v887 = vshrl.u32 %v886, 7
  %v888 = vsub.s32 0, %v887
  %v889 = vrot.slane %v884, %v888
  %v891 = vadd.f32 %v878, %v889
  %s892 = scalar_lea.vmem [#allocation2], 32
  %893 = vst.msk [vmem:[%s892] sm:$0xff] %vm143, %v891
  %v894 = vmax.f32 %v771, %v891
  %s895 = scalar_lea.vmem %s10, 40
  %v896 = vld [vmem:[%s895] sm:$0xf]
  %v897 = vld [vmem:[%s895 + $0x4] sm:$0xf]
  %s898 = scalar_lea.vmem %s1, 20
  %v899 = vld [vmem:[%s898] sm:$0xf]
  %s900 = scalar_lea.vmem %s12, 80
  %v901 = vld [vmem:[%s900] sm:$0xf]
  %v902 = vld [vmem:[%s900 + $0x4] sm:$0xf]
  %v903 = vld [vmem:[%s900 + $0x8] sm:$0xf]
  %v904 = vld [vmem:[%s900 + $0xc] sm:$0xf]
  %v909 = vunpack.c.l.b16 %v901
  %v910 = vunpack.c.l.b16 %v902
  %v911 = vunpack.c.l.b16 %v903
  %v912 = vunpack.c.l.b16 %v904
  %v913 = vpack.c.b16 %v910, %v909
  %v914 = vpack.c.b16 %v912, %v911
  %v918 = vsel %vm143, %v899, 0
  %920 = vmatprep.subr.bf16.mxu0 0
  %921 = vmatpush1.bf16.msra.mxu0 0
  %922 = vmatprep.subr.bf16.mxu0 0
  %923 = vmatpush1.bf16.msra.mxu0 0
  %924 = vmatprep.subr.bf16.mxu0 0
  %925 = vmatpush1.bf16.msra.mxu0 0
  %926 = vmatprep.subr.bf16.mxu0 0
  %927 = vmatpush1.bf16.msra.mxu0 0
  %928 = vmatprep.subr.bf16.mxu0 0
  %929 = vmatpush1.bf16.msra.mxu0 0
  %930 = vmatprep.subr.bf16.mxu0 0
  %931 = vmatpush1.bf16.msra.mxu0 0
  %932 = vmatprep.subr.bf16.mxu0 0
  %933 = vmatpush1.bf16.msra.mxu0 %v914
  %934 = vmatprep.subr.bf16.mxu0 0
  %935 = vmatpush1.bf16.msra.mxu0 %v913
  %936 = vmatprep.subr.bf16.mxu0 0
  %937 = vmatpush2.bf16.msra.mxu0 0
  %938 = vmatprep.subr.bf16.mxu0 0
  %939 = vmatpush2.bf16.msra.mxu0 0
  %940 = vmatprep.subr.bf16.mxu0 0
  %941 = vmatpush2.bf16.msra.mxu0 0
  %942 = vmatprep.subr.bf16.mxu0 0
  %943 = vmatpush2.bf16.msra.mxu0 0
  %944 = vmatprep.subr.bf16.mxu0 0
  %945 = vmatpush2.bf16.msra.mxu0 0
  %946 = vmatprep.subr.bf16.mxu0 0
  %947 = vmatpush2.bf16.msra.mxu0 0
  %948 = vmatprep.subr.bf16.mxu0 0
  %949 = vmatpush2.bf16.msra.mxu0 0
  %950 = vmatprep.subr.bf16.mxu0 0
  %951 = vmatpush2.bf16.msra.mxu0 0
  %952 = vmatprep.mubr.bf16.mxu0 0
  %953 = vmatmul.mubr.bf16.gmra.mxu0 %v918
  %v954 = vpop.f32.mrf.mxu0
  %v955 = vadd.f32 0.0, %v954
  %v956 = vpop.f32.mrf.mxu0
  %v957 = vpop.f32.mrf.mxu0
  %v958 = vpop.f32.mrf.mxu0
  %959 = vdwg.mxu0
  %v962 = vunpack.c.l.b16 %v896
  %v963 = vunpack.c.l.b16 %v897
  %v964 = vpack.c.b16 %v963, %v962
  %966 = vmatprep.subr.bf16.mxu0 0
  %967 = vmatpush1.bf16.msra.mxu0 0
  %968 = vmatprep.subr.bf16.mxu0 0
  %969 = vmatpush1.bf16.msra.mxu0 0
  %970 = vmatprep.subr.bf16.mxu0 0
  %971 = vmatpush1.bf16.msra.mxu0 0
  %972 = vmatprep.subr.bf16.mxu0 0
  %973 = vmatpush1.bf16.msra.mxu0 0
  %974 = vmatprep.subr.bf16.mxu0 0
  %975 = vmatpush1.bf16.msra.mxu0 0
  %976 = vmatprep.subr.bf16.mxu0 0
  %977 = vmatpush1.bf16.msra.mxu0 0
  %978 = vmatprep.subr.bf16.mxu0 0
  %979 = vmatpush1.bf16.msra.mxu0 0
  %980 = vmatprep.subr.bf16.mxu0 0
  %981 = vmatpush1.bf16.msra.mxu0 %v964
  %982 = vmatprep.subr.bf16.mxu0 0
  %983 = vmatpush2.bf16.msra.mxu0 0
  %984 = vmatprep.subr.bf16.mxu0 0
  %985 = vmatpush2.bf16.msra.mxu0 0
  %986 = vmatprep.subr.bf16.mxu0 0
  %987 = vmatpush2.bf16.msra.mxu0 0
  %988 = vmatprep.subr.bf16.mxu0 0
  %989 = vmatpush2.bf16.msra.mxu0 0
  %990 = vmatprep.subr.bf16.mxu0 0
  %991 = vmatpush2.bf16.msra.mxu0 0
  %992 = vmatprep.subr.bf16.mxu0 0
  %993 = vmatpush2.bf16.msra.mxu0 0
  %994 = vmatprep.subr.bf16.mxu0 0
  %995 = vmatpush2.bf16.msra.mxu0 0
  %996 = vmatprep.subr.bf16.mxu0 0
  %997 = vmatpush2.bf16.msra.mxu0 0
  %998 = vmatprep.mubr.bf16.mxu0 0
  %999 = vmatmul.mubr.bf16.gmra.mxu0 %v352
  %v1000 = vpop.f32.mrf.mxu0
  %v1001 = vadd.f32 %v955, %v1000
  %v1002 = vpop.f32.mrf.mxu0
  %v1003 = vpop.f32.mrf.mxu0
  %v1004 = vpop.f32.mrf.mxu0
  %1005 = vdwg.mxu0
  %s1006 = scalar_lea.vmem %s11, 5
  %v1007 = vld [vmem:[%s1006] sm:$0x1]
  %v1009 = vlaneseq
  %v1010 = vshrl.u32 %v1009, 7
  %v1011 = vsub.s32 0, %v1010
  %v1012 = vrot.slane %v1007, %v1011
  %v1014 = vadd.f32 %v1001, %v1012
  %s1015 = scalar_lea.vmem [#allocation2], 40
  %1016 = vst.msk [vmem:[%s1015] sm:$0xff] %vm143, %v1014
  %v1017 = vmax.f32 %v894, %v1014
  %s1018 = scalar_lea.vmem %s10, 48
  %v1019 = vld [vmem:[%s1018] sm:$0xf]
  %v1020 = vld [vmem:[%s1018 + $0x4] sm:$0xf]
  %s1021 = scalar_lea.vmem %s1, 24
  %v1022 = vld [vmem:[%s1021] sm:$0xf]
  %s1023 = scalar_lea.vmem %s12, 96
  %v1024 = vld [vmem:[%s1023] sm:$0xf]
  %v1025 = vld [vmem:[%s1023 + $0x4] sm:$0xf]
  %v1026 = vld [vmem:[%s1023 + $0x8] sm:$0xf]
  %v1027 = vld [vmem:[%s1023 + $0xc] sm:$0xf]
  %v1032 = vunpack.c.l.b16 %v1024
  %v1033 = vunpack.c.l.b16 %v1025
  %v1034 = vunpack.c.l.b16 %v1026
  %v1035 = vunpack.c.l.b16 %v1027
  %v1036 = vpack.c.b16 %v1033, %v1032
  %v1037 = vpack.c.b16 %v1035, %v1034
  %v1041 = vsel %vm143, %v1022, 0
  %1043 = vmatprep.subr.bf16.mxu0 0
  %1044 = vmatpush1.bf16.msra.mxu0 0
  %1045 = vmatprep.subr.bf16.mxu0 0
  %1046 = vmatpush1.bf16.msra.mxu0 0
  %1047 = vmatprep.subr.bf16.mxu0 0
  %1048 = vmatpush1.bf16.msra.mxu0 0
  %1049 = vmatprep.subr.bf16.mxu0 0
  %1050 = vmatpush1.bf16.msra.mxu0 0
  %1051 = vmatprep.subr.bf16.mxu0 0
  %1052 = vmatpush1.bf16.msra.mxu0 0
  %1053 = vmatprep.subr.bf16.mxu0 0
  %1054 = vmatpush1.bf16.msra.mxu0 0
  %1055 = vmatprep.subr.bf16.mxu0 0
  %1056 = vmatpush1.bf16.msra.mxu0 %v1037
  %1057 = vmatprep.subr.bf16.mxu0 0
  %1058 = vmatpush1.bf16.msra.mxu0 %v1036
  %1059 = vmatprep.subr.bf16.mxu0 0
  %1060 = vmatpush2.bf16.msra.mxu0 0
  %1061 = vmatprep.subr.bf16.mxu0 0
  %1062 = vmatpush2.bf16.msra.mxu0 0
  %1063 = vmatprep.subr.bf16.mxu0 0
  %1064 = vmatpush2.bf16.msra.mxu0 0
  %1065 = vmatprep.subr.bf16.mxu0 0
  %1066 = vmatpush2.bf16.msra.mxu0 0
  %1067 = vmatprep.subr.bf16.mxu0 0
  %1068 = vmatpush2.bf16.msra.mxu0 0
  %1069 = vmatprep.subr.bf16.mxu0 0
  %1070 = vmatpush2.bf16.msra.mxu0 0
  %1071 = vmatprep.subr.bf16.mxu0 0
  %1072 = vmatpush2.bf16.msra.mxu0 0
  %1073 = vmatprep.subr.bf16.mxu0 0
  %1074 = vmatpush2.bf16.msra.mxu0 0
  %1075 = vmatprep.mubr.bf16.mxu0 0
  %1076 = vmatmul.mubr.bf16.gmra.mxu0 %v1041
  %v1077 = vpop.f32.mrf.mxu0
  %v1078 = vadd.f32 0.0, %v1077
  %v1079 = vpop.f32.mrf.mxu0
  %v1080 = vpop.f32.mrf.mxu0
  %v1081 = vpop.f32.mrf.mxu0
  %1082 = vdwg.mxu0
  %v1085 = vunpack.c.l.b16 %v1019
  %v1086 = vunpack.c.l.b16 %v1020
  %v1087 = vpack.c.b16 %v1086, %v1085
  %1089 = vmatprep.subr.bf16.mxu0 0
  %1090 = vmatpush1.bf16.msra.mxu0 0
  %1091 = vmatprep.subr.bf16.mxu0 0
  %1092 = vmatpush1.bf16.msra.mxu0 0
  %1093 = vmatprep.subr.bf16.mxu0 0
  %1094 = vmatpush1.bf16.msra.mxu0 0
  %1095 = vmatprep.subr.bf16.mxu0 0
  %1096 = vmatpush1.bf16.msra.mxu0 0
  %1097 = vmatprep.subr.bf16.mxu0 0
  %1098 = vmatpush1.bf16.msra.mxu0 0
  %1099 = vmatprep.subr.bf16.mxu0 0
  %1100 = vmatpush1.bf16.msra.mxu0 0
  %1101 = vmatprep.subr.bf16.mxu0 0
  %1102 = vmatpush1.bf16.msra.mxu0 0
  %1103 = vmatprep.subr.bf16.mxu0 0
  %1104 = vmatpush1.bf16.msra.mxu0 %v1087
  %1105 = vmatprep.subr.bf16.mxu0 0
  %1106 = vmatpush2.bf16.msra.mxu0 0
  %1107 = vmatprep.subr.bf16.mxu0 0
  %1108 = vmatpush2.bf16.msra.mxu0 0
  %1109 = vmatprep.subr.bf16.mxu0 0
  %1110 = vmatpush2.bf16.msra.mxu0 0
  %1111 = vmatprep.subr.bf16.mxu0 0
  %1112 = vmatpush2.bf16.msra.mxu0 0
  %1113 = vmatprep.subr.bf16.mxu0 0
  %1114 = vmatpush2.bf16.msra.mxu0 0
  %1115 = vmatprep.subr.bf16.mxu0 0
  %1116 = vmatpush2.bf16.msra.mxu0 0
  %1117 = vmatprep.subr.bf16.mxu0 0
  %1118 = vmatpush2.bf16.msra.mxu0 0
  %1119 = vmatprep.subr.bf16.mxu0 0
  %1120 = vmatpush2.bf16.msra.mxu0 0
  %1121 = vmatprep.mubr.bf16.mxu0 0
  %1122 = vmatmul.mubr.bf16.gmra.mxu0 %v352
  %v1123 = vpop.f32.mrf.mxu0
  %v1124 = vadd.f32 %v1078, %v1123
  %v1125 = vpop.f32.mrf.mxu0
  %v1126 = vpop.f32.mrf.mxu0
  %v1127 = vpop.f32.mrf.mxu0
  %1128 = vdwg.mxu0
  %s1129 = scalar_lea.vmem %s11, 6
  %v1130 = vld [vmem:[%s1129] sm:$0x1]
  %v1132 = vlaneseq
  %v1133 = vshrl.u32 %v1132, 7
  %v1134 = vsub.s32 0, %v1133
  %v1135 = vrot.slane %v1130, %v1134
  %v1137 = vadd.f32 %v1124, %v1135
  %s1138 = scalar_lea.vmem [#allocation2], 48
  %1139 = vst.msk [vmem:[%s1138] sm:$0xff] %vm143, %v1137
  %v1140 = vmax.f32 %v1017, %v1137
  %s1141 = scalar_lea.vmem %s10, 56
  %v1142 = vld [vmem:[%s1141] sm:$0xf]
  %v1143 = vld [vmem:[%s1141 + $0x4] sm:$0xf]
  %s1144 = scalar_lea.vmem %s1, 28
  %v1145 = vld [vmem:[%s1144] sm:$0xf]
  %s1146 = scalar_lea.vmem %s12, 112
  %v1147 = vld [vmem:[%s1146] sm:$0xf]
  %v1148 = vld [vmem:[%s1146 + $0x4] sm:$0xf]
  %v1149 = vld [vmem:[%s1146 + $0x8] sm:$0xf]
  %v1150 = vld [vmem:[%s1146 + $0xc] sm:$0xf]
  %v1155 = vunpack.c.l.b16 %v1147
  %v1156 = vunpack.c.l.b16 %v1148
  %v1157 = vunpack.c.l.b16 %v1149
  %v1158 = vunpack.c.l.b16 %v1150
  %v1159 = vpack.c.b16 %v1156, %v1155
  %v1160 = vpack.c.b16 %v1158, %v1157
  %v1164 = vsel %vm143, %v1145, 0
  %1166 = vmatprep.subr.bf16.mxu0 0
  %1167 = vmatpush1.bf16.msra.mxu0 0
  %1168 = vmatprep.subr.bf16.mxu0 0
  %1169 = vmatpush1.bf16.msra.mxu0 0
  %1170 = vmatprep.subr.bf16.mxu0 0
  %1171 = vmatpush1.bf16.msra.mxu0 0
  %1172 = vmatprep.subr.bf16.mxu0 0
  %1173 = vmatpush1.bf16.msra.mxu0 0
  %1174 = vmatprep.subr.bf16.mxu0 0
  %1175 = vmatpush1.bf16.msra.mxu0 0
  %1176 = vmatprep.subr.bf16.mxu0 0
  %1177 = vmatpush1.bf16.msra.mxu0 0
  %1178 = vmatprep.subr.bf16.mxu0 0
  %1179 = vmatpush1.bf16.msra.mxu0 %v1160
  %1180 = vmatprep.subr.bf16.mxu0 0
  %1181 = vmatpush1.bf16.msra.mxu0 %v1159
  %1182 = vmatprep.subr.bf16.mxu0 0
  %1183 = vmatpush2.bf16.msra.mxu0 0
  %1184 = vmatprep.subr.bf16.mxu0 0
  %1185 = vmatpush2.bf16.msra.mxu0 0
  %1186 = vmatprep.subr.bf16.mxu0 0
  %1187 = vmatpush2.bf16.msra.mxu0 0
  %1188 = vmatprep.subr.bf16.mxu0 0
  %1189 = vmatpush2.bf16.msra.mxu0 0
  %1190 = vmatprep.subr.bf16.mxu0 0
  %1191 = vmatpush2.bf16.msra.mxu0 0
  %1192 = vmatprep.subr.bf16.mxu0 0
  %1193 = vmatpush2.bf16.msra.mxu0 0
  %1194 = vmatprep.subr.bf16.mxu0 0
  %1195 = vmatpush2.bf16.msra.mxu0 0
  %1196 = vmatprep.subr.bf16.mxu0 0
  %1197 = vmatpush2.bf16.msra.mxu0 0
  %1198 = vmatprep.mubr.bf16.mxu0 0
  %1199 = vmatmul.mubr.bf16.gmra.mxu0 %v1164
  %v1200 = vpop.f32.mrf.mxu0
  %v1201 = vadd.f32 0.0, %v1200
  %v1202 = vpop.f32.mrf.mxu0
  %v1203 = vpop.f32.mrf.mxu0
  %v1204 = vpop.f32.mrf.mxu0
  %1205 = vdwg.mxu0
  %v1208 = vunpack.c.l.b16 %v1142
  %v1209 = vunpack.c.l.b16 %v1143
  %v1210 = vpack.c.b16 %v1209, %v1208
  %1212 = vmatprep.subr.bf16.mxu0 0
  %1213 = vmatpush1.bf16.msra.mxu0 0
  %1214 = vmatprep.subr.bf16.mxu0 0
  %1215 = vmatpush1.bf16.msra.mxu0 0
  %1216 = vmatprep.subr.bf16.mxu0 0
  %1217 = vmatpush1.bf16.msra.mxu0 0
  %1218 = vmatprep.subr.bf16.mxu0 0
  %1219 = vmatpush1.bf16.msra.mxu0 0
  %1220 = vmatprep.subr.bf16.mxu0 0
  %1221 = vmatpush1.bf16.msra.mxu0 0
  %1222 = vmatprep.subr.bf16.mxu0 0
  %1223 = vmatpush1.bf16.msra.mxu0 0
  %1224 = vmatprep.subr.bf16.mxu0 0
  %1225 = vmatpush1.bf16.msra.mxu0 0
  %1226 = vmatprep.subr.bf16.mxu0 0
  %1227 = vmatpush1.bf16.msra.mxu0 %v1210
  %1228 = vmatprep.subr.bf16.mxu0 0
  %1229 = vmatpush2.bf16.msra.mxu0 0
  %1230 = vmatprep.subr.bf16.mxu0 0
  %1231 = vmatpush2.bf16.msra.mxu0 0
  %1232 = vmatprep.subr.bf16.mxu0 0
  %1233 = vmatpush2.bf16.msra.mxu0 0
  %1234 = vmatprep.subr.bf16.mxu0 0
  %1235 = vmatpush2.bf16.msra.mxu0 0
  %1236 = vmatprep.subr.bf16.mxu0 0
  %1237 = vmatpush2.bf16.msra.mxu0 0
  %1238 = vmatprep.subr.bf16.mxu0 0
  %1239 = vmatpush2.bf16.msra.mxu0 0
  %1240 = vmatprep.subr.bf16.mxu0 0
  %1241 = vmatpush2.bf16.msra.mxu0 0
  %1242 = vmatprep.subr.bf16.mxu0 0
  %1243 = vmatpush2.bf16.msra.mxu0 0
  %1244 = vmatprep.mubr.bf16.mxu0 0
  %1245 = vmatmul.mubr.bf16.gmra.mxu0 %v352
  %v1246 = vpop.f32.mrf.mxu0
  %v1247 = vadd.f32 %v1201, %v1246
  %v1248 = vpop.f32.mrf.mxu0
  %v1249 = vpop.f32.mrf.mxu0
  %v1250 = vpop.f32.mrf.mxu0
  %1251 = vdwg.mxu0
  %s1252 = scalar_lea.vmem %s11, 7
  %v1253 = vld [vmem:[%s1252] sm:$0x1]
  %v1255 = vlaneseq
  %v1256 = vshrl.u32 %v1255, 7
  %v1257 = vsub.s32 0, %v1256
  %v1258 = vrot.slane %v1253, %v1257
  %v1260 = vadd.f32 %v1247, %v1258
  %s1261 = scalar_lea.vmem [#allocation2], 56
  %1262 = vst.msk [vmem:[%s1261] sm:$0xff] %vm143, %v1260
  %v1263 = vmax.f32 %v1140, %v1260
  %s1264 = scalar_lea.vmem %s10, 64
  %v1265 = vld [vmem:[%s1264] sm:$0xf]
  %v1266 = vld [vmem:[%s1264 + $0x4] sm:$0xf]
  %s1267 = scalar_lea.vmem %s1, 32
  %v1268 = vld [vmem:[%s1267] sm:$0xf]
  %s1269 = scalar_lea.vmem %s12, 128
  %v1270 = vld [vmem:[%s1269] sm:$0xf]
  %v1271 = vld [vmem:[%s1269 + $0x4] sm:$0xf]
  %v1272 = vld [vmem:[%s1269 + $0x8] sm:$0xf]
  %v1273 = vld [vmem:[%s1269 + $0xc] sm:$0xf]
  %v1278 = vunpack.c.l.b16 %v1270
  %v1279 = vunpack.c.l.b16 %v1271
  %v1280 = vunpack.c.l.b16 %v1272
  %v1281 = vunpack.c.l.b16 %v1273
  %v1282 = vpack.c.b16 %v1279, %v1278
  %v1283 = vpack.c.b16 %v1281, %v1280
  %v1287 = vsel %vm143, %v1268, 0
  %1289 = vmatprep.subr.bf16.mxu0 0
  %1290 = vmatpush1.bf16.msra.mxu0 0
  %1291 = vmatprep.subr.bf16.mxu0 0
  %1292 = vmatpush1.bf16.msra.mxu0 0
  %1293 = vmatprep.subr.bf16.mxu0 0
  %1294 = vmatpush1.bf16.msra.mxu0 0
  %1295 = vmatprep.subr.bf16.mxu0 0
  %1296 = vmatpush1.bf16.msra.mxu0 0
  %1297 = vmatprep.subr.bf16.mxu0 0
  %1298 = vmatpush1.bf16.msra.mxu0 0
  %1299 = vmatprep.subr.bf16.mxu0 0
  %1300 = vmatpush1.bf16.msra.mxu0 0
  %1301 = vmatprep.subr.bf16.mxu0 0
  %1302 = vmatpush1.bf16.msra.mxu0 %v1283
  %1303 = vmatprep.subr.bf16.mxu0 0
  %1304 = vmatpush1.bf16.msra.mxu0 %v1282
  %1305 = vmatprep.subr.bf16.mxu0 0
  %1306 = vmatpush2.bf16.msra.mxu0 0
  %1307 = vmatprep.subr.bf16.mxu0 0
  %1308 = vmatpush2.bf16.msra.mxu0 0
  %1309 = vmatprep.subr.bf16.mxu0 0
  %1310 = vmatpush2.bf16.msra.mxu0 0
  %1311 = vmatprep.subr.bf16.mxu0 0
  %1312 = vmatpush2.bf16.msra.mxu0 0
  %1313 = vmatprep.subr.bf16.mxu0 0
  %1314 = vmatpush2.bf16.msra.mxu0 0
  %1315 = vmatprep.subr.bf16.mxu0 0
  %1316 = vmatpush2.bf16.msra.mxu0 0
  %1317 = vmatprep.subr.bf16.mxu0 0
  %1318 = vmatpush2.bf16.msra.mxu0 0
  %1319 = vmatprep.subr.bf16.mxu0 0
  %1320 = vmatpush2.bf16.msra.mxu0 0
  %1321 = vmatprep.mubr.bf16.mxu0 0
  %1322 = vmatmul.mubr.bf16.gmra.mxu0 %v1287
  %v1323 = vpop.f32.mrf.mxu0
  %v1324 = vadd.f32 0.0, %v1323
  %v1325 = vpop.f32.mrf.mxu0
  %v1326 = vpop.f32.mrf.mxu0
  %v1327 = vpop.f32.mrf.mxu0
  %1328 = vdwg.mxu0
  %v1331 = vunpack.c.l.b16 %v1265
  %v1332 = vunpack.c.l.b16 %v1266
  %v1333 = vpack.c.b16 %v1332, %v1331
  %1335 = vmatprep.subr.bf16.mxu0 0
  %1336 = vmatpush1.bf16.msra.mxu0 0
  %1337 = vmatprep.subr.bf16.mxu0 0
  %1338 = vmatpush1.bf16.msra.mxu0 0
  %1339 = vmatprep.subr.bf16.mxu0 0
  %1340 = vmatpush1.bf16.msra.mxu0 0
  %1341 = vmatprep.subr.bf16.mxu0 0
  %1342 = vmatpush1.bf16.msra.mxu0 0
  %1343 = vmatprep.subr.bf16.mxu0 0
  %1344 = vmatpush1.bf16.msra.mxu0 0
  %1345 = vmatprep.subr.bf16.mxu0 0
  %1346 = vmatpush1.bf16.msra.mxu0 0
  %1347 = vmatprep.subr.bf16.mxu0 0
  %1348 = vmatpush1.bf16.msra.mxu0 0
  %1349 = vmatprep.subr.bf16.mxu0 0
  %1350 = vmatpush1.bf16.msra.mxu0 %v1333
  %1351 = vmatprep.subr.bf16.mxu0 0
  %1352 = vmatpush2.bf16.msra.mxu0 0
  %1353 = vmatprep.subr.bf16.mxu0 0
  %1354 = vmatpush2.bf16.msra.mxu0 0
  %1355 = vmatprep.subr.bf16.mxu0 0
  %1356 = vmatpush2.bf16.msra.mxu0 0
  %1357 = vmatprep.subr.bf16.mxu0 0
  %1358 = vmatpush2.bf16.msra.mxu0 0
  %1359 = vmatprep.subr.bf16.mxu0 0
  %1360 = vmatpush2.bf16.msra.mxu0 0
  %1361 = vmatprep.subr.bf16.mxu0 0
  %1362 = vmatpush2.bf16.msra.mxu0 0
  %1363 = vmatprep.subr.bf16.mxu0 0
  %1364 = vmatpush2.bf16.msra.mxu0 0
  %1365 = vmatprep.subr.bf16.mxu0 0
  %1366 = vmatpush2.bf16.msra.mxu0 0
  %1367 = vmatprep.mubr.bf16.mxu0 0
  %1368 = vmatmul.mubr.bf16.gmra.mxu0 %v352
  %v1369 = vpop.f32.mrf.mxu0
  %v1370 = vadd.f32 %v1324, %v1369
  %v1371 = vpop.f32.mrf.mxu0
  %v1372 = vpop.f32.mrf.mxu0
  %v1373 = vpop.f32.mrf.mxu0
  %1374 = vdwg.mxu0
  %s1375 = scalar_lea.vmem %s11, 8
  %v1376 = vld [vmem:[%s1375] sm:$0x1]
  %v1378 = vlaneseq
  %v1379 = vshrl.u32 %v1378, 7
  %v1380 = vsub.s32 0, %v1379
  %v1381 = vrot.slane %v1376, %v1380
  %v1383 = vadd.f32 %v1370, %v1381
  %s1384 = scalar_lea.vmem [#allocation2], 64
  %1385 = vst.msk [vmem:[%s1384] sm:$0xff] %vm143, %v1383
  %v1386 = vmax.f32 %v1263, %v1383
  %s1387 = scalar_lea.vmem %s10, 72
  %v1388 = vld [vmem:[%s1387] sm:$0xf]
  %v1389 = vld [vmem:[%s1387 + $0x4] sm:$0xf]
  %s1390 = scalar_lea.vmem %s1, 36
  %v1391 = vld [vmem:[%s1390] sm:$0xf]
  %s1392 = scalar_lea.vmem %s12, 144
  %v1393 = vld [vmem:[%s1392] sm:$0xf]
  %v1394 = vld [vmem:[%s1392 + $0x4] sm:$0xf]
  %v1395 = vld [vmem:[%s1392 + $0x8] sm:$0xf]
  %v1396 = vld [vmem:[%s1392 + $0xc] sm:$0xf]
  %v1401 = vunpack.c.l.b16 %v1393
  %v1402 = vunpack.c.l.b16 %v1394
  %v1403 = vunpack.c.l.b16 %v1395
  %v1404 = vunpack.c.l.b16 %v1396
  %v1405 = vpack.c.b16 %v1402, %v1401
  %v1406 = vpack.c.b16 %v1404, %v1403
  %v1410 = vsel %vm143, %v1391, 0
  %1412 = vmatprep.subr.bf16.mxu0 0
  %1413 = vmatpush1.bf16.msra.mxu0 0
  %1414 = vmatprep.subr.bf16.mxu0 0
  %1415 = vmatpush1.bf16.msra.mxu0 0
  %1416 = vmatprep.subr.bf16.mxu0 0
  %1417 = vmatpush1.bf16.msra.mxu0 0
  %1418 = vmatprep.subr.bf16.mxu0 0
  %1419 = vmatpush1.bf16.msra.mxu0 0
  %1420 = vmatprep.subr.bf16.mxu0 0
  %1421 = vmatpush1.bf16.msra.mxu0 0
  %1422 = vmatprep.subr.bf16.mxu0 0
  %1423 = vmatpush1.bf16.msra.mxu0 0
  %1424 = vmatprep.subr.bf16.mxu0 0
  %1425 = vmatpush1.bf16.msra.mxu0 %v1406
  %1426 = vmatprep.subr.bf16.mxu0 0
  %1427 = vmatpush1.bf16.msra.mxu0 %v1405
  %1428 = vmatprep.subr.bf16.mxu0 0
  %1429 = vmatpush2.bf16.msra.mxu0 0
  %1430 = vmatprep.subr.bf16.mxu0 0
  %1431 = vmatpush2.bf16.msra.mxu0 0
  %1432 = vmatprep.subr.bf16.mxu0 0
  %1433 = vmatpush2.bf16.msra.mxu0 0
  %1434 = vmatprep.subr.bf16.mxu0 0
  %1435 = vmatpush2.bf16.msra.mxu0 0
  %1436 = vmatprep.subr.bf16.mxu0 0
  %1437 = vmatpush2.bf16.msra.mxu0 0
  %1438 = vmatprep.subr.bf16.mxu0 0
  %1439 = vmatpush2.bf16.msra.mxu0 0
  %1440 = vmatprep.subr.bf16.mxu0 0
  %1441 = vmatpush2.bf16.msra.mxu0 0
  %1442 = vmatprep.subr.bf16.mxu0 0
  %1443 = vmatpush2.bf16.msra.mxu0 0
  %1444 = vmatprep.mubr.bf16.mxu0 0
  %1445 = vmatmul.mubr.bf16.gmra.mxu0 %v1410
  %v1446 = vpop.f32.mrf.mxu0
  %v1447 = vadd.f32 0.0, %v1446
  %v1448 = vpop.f32.mrf.mxu0
  %v1449 = vpop.f32.mrf.mxu0
  %v1450 = vpop.f32.mrf.mxu0
  %1451 = vdwg.mxu0
  %v1454 = vunpack.c.l.b16 %v1388
  %v1455 = vunpack.c.l.b16 %v1389
  %v1456 = vpack.c.b16 %v1455, %v1454
  %1458 = vmatprep.subr.bf16.mxu0 0
  %1459 = vmatpush1.bf16.msra.mxu0 0
  %1460 = vmatprep.subr.bf16.mxu0 0
  %1461 = vmatpush1.bf16.msra.mxu0 0
  %1462 = vmatprep.subr.bf16.mxu0 0
  %1463 = vmatpush1.bf16.msra.mxu0 0
  %1464 = vmatprep.subr.bf16.mxu0 0
  %1465 = vmatpush1.bf16.msra.mxu0 0
  %1466 = vmatprep.subr.bf16.mxu0 0
  %1467 = vmatpush1.bf16.msra.mxu0 0
  %1468 = vmatprep.subr.bf16.mxu0 0
  %1469 = vmatpush1.bf16.msra.mxu0 0
  %1470 = vmatprep.subr.bf16.mxu0 0
  %1471 = vmatpush1.bf16.msra.mxu0 0
  %1472 = vmatprep.subr.bf16.mxu0 0
  %1473 = vmatpush1.bf16.msra.mxu0 %v1456
  %1474 = vmatprep.subr.bf16.mxu0 0
  %1475 = vmatpush2.bf16.msra.mxu0 0
  %1476 = vmatprep.subr.bf16.mxu0 0
  %1477 = vmatpush2.bf16.msra.mxu0 0
  %1478 = vmatprep.subr.bf16.mxu0 0
  %1479 = vmatpush2.bf16.msra.mxu0 0
  %1480 = vmatprep.subr.bf16.mxu0 0
  %1481 = vmatpush2.bf16.msra.mxu0 0
  %1482 = vmatprep.subr.bf16.mxu0 0
  %1483 = vmatpush2.bf16.msra.mxu0 0
  %1484 = vmatprep.subr.bf16.mxu0 0
  %1485 = vmatpush2.bf16.msra.mxu0 0
  %1486 = vmatprep.subr.bf16.mxu0 0
  %1487 = vmatpush2.bf16.msra.mxu0 0
  %1488 = vmatprep.subr.bf16.mxu0 0
  %1489 = vmatpush2.bf16.msra.mxu0 0
  %1490 = vmatprep.mubr.bf16.mxu0 0
  %1491 = vmatmul.mubr.bf16.gmra.mxu0 %v352
  %v1492 = vpop.f32.mrf.mxu0
  %v1493 = vadd.f32 %v1447, %v1492
  %v1494 = vpop.f32.mrf.mxu0
  %v1495 = vpop.f32.mrf.mxu0
  %v1496 = vpop.f32.mrf.mxu0
  %1497 = vdwg.mxu0
  %s1498 = scalar_lea.vmem %s11, 9
  %v1499 = vld [vmem:[%s1498] sm:$0x1]
  %v1501 = vlaneseq
  %v1502 = vshrl.u32 %v1501, 7
  %v1503 = vsub.s32 0, %v1502
  %v1504 = vrot.slane %v1499, %v1503
  %v1506 = vadd.f32 %v1493, %v1504
  %s1507 = scalar_lea.vmem [#allocation2], 72
  %1508 = vst.msk [vmem:[%s1507] sm:$0xff] %vm143, %v1506
  %v1509 = vmax.f32 %v1386, %v1506
  %s1510 = scalar_lea.vmem %s10, 80
  %v1511 = vld [vmem:[%s1510] sm:$0xf]
  %v1512 = vld [vmem:[%s1510 + $0x4] sm:$0xf]
  %s1513 = scalar_lea.vmem %s1, 40
  %v1514 = vld [vmem:[%s1513] sm:$0xf]
  %s1515 = scalar_lea.vmem %s12, 160
  %v1516 = vld [vmem:[%s1515] sm:$0xf]
  %v1517 = vld [vmem:[%s1515 + $0x4] sm:$0xf]
  %v1518 = vld [vmem:[%s1515 + $0x8] sm:$0xf]
  %v1519 = vld [vmem:[%s1515 + $0xc] sm:$0xf]
  %v1524 = vunpack.c.l.b16 %v1516
  %v1525 = vunpack.c.l.b16 %v1517
  %v1526 = vunpack.c.l.b16 %v1518
  %v1527 = vunpack.c.l.b16 %v1519
  %v1528 = vpack.c.b16 %v1525, %v1524
  %v1529 = vpack.c.b16 %v1527, %v1526
  %v1533 = vsel %vm143, %v1514, 0
  %1535 = vmatprep.subr.bf16.mxu0 0
  %1536 = vmatpush1.bf16.msra.mxu0 0
  %1537 = vmatprep.subr.bf16.mxu0 0
  %1538 = vmatpush1.bf16.msra.mxu0 0
  %1539 = vmatprep.subr.bf16.mxu0 0
  %1540 = vmatpush1.bf16.msra.mxu0 0
  %1541 = vmatprep.subr.bf16.mxu0 0
  %1542 = vmatpush1.bf16.msra.mxu0 0
  %1543 = vmatprep.subr.bf16.mxu0 0
  %1544 = vmatpush1.bf16.msra.mxu0 0
  %1545 = vmatprep.subr.bf16.mxu0 0
  %1546 = vmatpush1.bf16.msra.mxu0 0
  %1547 = vmatprep.subr.bf16.mxu0 0
  %1548 = vmatpush1.bf16.msra.mxu0 %v1529
  %1549 = vmatprep.subr.bf16.mxu0 0
  %1550 = vmatpush1.bf16.msra.mxu0 %v1528
  %1551 = vmatprep.subr.bf16.mxu0 0
  %1552 = vmatpush2.bf16.msra.mxu0 0
  %1553 = vmatprep.subr.bf16.mxu0 0
  %1554 = vmatpush2.bf16.msra.mxu0 0
  %1555 = vmatprep.subr.bf16.mxu0 0
  %1556 = vmatpush2.bf16.msra.mxu0 0
  %1557 = vmatprep.subr.bf16.mxu0 0
  %1558 = vmatpush2.bf16.msra.mxu0 0
  %1559 = vmatprep.subr.bf16.mxu0 0
  %1560 = vmatpush2.bf16.msra.mxu0 0
  %1561 = vmatprep.subr.bf16.mxu0 0
  %1562 = vmatpush2.bf16.msra.mxu0 0
  %1563 = vmatprep.subr.bf16.mxu0 0
  %1564 = vmatpush2.bf16.msra.mxu0 0
  %1565 = vmatprep.subr.bf16.mxu0 0
  %1566 = vmatpush2.bf16.msra.mxu0 0
  %1567 = vmatprep.mubr.bf16.mxu0 0
  %1568 = vmatmul.mubr.bf16.gmra.mxu0 %v1533
  %v1569 = vpop.f32.mrf.mxu0
  %v1570 = vadd.f32 0.0, %v1569
  %v1571 = vpop.f32.mrf.mxu0
  %v1572 = vpop.f32.mrf.mxu0
  %v1573 = vpop.f32.mrf.mxu0
  %1574 = vdwg.mxu0
  %v1577 = vunpack.c.l.b16 %v1511
  %v1578 = vunpack.c.l.b16 %v1512
  %v1579 = vpack.c.b16 %v1578, %v1577
  %1581 = vmatprep.subr.bf16.mxu0 0
  %1582 = vmatpush1.bf16.msra.mxu0 0
  %1583 = vmatprep.subr.bf16.mxu0 0
  %1584 = vmatpush1.bf16.msra.mxu0 0
  %1585 = vmatprep.subr.bf16.mxu0 0
  %1586 = vmatpush1.bf16.msra.mxu0 0
  %1587 = vmatprep.subr.bf16.mxu0 0
  %1588 = vmatpush1.bf16.msra.mxu0 0
  %1589 = vmatprep.subr.bf16.mxu0 0
  %1590 = vmatpush1.bf16.msra.mxu0 0
  %1591 = vmatprep.subr.bf16.mxu0 0
  %1592 = vmatpush1.bf16.msra.mxu0 0
  %1593 = vmatprep.subr.bf16.mxu0 0
  %1594 = vmatpush1.bf16.msra.mxu0 0
  %1595 = vmatprep.subr.bf16.mxu0 0
  %1596 = vmatpush1.bf16.msra.mxu0 %v1579
  %1597 = vmatprep.subr.bf16.mxu0 0
  %1598 = vmatpush2.bf16.msra.mxu0 0
  %1599 = vmatprep.subr.bf16.mxu0 0
  %1600 = vmatpush2.bf16.msra.mxu0 0
  %1601 = vmatprep.subr.bf16.mxu0 0
  %1602 = vmatpush2.bf16.msra.mxu0 0
  %1603 = vmatprep.subr.bf16.mxu0 0
  %1604 = vmatpush2.bf16.msra.mxu0 0
  %1605 = vmatprep.subr.bf16.mxu0 0
  %1606 = vmatpush2.bf16.msra.mxu0 0
  %1607 = vmatprep.subr.bf16.mxu0 0
  %1608 = vmatpush2.bf16.msra.mxu0 0
  %1609 = vmatprep.subr.bf16.mxu0 0
  %1610 = vmatpush2.bf16.msra.mxu0 0
  %1611 = vmatprep.subr.bf16.mxu0 0
  %1612 = vmatpush2.bf16.msra.mxu0 0
  %1613 = vmatprep.mubr.bf16.mxu0 0
  %1614 = vmatmul.mubr.bf16.gmra.mxu0 %v352
  %v1615 = vpop.f32.mrf.mxu0
  %v1616 = vadd.f32 %v1570, %v1615
  %v1617 = vpop.f32.mrf.mxu0
  %v1618 = vpop.f32.mrf.mxu0
  %v1619 = vpop.f32.mrf.mxu0
  %1620 = vdwg.mxu0
  %s1621 = scalar_lea.vmem %s11, 10
  %v1622 = vld [vmem:[%s1621] sm:$0x1]
  %v1624 = vlaneseq
  %v1625 = vshrl.u32 %v1624, 7
  %v1626 = vsub.s32 0, %v1625
  %v1627 = vrot.slane %v1622, %v1626
  %v1629 = vadd.f32 %v1616, %v1627
  %s1630 = scalar_lea.vmem [#allocation2], 80
  %1631 = vst.msk [vmem:[%s1630] sm:$0xff] %vm143, %v1629
  %v1632 = vmax.f32 %v1509, %v1629
  %s1633 = scalar_lea.vmem %s10, 88
  %v1634 = vld [vmem:[%s1633] sm:$0xf]
  %v1635 = vld [vmem:[%s1633 + $0x4] sm:$0xf]
  %s1636 = scalar_lea.vmem %s1, 44
  %v1637 = vld [vmem:[%s1636] sm:$0xf]
  %s1638 = scalar_lea.vmem %s12, 176
  %v1639 = vld [vmem:[%s1638] sm:$0xf]
  %v1640 = vld [vmem:[%s1638 + $0x4] sm:$0xf]
  %v1641 = vld [vmem:[%s1638 + $0x8] sm:$0xf]
  %v1642 = vld [vmem:[%s1638 + $0xc] sm:$0xf]
  %v1647 = vunpack.c.l.b16 %v1639
  %v1648 = vunpack.c.l.b16 %v1640
  %v1649 = vunpack.c.l.b16 %v1641
  %v1650 = vunpack.c.l.b16 %v1642
  %v1651 = vpack.c.b16 %v1648, %v1647
  %v1652 = vpack.c.b16 %v1650, %v1649
  %v1656 = vsel %vm143, %v1637, 0
  %1658 = vmatprep.subr.bf16.mxu0 0
  %1659 = vmatpush1.bf16.msra.mxu0 0
  %1660 = vmatprep.subr.bf16.mxu0 0
  %1661 = vmatpush1.bf16.msra.mxu0 0
  %1662 = vmatprep.subr.bf16.mxu0 0
  %1663 = vmatpush1.bf16.msra.mxu0 0
  %1664 = vmatprep.subr.bf16.mxu0 0
  %1665 = vmatpush1.bf16.msra.mxu0 0
  %1666 = vmatprep.subr.bf16.mxu0 0
  %1667 = vmatpush1.bf16.msra.mxu0 0
  %1668 = vmatprep.subr.bf16.mxu0 0
  %1669 = vmatpush1.bf16.msra.mxu0 0
  %1670 = vmatprep.subr.bf16.mxu0 0
  %1671 = vmatpush1.bf16.msra.mxu0 %v1652
  %1672 = vmatprep.subr.bf16.mxu0 0
  %1673 = vmatpush1.bf16.msra.mxu0 %v1651
  %1674 = vmatprep.subr.bf16.mxu0 0
  %1675 = vmatpush2.bf16.msra.mxu0 0
  %1676 = vmatprep.subr.bf16.mxu0 0
  %1677 = vmatpush2.bf16.msra.mxu0 0
  %1678 = vmatprep.subr.bf16.mxu0 0
  %1679 = vmatpush2.bf16.msra.mxu0 0
  %1680 = vmatprep.subr.bf16.mxu0 0
  %1681 = vmatpush2.bf16.msra.mxu0 0
  %1682 = vmatprep.subr.bf16.mxu0 0
  %1683 = vmatpush2.bf16.msra.mxu0 0
  %1684 = vmatprep.subr.bf16.mxu0 0
  %1685 = vmatpush2.bf16.msra.mxu0 0
  %1686 = vmatprep.subr.bf16.mxu0 0
  %1687 = vmatpush2.bf16.msra.mxu0 0
  %1688 = vmatprep.subr.bf16.mxu0 0
  %1689 = vmatpush2.bf16.msra.mxu0 0
  %1690 = vmatprep.mubr.bf16.mxu0 0
  %1691 = vmatmul.mubr.bf16.gmra.mxu0 %v1656
  %v1692 = vpop.f32.mrf.mxu0
  %v1693 = vadd.f32 0.0, %v1692
  %v1694 = vpop.f32.mrf.mxu0
  %v1695 = vpop.f32.mrf.mxu0
  %v1696 = vpop.f32.mrf.mxu0
  %1697 = vdwg.mxu0
  %v1700 = vunpack.c.l.b16 %v1634
  %v1701 = vunpack.c.l.b16 %v1635
  %v1702 = vpack.c.b16 %v1701, %v1700
  %1704 = vmatprep.subr.bf16.mxu0 0
  %1705 = vmatpush1.bf16.msra.mxu0 0
  %1706 = vmatprep.subr.bf16.mxu0 0
  %1707 = vmatpush1.bf16.msra.mxu0 0
  %1708 = vmatprep.subr.bf16.mxu0 0
  %1709 = vmatpush1.bf16.msra.mxu0 0
  %1710 = vmatprep.subr.bf16.mxu0 0
  %1711 = vmatpush1.bf16.msra.mxu0 0
  %1712 = vmatprep.subr.bf16.mxu0 0
  %1713 = vmatpush1.bf16.msra.mxu0 0
  %1714 = vmatprep.subr.bf16.mxu0 0
  %1715 = vmatpush1.bf16.msra.mxu0 0
  %1716 = vmatprep.subr.bf16.mxu0 0
  %1717 = vmatpush1.bf16.msra.mxu0 0
  %1718 = vmatprep.subr.bf16.mxu0 0
  %1719 = vmatpush1.bf16.msra.mxu0 %v1702
  %1720 = vmatprep.subr.bf16.mxu0 0
  %1721 = vmatpush2.bf16.msra.mxu0 0
  %1722 = vmatprep.subr.bf16.mxu0 0
  %1723 = vmatpush2.bf16.msra.mxu0 0
  %1724 = vmatprep.subr.bf16.mxu0 0
  %1725 = vmatpush2.bf16.msra.mxu0 0
  %1726 = vmatprep.subr.bf16.mxu0 0
  %1727 = vmatpush2.bf16.msra.mxu0 0
  %1728 = vmatprep.subr.bf16.mxu0 0
  %1729 = vmatpush2.bf16.msra.mxu0 0
  %1730 = vmatprep.subr.bf16.mxu0 0
  %1731 = vmatpush2.bf16.msra.mxu0 0
  %1732 = vmatprep.subr.bf16.mxu0 0
  %1733 = vmatpush2.bf16.msra.mxu0 0
  %1734 = vmatprep.subr.bf16.mxu0 0
  %1735 = vmatpush2.bf16.msra.mxu0 0
  %1736 = vmatprep.mubr.bf16.mxu0 0
  %1737 = vmatmul.mubr.bf16.gmra.mxu0 %v352
  %v1738 = vpop.f32.mrf.mxu0
  %v1739 = vadd.f32 %v1693, %v1738
  %v1740 = vpop.f32.mrf.mxu0
  %v1741 = vpop.f32.mrf.mxu0
  %v1742 = vpop.f32.mrf.mxu0
  %1743 = vdwg.mxu0
  %s1744 = scalar_lea.vmem %s11, 11
  %v1745 = vld [vmem:[%s1744] sm:$0x1]
  %v1747 = vlaneseq
  %v1748 = vshrl.u32 %v1747, 7
  %v1749 = vsub.s32 0, %v1748
  %v1750 = vrot.slane %v1745, %v1749
  %v1752 = vadd.f32 %v1739, %v1750
  %s1753 = scalar_lea.vmem [#allocation2], 88
  %1754 = vst.msk [vmem:[%s1753] sm:$0xff] %vm143, %v1752
  %v1755 = vmax.f32 %v1632, %v1752
  %s1756 = scalar_lea.vmem %s10, 96
  %v1757 = vld [vmem:[%s1756] sm:$0xf]
  %v1758 = vld [vmem:[%s1756 + $0x4] sm:$0xf]
  %s1759 = scalar_lea.vmem %s1, 48
  %v1760 = vld [vmem:[%s1759] sm:$0xf]
  %s1761 = scalar_lea.vmem %s12, 192
  %v1762 = vld [vmem:[%s1761] sm:$0xf]
  %v1763 = vld [vmem:[%s1761 + $0x4] sm:$0xf]
  %v1764 = vld [vmem:[%s1761 + $0x8] sm:$0xf]
  %v1765 = vld [vmem:[%s1761 + $0xc] sm:$0xf]
  %v1770 = vunpack.c.l.b16 %v1762
  %v1771 = vunpack.c.l.b16 %v1763
  %v1772 = vunpack.c.l.b16 %v1764
  %v1773 = vunpack.c.l.b16 %v1765
  %v1774 = vpack.c.b16 %v1771, %v1770
  %v1775 = vpack.c.b16 %v1773, %v1772
  %v1779 = vsel %vm143, %v1760, 0
  %1781 = vmatprep.subr.bf16.mxu0 0
  %1782 = vmatpush1.bf16.msra.mxu0 0
  %1783 = vmatprep.subr.bf16.mxu0 0
  %1784 = vmatpush1.bf16.msra.mxu0 0
  %1785 = vmatprep.subr.bf16.mxu0 0
  %1786 = vmatpush1.bf16.msra.mxu0 0
  %1787 = vmatprep.subr.bf16.mxu0 0
  %1788 = vmatpush1.bf16.msra.mxu0 0
  %1789 = vmatprep.subr.bf16.mxu0 0
  %1790 = vmatpush1.bf16.msra.mxu0 0
  %1791 = vmatprep.subr.bf16.mxu0 0
  %1792 = vmatpush1.bf16.msra.mxu0 0
  %1793 = vmatprep.subr.bf16.mxu0 0
  %1794 = vmatpush1.bf16.msra.mxu0 %v1775
  %1795 = vmatprep.subr.bf16.mxu0 0
  %1796 = vmatpush1.bf16.msra.mxu0 %v1774
  %1797 = vmatprep.subr.bf16.mxu0 0
  %1798 = vmatpush2.bf16.msra.mxu0 0
  %1799 = vmatprep.subr.bf16.mxu0 0
  %1800 = vmatpush2.bf16.msra.mxu0 0
  %1801 = vmatprep.subr.bf16.mxu0 0
  %1802 = vmatpush2.bf16.msra.mxu0 0
  %1803 = vmatprep.subr.bf16.mxu0 0
  %1804 = vmatpush2.bf16.msra.mxu0 0
  %1805 = vmatprep.subr.bf16.mxu0 0
  %1806 = vmatpush2.bf16.msra.mxu0 0
  %1807 = vmatprep.subr.bf16.mxu0 0
  %1808 = vmatpush2.bf16.msra.mxu0 0
  %1809 = vmatprep.subr.bf16.mxu0 0
  %1810 = vmatpush2.bf16.msra.mxu0 0
  %1811 = vmatprep.subr.bf16.mxu0 0
  %1812 = vmatpush2.bf16.msra.mxu0 0
  %1813 = vmatprep.mubr.bf16.mxu0 0
  %1814 = vmatmul.mubr.bf16.gmra.mxu0 %v1779
  %v1815 = vpop.f32.mrf.mxu0
  %v1816 = vadd.f32 0.0, %v1815
  %v1817 = vpop.f32.mrf.mxu0
  %v1818 = vpop.f32.mrf.mxu0
  %v1819 = vpop.f32.mrf.mxu0
  %1820 = vdwg.mxu0
  %v1823 = vunpack.c.l.b16 %v1757
  %v1824 = vunpack.c.l.b16 %v1758
  %v1825 = vpack.c.b16 %v1824, %v1823
  %1827 = vmatprep.subr.bf16.mxu0 0
  %1828 = vmatpush1.bf16.msra.mxu0 0
  %1829 = vmatprep.subr.bf16.mxu0 0
  %1830 = vmatpush1.bf16.msra.mxu0 0
  %1831 = vmatprep.subr.bf16.mxu0 0
  %1832 = vmatpush1.bf16.msra.mxu0 0
  %1833 = vmatprep.subr.bf16.mxu0 0
  %1834 = vmatpush1.bf16.msra.mxu0 0
  %1835 = vmatprep.subr.bf16.mxu0 0
  %1836 = vmatpush1.bf16.msra.mxu0 0
  %1837 = vmatprep.subr.bf16.mxu0 0
  %1838 = vmatpush1.bf16.msra.mxu0 0
  %1839 = vmatprep.subr.bf16.mxu0 0
  %1840 = vmatpush1.bf16.msra.mxu0 0
  %1841 = vmatprep.subr.bf16.mxu0 0
  %1842 = vmatpush1.bf16.msra.mxu0 %v1825
  %1843 = vmatprep.subr.bf16.mxu0 0
  %1844 = vmatpush2.bf16.msra.mxu0 0
  %1845 = vmatprep.subr.bf16.mxu0 0
  %1846 = vmatpush2.bf16.msra.mxu0 0
  %1847 = vmatprep.subr.bf16.mxu0 0
  %1848 = vmatpush2.bf16.msra.mxu0 0
  %1849 = vmatprep.subr.bf16.mxu0 0
  %1850 = vmatpush2.bf16.msra.mxu0 0
  %1851 = vmatprep.subr.bf16.mxu0 0
  %1852 = vmatpush2.bf16.msra.mxu0 0
  %1853 = vmatprep.subr.bf16.mxu0 0
  %1854 = vmatpush2.bf16.msra.mxu0 0
  %1855 = vmatprep.subr.bf16.mxu0 0
  %1856 = vmatpush2.bf16.msra.mxu0 0
  %1857 = vmatprep.subr.bf16.mxu0 0
  %1858 = vmatpush2.bf16.msra.mxu0 0
  %1859 = vmatprep.mubr.bf16.mxu0 0
  %1860 = vmatmul.mubr.bf16.gmra.mxu0 %v352
  %v1861 = vpop.f32.mrf.mxu0
  %v1862 = vadd.f32 %v1816, %v1861
  %v1863 = vpop.f32.mrf.mxu0
  %v1864 = vpop.f32.mrf.mxu0
  %v1865 = vpop.f32.mrf.mxu0
  %1866 = vdwg.mxu0
  %s1867 = scalar_lea.vmem %s11, 12
  %v1868 = vld [vmem:[%s1867] sm:$0x1]
  %v1870 = vlaneseq
  %v1871 = vshrl.u32 %v1870, 7
  %v1872 = vsub.s32 0, %v1871
  %v1873 = vrot.slane %v1868, %v1872
  %v1875 = vadd.f32 %v1862, %v1873
  %s1876 = scalar_lea.vmem [#allocation2], 96
  %1877 = vst.msk [vmem:[%s1876] sm:$0xff] %vm143, %v1875
  %v1878 = vmax.f32 %v1755, %v1875
  %s1879 = scalar_lea.vmem %s10, 104
  %v1880 = vld [vmem:[%s1879] sm:$0xf]
  %v1881 = vld [vmem:[%s1879 + $0x4] sm:$0xf]
  %s1882 = scalar_lea.vmem %s1, 52
  %v1883 = vld [vmem:[%s1882] sm:$0xf]
  %s1884 = scalar_lea.vmem %s12, 208
  %v1885 = vld [vmem:[%s1884] sm:$0xf]
  %v1886 = vld [vmem:[%s1884 + $0x4] sm:$0xf]
  %v1887 = vld [vmem:[%s1884 + $0x8] sm:$0xf]
  %v1888 = vld [vmem:[%s1884 + $0xc] sm:$0xf]
  %v1893 = vunpack.c.l.b16 %v1885
  %v1894 = vunpack.c.l.b16 %v1886
  %v1895 = vunpack.c.l.b16 %v1887
  %v1896 = vunpack.c.l.b16 %v1888
  %v1897 = vpack.c.b16 %v1894, %v1893
  %v1898 = vpack.c.b16 %v1896, %v1895
  %v1902 = vsel %vm143, %v1883, 0
  %1904 = vmatprep.subr.bf16.mxu0 0
  %1905 = vmatpush1.bf16.msra.mxu0 0
  %1906 = vmatprep.subr.bf16.mxu0 0
  %1907 = vmatpush1.bf16.msra.mxu0 0
  %1908 = vmatprep.subr.bf16.mxu0 0
  %1909 = vmatpush1.bf16.msra.mxu0 0
  %1910 = vmatprep.subr.bf16.mxu0 0
  %1911 = vmatpush1.bf16.msra.mxu0 0
  %1912 = vmatprep.subr.bf16.mxu0 0
  %1913 = vmatpush1.bf16.msra.mxu0 0
  %1914 = vmatprep.subr.bf16.mxu0 0
  %1915 = vmatpush1.bf16.msra.mxu0 0
  %1916 = vmatprep.subr.bf16.mxu0 0
  %1917 = vmatpush1.bf16.msra.mxu0 %v1898
  %1918 = vmatprep.subr.bf16.mxu0 0
  %1919 = vmatpush1.bf16.msra.mxu0 %v1897
  %1920 = vmatprep.subr.bf16.mxu0 0
  %1921 = vmatpush2.bf16.msra.mxu0 0
  %1922 = vmatprep.subr.bf16.mxu0 0
  %1923 = vmatpush2.bf16.msra.mxu0 0
  %1924 = vmatprep.subr.bf16.mxu0 0
  %1925 = vmatpush2.bf16.msra.mxu0 0
  %1926 = vmatprep.subr.bf16.mxu0 0
  %1927 = vmatpush2.bf16.msra.mxu0 0
  %1928 = vmatprep.subr.bf16.mxu0 0
  %1929 = vmatpush2.bf16.msra.mxu0 0
  %1930 = vmatprep.subr.bf16.mxu0 0
  %1931 = vmatpush2.bf16.msra.mxu0 0
  %1932 = vmatprep.subr.bf16.mxu0 0
  %1933 = vmatpush2.bf16.msra.mxu0 0
  %1934 = vmatprep.subr.bf16.mxu0 0
  %1935 = vmatpush2.bf16.msra.mxu0 0
  %1936 = vmatprep.mubr.bf16.mxu0 0
  %1937 = vmatmul.mubr.bf16.gmra.mxu0 %v1902
  %v1938 = vpop.f32.mrf.mxu0
  %v1939 = vadd.f32 0.0, %v1938
  %v1940 = vpop.f32.mrf.mxu0
  %v1941 = vpop.f32.mrf.mxu0
  %v1942 = vpop.f32.mrf.mxu0
  %1943 = vdwg.mxu0
  %v1946 = vunpack.c.l.b16 %v1880
  %v1947 = vunpack.c.l.b16 %v1881
  %v1948 = vpack.c.b16 %v1947, %v1946
  %1950 = vmatprep.subr.bf16.mxu0 0
  %1951 = vmatpush1.bf16.msra.mxu0 0
  %1952 = vmatprep.subr.bf16.mxu0 0
  %1953 = vmatpush1.bf16.msra.mxu0 0
  %1954 = vmatprep.subr.bf16.mxu0 0
  %1955 = vmatpush1.bf16.msra.mxu0 0
  %1956 = vmatprep.subr.bf16.mxu0 0
  %1957 = vmatpush1.bf16.msra.mxu0 0
  %1958 = vmatprep.subr.bf16.mxu0 0
  %1959 = vmatpush1.bf16.msra.mxu0 0
  %1960 = vmatprep.subr.bf16.mxu0 0
  %1961 = vmatpush1.bf16.msra.mxu0 0
  %1962 = vmatprep.subr.bf16.mxu0 0
  %1963 = vmatpush1.bf16.msra.mxu0 0
  %1964 = vmatprep.subr.bf16.mxu0 0
  %1965 = vmatpush1.bf16.msra.mxu0 %v1948
  %1966 = vmatprep.subr.bf16.mxu0 0
  %1967 = vmatpush2.bf16.msra.mxu0 0
  %1968 = vmatprep.subr.bf16.mxu0 0
  %1969 = vmatpush2.bf16.msra.mxu0 0
  %1970 = vmatprep.subr.bf16.mxu0 0
  %1971 = vmatpush2.bf16.msra.mxu0 0
  %1972 = vmatprep.subr.bf16.mxu0 0
  %1973 = vmatpush2.bf16.msra.mxu0 0
  %1974 = vmatprep.subr.bf16.mxu0 0
  %1975 = vmatpush2.bf16.msra.mxu0 0
  %1976 = vmatprep.subr.bf16.mxu0 0
  %1977 = vmatpush2.bf16.msra.mxu0 0
  %1978 = vmatprep.subr.bf16.mxu0 0
  %1979 = vmatpush2.bf16.msra.mxu0 0
  %1980 = vmatprep.subr.bf16.mxu0 0
  %1981 = vmatpush2.bf16.msra.mxu0 0
  %1982 = vmatprep.mubr.bf16.mxu0 0
  %1983 = vmatmul.mubr.bf16.gmra.mxu0 %v352
  %v1984 = vpop.f32.mrf.mxu0
  %v1985 = vadd.f32 %v1939, %v1984
  %v1986 = vpop.f32.mrf.mxu0
  %v1987 = vpop.f32.mrf.mxu0
  %v1988 = vpop.f32.mrf.mxu0
  %1989 = vdwg.mxu0
  %s1990 = scalar_lea.vmem %s11, 13
  %v1991 = vld [vmem:[%s1990] sm:$0x1]
  %v1993 = vlaneseq
  %v1994 = vshrl.u32 %v1993, 7
  %v1995 = vsub.s32 0, %v1994
  %v1996 = vrot.slane %v1991, %v1995
  %v1998 = vadd.f32 %v1985, %v1996
  %s1999 = scalar_lea.vmem [#allocation2], 104
  %2000 = vst.msk [vmem:[%s1999] sm:$0xff] %vm143, %v1998
  %v2001 = vmax.f32 %v1878, %v1998
  %s2002 = scalar_lea.vmem %s10, 112
  %v2003 = vld [vmem:[%s2002] sm:$0xf]
  %v2004 = vld [vmem:[%s2002 + $0x4] sm:$0xf]
  %s2005 = scalar_lea.vmem %s1, 56
  %v2006 = vld [vmem:[%s2005] sm:$0xf]
  %s2007 = scalar_lea.vmem %s12, 224
  %v2008 = vld [vmem:[%s2007] sm:$0xf]
  %v2009 = vld [vmem:[%s2007 + $0x4] sm:$0xf]
  %v2010 = vld [vmem:[%s2007 + $0x8] sm:$0xf]
  %v2011 = vld [vmem:[%s2007 + $0xc] sm:$0xf]
  %v2016 = vunpack.c.l.b16 %v2008
  %v2017 = vunpack.c.l.b16 %v2009
  %v2018 = vunpack.c.l.b16 %v2010
  %v2019 = vunpack.c.l.b16 %v2011
  %v2020 = vpack.c.b16 %v2017, %v2016
  %v2021 = vpack.c.b16 %v2019, %v2018
  %v2025 = vsel %vm143, %v2006, 0
  %2027 = vmatprep.subr.bf16.mxu0 0
  %2028 = vmatpush1.bf16.msra.mxu0 0
  %2029 = vmatprep.subr.bf16.mxu0 0
  %2030 = vmatpush1.bf16.msra.mxu0 0
  %2031 = vmatprep.subr.bf16.mxu0 0
  %2032 = vmatpush1.bf16.msra.mxu0 0
  %2033 = vmatprep.subr.bf16.mxu0 0
  %2034 = vmatpush1.bf16.msra.mxu0 0
  %2035 = vmatprep.subr.bf16.mxu0 0
  %2036 = vmatpush1.bf16.msra.mxu0 0
  %2037 = vmatprep.subr.bf16.mxu0 0
  %2038 = vmatpush1.bf16.msra.mxu0 0
  %2039 = vmatprep.subr.bf16.mxu0 0
  %2040 = vmatpush1.bf16.msra.mxu0 %v2021
  %2041 = vmatprep.subr.bf16.mxu0 0
  %2042 = vmatpush1.bf16.msra.mxu0 %v2020
  %2043 = vmatprep.subr.bf16.mxu0 0
  %2044 = vmatpush2.bf16.msra.mxu0 0
  %2045 = vmatprep.subr.bf16.mxu0 0
  %2046 = vmatpush2.bf16.msra.mxu0 0
  %2047 = vmatprep.subr.bf16.mxu0 0
  %2048 = vmatpush2.bf16.msra.mxu0 0
  %2049 = vmatprep.subr.bf16.mxu0 0
  %2050 = vmatpush2.bf16.msra.mxu0 0
  %2051 = vmatprep.subr.bf16.mxu0 0
  %2052 = vmatpush2.bf16.msra.mxu0 0
  %2053 = vmatprep.subr.bf16.mxu0 0
  %2054 = vmatpush2.bf16.msra.mxu0 0
  %2055 = vmatprep.subr.bf16.mxu0 0
  %2056 = vmatpush2.bf16.msra.mxu0 0
  %2057 = vmatprep.subr.bf16.mxu0 0
  %2058 = vmatpush2.bf16.msra.mxu0 0
  %2059 = vmatprep.mubr.bf16.mxu0 0
  %2060 = vmatmul.mubr.bf16.gmra.mxu0 %v2025
  %v2061 = vpop.f32.mrf.mxu0
  %v2062 = vadd.f32 0.0, %v2061
  %v2063 = vpop.f32.mrf.mxu0
  %v2064 = vpop.f32.mrf.mxu0
  %v2065 = vpop.f32.mrf.mxu0
  %2066 = vdwg.mxu0
  %v2069 = vunpack.c.l.b16 %v2003
  %v2070 = vunpack.c.l.b16 %v2004
  %v2071 = vpack.c.b16 %v2070, %v2069
  %2073 = vmatprep.subr.bf16.mxu0 0
  %2074 = vmatpush1.bf16.msra.mxu0 0
  %2075 = vmatprep.subr.bf16.mxu0 0
  %2076 = vmatpush1.bf16.msra.mxu0 0
  %2077 = vmatprep.subr.bf16.mxu0 0
  %2078 = vmatpush1.bf16.msra.mxu0 0
  %2079 = vmatprep.subr.bf16.mxu0 0
  %2080 = vmatpush1.bf16.msra.mxu0 0
  %2081 = vmatprep.subr.bf16.mxu0 0
  %2082 = vmatpush1.bf16.msra.mxu0 0
  %2083 = vmatprep.subr.bf16.mxu0 0
  %2084 = vmatpush1.bf16.msra.mxu0 0
  %2085 = vmatprep.subr.bf16.mxu0 0
  %2086 = vmatpush1.bf16.msra.mxu0 0
  %2087 = vmatprep.subr.bf16.mxu0 0
  %2088 = vmatpush1.bf16.msra.mxu0 %v2071
  %2089 = vmatprep.subr.bf16.mxu0 0
  %2090 = vmatpush2.bf16.msra.mxu0 0
  %2091 = vmatprep.subr.bf16.mxu0 0
  %2092 = vmatpush2.bf16.msra.mxu0 0
  %2093 = vmatprep.subr.bf16.mxu0 0
  %2094 = vmatpush2.bf16.msra.mxu0 0
  %2095 = vmatprep.subr.bf16.mxu0 0
  %2096 = vmatpush2.bf16.msra.mxu0 0
  %2097 = vmatprep.subr.bf16.mxu0 0
  %2098 = vmatpush2.bf16.msra.mxu0 0
  %2099 = vmatprep.subr.bf16.mxu0 0
  %2100 = vmatpush2.bf16.msra.mxu0 0
  %2101 = vmatprep.subr.bf16.mxu0 0
  %2102 = vmatpush2.bf16.msra.mxu0 0
  %2103 = vmatprep.subr.bf16.mxu0 0
  %2104 = vmatpush2.bf16.msra.mxu0 0
  %2105 = vmatprep.mubr.bf16.mxu0 0
  %2106 = vmatmul.mubr.bf16.gmra.mxu0 %v352
  %v2107 = vpop.f32.mrf.mxu0
  %v2108 = vadd.f32 %v2062, %v2107
  %v2109 = vpop.f32.mrf.mxu0
  %v2110 = vpop.f32.mrf.mxu0
  %v2111 = vpop.f32.mrf.mxu0
  %2112 = vdwg.mxu0
  %s2113 = scalar_lea.vmem %s11, 14
  %v2114 = vld [vmem:[%s2113] sm:$0x1]
  %v2116 = vlaneseq
  %v2117 = vshrl.u32 %v2116, 7
  %v2118 = vsub.s32 0, %v2117
  %v2119 = vrot.slane %v2114, %v2118
  %v2121 = vadd.f32 %v2108, %v2119
  %s2122 = scalar_lea.vmem [#allocation2], 112
  %2123 = vst.msk [vmem:[%s2122] sm:$0xff] %vm143, %v2121
  %v2124 = vmax.f32 %v2001, %v2121
  %s2125 = scalar_lea.vmem %s10, 120
  %v2126 = vld [vmem:[%s2125] sm:$0xf]
  %v2127 = vld [vmem:[%s2125 + $0x4] sm:$0xf]
  %s2128 = scalar_lea.vmem %s1, 60
  %v2129 = vld [vmem:[%s2128] sm:$0xf]
  %s2130 = scalar_lea.vmem %s12, 240
  %v2131 = vld [vmem:[%s2130] sm:$0xf]
  %v2132 = vld [vmem:[%s2130 + $0x4] sm:$0xf]
  %v2133 = vld [vmem:[%s2130 + $0x8] sm:$0xf]
  %v2134 = vld [vmem:[%s2130 + $0xc] sm:$0xf]
  %v2139 = vunpack.c.l.b16 %v2131
  %v2140 = vunpack.c.l.b16 %v2132
  %v2141 = vunpack.c.l.b16 %v2133
  %v2142 = vunpack.c.l.b16 %v2134
  %v2143 = vpack.c.b16 %v2140, %v2139
  %v2144 = vpack.c.b16 %v2142, %v2141
  %v2148 = vsel %vm143, %v2129, 0
  %2150 = vmatprep.subr.bf16.mxu0 0
  %2151 = vmatpush1.bf16.msra.mxu0 0
  %2152 = vmatprep.subr.bf16.mxu0 0
  %2153 = vmatpush1.bf16.msra.mxu0 0
  %2154 = vmatprep.subr.bf16.mxu0 0
  %2155 = vmatpush1.bf16.msra.mxu0 0
  %2156 = vmatprep.subr.bf16.mxu0 0
  %2157 = vmatpush1.bf16.msra.mxu0 0
  %2158 = vmatprep.subr.bf16.mxu0 0
  %2159 = vmatpush1.bf16.msra.mxu0 0
  %2160 = vmatprep.subr.bf16.mxu0 0
  %2161 = vmatpush1.bf16.msra.mxu0 0
  %2162 = vmatprep.subr.bf16.mxu0 0
  %2163 = vmatpush1.bf16.msra.mxu0 %v2144
  %2164 = vmatprep.subr.bf16.mxu0 0
  %2165 = vmatpush1.bf16.msra.mxu0 %v2143
  %2166 = vmatprep.subr.bf16.mxu0 0
  %2167 = vmatpush2.bf16.msra.mxu0 0
  %2168 = vmatprep.subr.bf16.mxu0 0
  %2169 = vmatpush2.bf16.msra.mxu0 0
  %2170 = vmatprep.subr.bf16.mxu0 0
  %2171 = vmatpush2.bf16.msra.mxu0 0
  %2172 = vmatprep.subr.bf16.mxu0 0
  %2173 = vmatpush2.bf16.msra.mxu0 0
  %2174 = vmatprep.subr.bf16.mxu0 0
  %2175 = vmatpush2.bf16.msra.mxu0 0
  %2176 = vmatprep.subr.bf16.mxu0 0
  %2177 = vmatpush2.bf16.msra.mxu0 0
  %2178 = vmatprep.subr.bf16.mxu0 0
  %2179 = vmatpush2.bf16.msra.mxu0 0
  %2180 = vmatprep.subr.bf16.mxu0 0
  %2181 = vmatpush2.bf16.msra.mxu0 0
  %2182 = vmatprep.mubr.bf16.mxu0 0
  %2183 = vmatmul.mubr.bf16.gmra.mxu0 %v2148
  %v2184 = vpop.f32.mrf.mxu0
  %v2185 = vadd.f32 0.0, %v2184
  %v2186 = vpop.f32.mrf.mxu0
  %v2187 = vpop.f32.mrf.mxu0
  %v2188 = vpop.f32.mrf.mxu0
  %2189 = vdwg.mxu0
  %v2192 = vunpack.c.l.b16 %v2126
  %v2193 = vunpack.c.l.b16 %v2127
  %v2194 = vpack.c.b16 %v2193, %v2192
  %2196 = vmatprep.subr.bf16.mxu0 0
  %2197 = vmatpush1.bf16.msra.mxu0 0
  %2198 = vmatprep.subr.bf16.mxu0 0
  %2199 = vmatpush1.bf16.msra.mxu0 0
  %2200 = vmatprep.subr.bf16.mxu0 0
  %2201 = vmatpush1.bf16.msra.mxu0 0
  %2202 = vmatprep.subr.bf16.mxu0 0
  %2203 = vmatpush1.bf16.msra.mxu0 0
  %2204 = vmatprep.subr.bf16.mxu0 0
  %2205 = vmatpush1.bf16.msra.mxu0 0
  %2206 = vmatprep.subr.bf16.mxu0 0
  %2207 = vmatpush1.bf16.msra.mxu0 0
  %2208 = vmatprep.subr.bf16.mxu0 0
  %2209 = vmatpush1.bf16.msra.mxu0 0
  %2210 = vmatprep.subr.bf16.mxu0 0
  %2211 = vmatpush1.bf16.msra.mxu0 %v2194
  %2212 = vmatprep.subr.bf16.mxu0 0
  %2213 = vmatpush2.bf16.msra.mxu0 0
  %2214 = vmatprep.subr.bf16.mxu0 0
  %2215 = vmatpush2.bf16.msra.mxu0 0
  %2216 = vmatprep.subr.bf16.mxu0 0
  %2217 = vmatpush2.bf16.msra.mxu0 0
  %2218 = vmatprep.subr.bf16.mxu0 0
  %2219 = vmatpush2.bf16.msra.mxu0 0
  %2220 = vmatprep.subr.bf16.mxu0 0
  %2221 = vmatpush2.bf16.msra.mxu0 0
  %2222 = vmatprep.subr.bf16.mxu0 0
  %2223 = vmatpush2.bf16.msra.mxu0 0
  %2224 = vmatprep.subr.bf16.mxu0 0
  %2225 = vmatpush2.bf16.msra.mxu0 0
  %2226 = vmatprep.subr.bf16.mxu0 0
  %2227 = vmatpush2.bf16.msra.mxu0 0
  %2228 = vmatprep.mubr.bf16.mxu0 0
  %2229 = vmatmul.mubr.bf16.gmra.mxu0 %v352
  %v2230 = vpop.f32.mrf.mxu0
  %v2231 = vadd.f32 %v2185, %v2230
  %v2232 = vpop.f32.mrf.mxu0
  %v2233 = vpop.f32.mrf.mxu0
  %v2234 = vpop.f32.mrf.mxu0
  %2235 = vdwg.mxu0
  %s2236 = scalar_lea.vmem %s11, 15
  %v2237 = vld [vmem:[%s2236] sm:$0x1]
  %v2239 = vlaneseq
  %v2240 = vshrl.u32 %v2239, 7
  %v2241 = vsub.s32 0, %v2240
  %v2242 = vrot.slane %v2237, %v2241
  %v2244 = vadd.f32 %v2231, %v2242
  %s2245 = scalar_lea.vmem [#allocation2], 120
  %2246 = vst.msk [vmem:[%s2245] sm:$0xff] %vm143, %v2244
  %v2247 = vmax.f32 %v2124, %v2244
  %s2248 = scalar_lea.vmem %s10, 128
  %v2249 = vld [vmem:[%s2248] sm:$0xf]
  %v2250 = vld [vmem:[%s2248 + $0x4] sm:$0xf]
  %s2251 = scalar_lea.vmem %s1, 64
  %v2252 = vld [vmem:[%s2251] sm:$0xf]
  %s2253 = scalar_lea.vmem %s12, 256
  %v2254 = vld [vmem:[%s2253] sm:$0xf]
  %v2255 = vld [vmem:[%s2253 + $0x4] sm:$0xf]
  %v2256 = vld [vmem:[%s2253 + $0x8] sm:$0xf]
  %v2257 = vld [vmem:[%s2253 + $0xc] sm:$0xf]
  %v2262 = vunpack.c.l.b16 %v2254
  %v2263 = vunpack.c.l.b16 %v2255
  %v2264 = vunpack.c.l.b16 %v2256
  %v2265 = vunpack.c.l.b16 %v2257
  %v2266 = vpack.c.b16 %v2263, %v2262
  %v2267 = vpack.c.b16 %v2265, %v2264
  %v2271 = vsel %vm143, %v2252, 0
  %2273 = vmatprep.subr.bf16.mxu0 0
  %2274 = vmatpush1.bf16.msra.mxu0 0
  %2275 = vmatprep.subr.bf16.mxu0 0
  %2276 = vmatpush1.bf16.msra.mxu0 0
  %2277 = vmatprep.subr.bf16.mxu0 0
  %2278 = vmatpush1.bf16.msra.mxu0 0
  %2279 = vmatprep.subr.bf16.mxu0 0
  %2280 = vmatpush1.bf16.msra.mxu0 0
  %2281 = vmatprep.subr.bf16.mxu0 0
  %2282 = vmatpush1.bf16.msra.mxu0 0
  %2283 = vmatprep.subr.bf16.mxu0 0
  %2284 = vmatpush1.bf16.msra.mxu0 0
  %2285 = vmatprep.subr.bf16.mxu0 0
  %2286 = vmatpush1.bf16.msra.mxu0 %v2267
  %2287 = vmatprep.subr.bf16.mxu0 0
  %2288 = vmatpush1.bf16.msra.mxu0 %v2266
  %2289 = vmatprep.subr.bf16.mxu0 0
  %2290 = vmatpush2.bf16.msra.mxu0 0
  %2291 = vmatprep.subr.bf16.mxu0 0
  %2292 = vmatpush2.bf16.msra.mxu0 0
  %2293 = vmatprep.subr.bf16.mxu0 0
  %2294 = vmatpush2.bf16.msra.mxu0 0
  %2295 = vmatprep.subr.bf16.mxu0 0
  %2296 = vmatpush2.bf16.msra.mxu0 0
  %2297 = vmatprep.subr.bf16.mxu0 0
  %2298 = vmatpush2.bf16.msra.mxu0 0
  %2299 = vmatprep.subr.bf16.mxu0 0
  %2300 = vmatpush2.bf16.msra.mxu0 0
  %2301 = vmatprep.subr.bf16.mxu0 0
  %2302 = vmatpush2.bf16.msra.mxu0 0
  %2303 = vmatprep.subr.bf16.mxu0 0
  %2304 = vmatpush2.bf16.msra.mxu0 0
  %2305 = vmatprep.mubr.bf16.mxu0 0
  %2306 = vmatmul.mubr.bf16.gmra.mxu0 %v2271
  %v2307 = vpop.f32.mrf.mxu0
  %v2308 = vadd.f32 0.0, %v2307
  %v2309 = vpop.f32.mrf.mxu0
  %v2310 = vpop.f32.mrf.mxu0
  %v2311 = vpop.f32.mrf.mxu0
  %2312 = vdwg.mxu0
  %v2315 = vunpack.c.l.b16 %v2249
  %v2316 = vunpack.c.l.b16 %v2250
  %v2317 = vpack.c.b16 %v2316, %v2315
  %2319 = vmatprep.subr.bf16.mxu0 0
  %2320 = vmatpush1.bf16.msra.mxu0 0
  %2321 = vmatprep.subr.bf16.mxu0 0
  %2322 = vmatpush1.bf16.msra.mxu0 0
  %2323 = vmatprep.subr.bf16.mxu0 0
  %2324 = vmatpush1.bf16.msra.mxu0 0
  %2325 = vmatprep.subr.bf16.mxu0 0
  %2326 = vmatpush1.bf16.msra.mxu0 0
  %2327 = vmatprep.subr.bf16.mxu0 0
  %2328 = vmatpush1.bf16.msra.mxu0 0
  %2329 = vmatprep.subr.bf16.mxu0 0
  %2330 = vmatpush1.bf16.msra.mxu0 0
  %2331 = vmatprep.subr.bf16.mxu0 0
  %2332 = vmatpush1.bf16.msra.mxu0 0
  %2333 = vmatprep.subr.bf16.mxu0 0
  %2334 = vmatpush1.bf16.msra.mxu0 %v2317
  %2335 = vmatprep.subr.bf16.mxu0 0
  %2336 = vmatpush2.bf16.msra.mxu0 0
  %2337 = vmatprep.subr.bf16.mxu0 0
  %2338 = vmatpush2.bf16.msra.mxu0 0
  %2339 = vmatprep.subr.bf16.mxu0 0
  %2340 = vmatpush2.bf16.msra.mxu0 0
  %2341 = vmatprep.subr.bf16.mxu0 0
  %2342 = vmatpush2.bf16.msra.mxu0 0
  %2343 = vmatprep.subr.bf16.mxu0 0
  %2344 = vmatpush2.bf16.msra.mxu0 0
  %2345 = vmatprep.subr.bf16.mxu0 0
  %2346 = vmatpush2.bf16.msra.mxu0 0
  %2347 = vmatprep.subr.bf16.mxu0 0
  %2348 = vmatpush2.bf16.msra.mxu0 0
  %2349 = vmatprep.subr.bf16.mxu0 0
  %2350 = vmatpush2.bf16.msra.mxu0 0
  %2351 = vmatprep.mubr.bf16.mxu0 0
  %2352 = vmatmul.mubr.bf16.gmra.mxu0 %v352
  %v2353 = vpop.f32.mrf.mxu0
  %v2354 = vadd.f32 %v2308, %v2353
  %v2355 = vpop.f32.mrf.mxu0
  %v2356 = vpop.f32.mrf.mxu0
  %v2357 = vpop.f32.mrf.mxu0
  %2358 = vdwg.mxu0
  %s2359 = scalar_lea.vmem %s11, 16
  %v2360 = vld [vmem:[%s2359] sm:$0x1]
  %v2362 = vlaneseq
  %v2363 = vshrl.u32 %v2362, 7
  %v2364 = vsub.s32 0, %v2363
  %v2365 = vrot.slane %v2360, %v2364
  %v2367 = vadd.f32 %v2354, %v2365
  %s2368 = scalar_lea.vmem [#allocation2], 128
  %2369 = vst.msk [vmem:[%s2368] sm:$0xff] %vm143, %v2367
  %v2370 = vmax.f32 %v2247, %v2367
  %s2371 = scalar_lea.vmem %s10, 136
  %v2372 = vld [vmem:[%s2371] sm:$0xf]
  %v2373 = vld [vmem:[%s2371 + $0x4] sm:$0xf]
  %s2374 = scalar_lea.vmem %s1, 68
  %v2375 = vld [vmem:[%s2374] sm:$0xf]
  %s2376 = scalar_lea.vmem %s12, 272
  %v2377 = vld [vmem:[%s2376] sm:$0xf]
  %v2378 = vld [vmem:[%s2376 + $0x4] sm:$0xf]
  %v2379 = vld [vmem:[%s2376 + $0x8] sm:$0xf]
  %v2380 = vld [vmem:[%s2376 + $0xc] sm:$0xf]
  %v2385 = vunpack.c.l.b16 %v2377
  %v2386 = vunpack.c.l.b16 %v2378
  %v2387 = vunpack.c.l.b16 %v2379
  %v2388 = vunpack.c.l.b16 %v2380
  %v2389 = vpack.c.b16 %v2386, %v2385
  %v2390 = vpack.c.b16 %v2388, %v2387
  %v2394 = vsel %vm143, %v2375, 0
  %2396 = vmatprep.subr.bf16.mxu0 0
  %2397 = vmatpush1.bf16.msra.mxu0 0
  %2398 = vmatprep.subr.bf16.mxu0 0
  %2399 = vmatpush1.bf16.msra.mxu0 0
  %2400 = vmatprep.subr.bf16.mxu0 0
  %2401 = vmatpush1.bf16.msra.mxu0 0
  %2402 = vmatprep.subr.bf16.mxu0 0
  %2403 = vmatpush1.bf16.msra.mxu0 0
  %2404 = vmatprep.subr.bf16.mxu0 0
  %2405 = vmatpush1.bf16.msra.mxu0 0
  %2406 = vmatprep.subr.bf16.mxu0 0
  %2407 = vmatpush1.bf16.msra.mxu0 0
  %2408 = vmatprep.subr.bf16.mxu0 0
  %2409 = vmatpush1.bf16.msra.mxu0 %v2390
  %2410 = vmatprep.subr.bf16.mxu0 0
  %2411 = vmatpush1.bf16.msra.mxu0 %v2389
  %2412 = vmatprep.subr.bf16.mxu0 0
  %2413 = vmatpush2.bf16.msra.mxu0 0
  %2414 = vmatprep.subr.bf16.mxu0 0
  %2415 = vmatpush2.bf16.msra.mxu0 0
  %2416 = vmatprep.subr.bf16.mxu0 0
  %2417 = vmatpush2.bf16.msra.mxu0 0
  %2418 = vmatprep.subr.bf16.mxu0 0
  %2419 = vmatpush2.bf16.msra.mxu0 0
  %2420 = vmatprep.subr.bf16.mxu0 0
  %2421 = vmatpush2.bf16.msra.mxu0 0
  %2422 = vmatprep.subr.bf16.mxu0 0
  %2423 = vmatpush2.bf16.msra.mxu0 0
  %2424 = vmatprep.subr.bf16.mxu0 0
  %2425 = vmatpush2.bf16.msra.mxu0 0
  %2426 = vmatprep.subr.bf16.mxu0 0
  %2427 = vmatpush2.bf16.msra.mxu0 0
  %2428 = vmatprep.mubr.bf16.mxu0 0
  %2429 = vmatmul.mubr.bf16.gmra.mxu0 %v2394
  %v2430 = vpop.f32.mrf.mxu0
  %v2431 = vadd.f32 0.0, %v2430
  %v2432 = vpop.f32.mrf.mxu0
  %v2433 = vpop.f32.mrf.mxu0
  %v2434 = vpop.f32.mrf.mxu0
  %2435 = vdwg.mxu0
  %v2438 = vunpack.c.l.b16 %v2372
  %v2439 = vunpack.c.l.b16 %v2373
  %v2440 = vpack.c.b16 %v2439, %v2438
  %2442 = vmatprep.subr.bf16.mxu0 0
  %2443 = vmatpush1.bf16.msra.mxu0 0
  %2444 = vmatprep.subr.bf16.mxu0 0
  %2445 = vmatpush1.bf16.msra.mxu0 0
  %2446 = vmatprep.subr.bf16.mxu0 0
  %2447 = vmatpush1.bf16.msra.mxu0 0
  %2448 = vmatprep.subr.bf16.mxu0 0
  %2449 = vmatpush1.bf16.msra.mxu0 0
  %2450 = vmatprep.subr.bf16.mxu0 0
  %2451 = vmatpush1.bf16.msra.mxu0 0
  %2452 = vmatprep.subr.bf16.mxu0 0
  %2453 = vmatpush1.bf16.msra.mxu0 0
  %2454 = vmatprep.subr.bf16.mxu0 0
  %2455 = vmatpush1.bf16.msra.mxu0 0
  %2456 = vmatprep.subr.bf16.mxu0 0
  %2457 = vmatpush1.bf16.msra.mxu0 %v2440
  %2458 = vmatprep.subr.bf16.mxu0 0
  %2459 = vmatpush2.bf16.msra.mxu0 0
  %2460 = vmatprep.subr.bf16.mxu0 0
  %2461 = vmatpush2.bf16.msra.mxu0 0
  %2462 = vmatprep.subr.bf16.mxu0 0
  %2463 = vmatpush2.bf16.msra.mxu0 0
  %2464 = vmatprep.subr.bf16.mxu0 0
  %2465 = vmatpush2.bf16.msra.mxu0 0
  %2466 = vmatprep.subr.bf16.mxu0 0
  %2467 = vmatpush2.bf16.msra.mxu0 0
  %2468 = vmatprep.subr.bf16.mxu0 0
  %2469 = vmatpush2.bf16.msra.mxu0 0
  %2470 = vmatprep.subr.bf16.mxu0 0
  %2471 = vmatpush2.bf16.msra.mxu0 0
  %2472 = vmatprep.subr.bf16.mxu0 0
  %2473 = vmatpush2.bf16.msra.mxu0 0
  %2474 = vmatprep.mubr.bf16.mxu0 0
  %2475 = vmatmul.mubr.bf16.gmra.mxu0 %v352
  %v2476 = vpop.f32.mrf.mxu0
  %v2477 = vadd.f32 %v2431, %v2476
  %v2478 = vpop.f32.mrf.mxu0
  %v2479 = vpop.f32.mrf.mxu0
  %v2480 = vpop.f32.mrf.mxu0
  %2481 = vdwg.mxu0
  %s2482 = scalar_lea.vmem %s11, 17
  %v2483 = vld [vmem:[%s2482] sm:$0x1]
  %v2485 = vlaneseq
  %v2486 = vshrl.u32 %v2485, 7
  %v2487 = vsub.s32 0, %v2486
  %v2488 = vrot.slane %v2483, %v2487
  %v2490 = vadd.f32 %v2477, %v2488
  %s2491 = scalar_lea.vmem [#allocation2], 136
  %2492 = vst.msk [vmem:[%s2491] sm:$0xff] %vm143, %v2490
  %v2493 = vmax.f32 %v2370, %v2490
  %s2494 = scalar_lea.vmem %s10, 144
  %v2495 = vld [vmem:[%s2494] sm:$0xf]
  %v2496 = vld [vmem:[%s2494 + $0x4] sm:$0xf]
  %s2497 = scalar_lea.vmem %s1, 72
  %v2498 = vld [vmem:[%s2497] sm:$0xf]
  %s2499 = scalar_lea.vmem %s12, 288
  %v2500 = vld [vmem:[%s2499] sm:$0xf]
  %v2501 = vld [vmem:[%s2499 + $0x4] sm:$0xf]
  %v2502 = vld [vmem:[%s2499 + $0x8] sm:$0xf]
  %v2503 = vld [vmem:[%s2499 + $0xc] sm:$0xf]
  %v2508 = vunpack.c.l.b16 %v2500
  %v2509 = vunpack.c.l.b16 %v2501
  %v2510 = vunpack.c.l.b16 %v2502
  %v2511 = vunpack.c.l.b16 %v2503
  %v2512 = vpack.c.b16 %v2509, %v2508
  %v2513 = vpack.c.b16 %v2511, %v2510
  %v2517 = vsel %vm143, %v2498, 0
  %2519 = vmatprep.subr.bf16.mxu0 0
  %2520 = vmatpush1.bf16.msra.mxu0 0
  %2521 = vmatprep.subr.bf16.mxu0 0
  %2522 = vmatpush1.bf16.msra.mxu0 0
  %2523 = vmatprep.subr.bf16.mxu0 0
  %2524 = vmatpush1.bf16.msra.mxu0 0
  %2525 = vmatprep.subr.bf16.mxu0 0
  %2526 = vmatpush1.bf16.msra.mxu0 0
  %2527 = vmatprep.subr.bf16.mxu0 0
  %2528 = vmatpush1.bf16.msra.mxu0 0
  %2529 = vmatprep.subr.bf16.mxu0 0
  %2530 = vmatpush1.bf16.msra.mxu0 0
  %2531 = vmatprep.subr.bf16.mxu0 0
  %2532 = vmatpush1.bf16.msra.mxu0 %v2513
  %2533 = vmatprep.subr.bf16.mxu0 0
  %2534 = vmatpush1.bf16.msra.mxu0 %v2512
  %2535 = vmatprep.subr.bf16.mxu0 0
  %2536 = vmatpush2.bf16.msra.mxu0 0
  %2537 = vmatprep.subr.bf16.mxu0 0
  %2538 = vmatpush2.bf16.msra.mxu0 0
  %2539 = vmatprep.subr.bf16.mxu0 0
  %2540 = vmatpush2.bf16.msra.mxu0 0
  %2541 = vmatprep.subr.bf16.mxu0 0
  %2542 = vmatpush2.bf16.msra.mxu0 0
  %2543 = vmatprep.subr.bf16.mxu0 0
  %2544 = vmatpush2.bf16.msra.mxu0 0
  %2545 = vmatprep.subr.bf16.mxu0 0
  %2546 = vmatpush2.bf16.msra.mxu0 0
  %2547 = vmatprep.subr.bf16.mxu0 0
  %2548 = vmatpush2.bf16.msra.mxu0 0
  %2549 = vmatprep.subr.bf16.mxu0 0
  %2550 = vmatpush2.bf16.msra.mxu0 0
  %2551 = vmatprep.mubr.bf16.mxu0 0
  %2552 = vmatmul.mubr.bf16.gmra.mxu0 %v2517
  %v2553 = vpop.f32.mrf.mxu0
  %v2554 = vadd.f32 0.0, %v2553
  %v2555 = vpop.f32.mrf.mxu0
  %v2556 = vpop.f32.mrf.mxu0
  %v2557 = vpop.f32.mrf.mxu0
  %2558 = vdwg.mxu0
  %v2561 = vunpack.c.l.b16 %v2495
  %v2562 = vunpack.c.l.b16 %v2496
  %v2563 = vpack.c.b16 %v2562, %v2561
  %2565 = vmatprep.subr.bf16.mxu0 0
  %2566 = vmatpush1.bf16.msra.mxu0 0
  %2567 = vmatprep.subr.bf16.mxu0 0
  %2568 = vmatpush1.bf16.msra.mxu0 0
  %2569 = vmatprep.subr.bf16.mxu0 0
  %2570 = vmatpush1.bf16.msra.mxu0 0
  %2571 = vmatprep.subr.bf16.mxu0 0
  %2572 = vmatpush1.bf16.msra.mxu0 0
  %2573 = vmatprep.subr.bf16.mxu0 0
  %2574 = vmatpush1.bf16.msra.mxu0 0
  %2575 = vmatprep.subr.bf16.mxu0 0
  %2576 = vmatpush1.bf16.msra.mxu0 0
  %2577 = vmatprep.subr.bf16.mxu0 0
  %2578 = vmatpush1.bf16.msra.mxu0 0
  %2579 = vmatprep.subr.bf16.mxu0 0
  %2580 = vmatpush1.bf16.msra.mxu0 %v2563
  %2581 = vmatprep.subr.bf16.mxu0 0
  %2582 = vmatpush2.bf16.msra.mxu0 0
  %2583 = vmatprep.subr.bf16.mxu0 0
  %2584 = vmatpush2.bf16.msra.mxu0 0
  %2585 = vmatprep.subr.bf16.mxu0 0
  %2586 = vmatpush2.bf16.msra.mxu0 0
  %2587 = vmatprep.subr.bf16.mxu0 0
  %2588 = vmatpush2.bf16.msra.mxu0 0
  %2589 = vmatprep.subr.bf16.mxu0 0
  %2590 = vmatpush2.bf16.msra.mxu0 0
  %2591 = vmatprep.subr.bf16.mxu0 0
  %2592 = vmatpush2.bf16.msra.mxu0 0
  %2593 = vmatprep.subr.bf16.mxu0 0
  %2594 = vmatpush2.bf16.msra.mxu0 0
  %2595 = vmatprep.subr.bf16.mxu0 0
  %2596 = vmatpush2.bf16.msra.mxu0 0
  %2597 = vmatprep.mubr.bf16.mxu0 0
  %2598 = vmatmul.mubr.bf16.gmra.mxu0 %v352
  %v2599 = vpop.f32.mrf.mxu0
  %v2600 = vadd.f32 %v2554, %v2599
  %v2601 = vpop.f32.mrf.mxu0
  %v2602 = vpop.f32.mrf.mxu0
  %v2603 = vpop.f32.mrf.mxu0
  %2604 = vdwg.mxu0
  %s2605 = scalar_lea.vmem %s11, 18
  %v2606 = vld [vmem:[%s2605] sm:$0x1]
  %v2608 = vlaneseq
  %v2609 = vshrl.u32 %v2608, 7
  %v2610 = vsub.s32 0, %v2609
  %v2611 = vrot.slane %v2606, %v2610
  %v2613 = vadd.f32 %v2600, %v2611
  %s2614 = scalar_lea.vmem [#allocation2], 144
  %2615 = vst.msk [vmem:[%s2614] sm:$0xff] %vm143, %v2613
  %v2616 = vmax.f32 %v2493, %v2613
  %v2617 = vld [vmem:[#allocation2] sm:$0xff]
  %v2618 = vsub.f32 %v2617, %v2616
  %v2619 = vmul.f32 %v2618, 1.442695
  %v2620 = vpow.pop %v2619
  %v2621 = vadd.f32 %v2620, 0.0
  %v2622 = vld [vmem:[%s0] sm:$0xf]
  %v2623 = vunpack.c.l.bf16 %v2622
  %v2624 = vmul.f32 %v2620, %v2623
  %v2625 = vadd.f32 %v2624, 0.0
  %v2626 = vld [vmem:[%s523] sm:$0xff]
  %v2627 = vsub.f32 %v2626, %v2616
  %v2628 = vmul.f32 %v2627, 1.442695
  %v2629 = vpow.pop %v2628
  %v2630 = vadd.f32 %v2621, %v2629
  %v2631 = vld [vmem:[%s47] sm:$0xf]
  %v2632 = vunpack.c.l.bf16 %v2631
  %v2633 = vmul.f32 %v2629, %v2632
  %v2634 = vadd.f32 %v2625, %v2633
  %v2635 = vld [vmem:[%s646] sm:$0xff]
  %v2636 = vsub.f32 %v2635, %v2616
  %v2637 = vmul.f32 %v2636, 1.442695
  %v2638 = vpow.pop %v2637
  %v2639 = vadd.f32 %v2630, %v2638
  %v2640 = vld [vmem:[%s51] sm:$0xf]
  %v2641 = vunpack.c.l.bf16 %v2640
  %v2642 = vmul.f32 %v2638, %v2641
  %v2643 = vadd.f32 %v2634, %v2642
  %v2644 = vld [vmem:[%s769] sm:$0xff]
  %v2645 = vsub.f32 %v2644, %v2616
  %v2646 = vmul.f32 %v2645, 1.442695
  %v2647 = vpow.pop %v2646
  %v2648 = vadd.f32 %v2639, %v2647
  %v2649 = vld [vmem:[%s55] sm:$0xf]
  %v2650 = vunpack.c.l.bf16 %v2649
  %v2651 = vmul.f32 %v2647, %v2650
  %v2652 = vadd.f32 %v2643, %v2651
  %v2653 = vld [vmem:[%s892] sm:$0xff]
  %v2654 = vsub.f32 %v2653, %v2616
  %v2655 = vmul.f32 %v2654, 1.442695
  %v2656 = vpow.pop %v2655
  %v2657 = vadd.f32 %v2648, %v2656
  %v2658 = vld [vmem:[%s59] sm:$0xf]
  %v2659 = vunpack.c.l.bf16 %v2658
  %v2660 = vmul.f32 %v2656, %v2659
  %v2661 = vadd.f32 %v2652, %v2660
  %v2662 = vld [vmem:[%s1015] sm:$0xff]
  %v2663 = vsub.f32 %v2662, %v2616
  %v2664 = vmul.f32 %v2663, 1.442695
  %v2665 = vpow.pop %v2664
  %v2666 = vadd.f32 %v2657, %v2665
  %v2667 = vld [vmem:[%s63] sm:$0xf]
  %v2668 = vunpack.c.l.bf16 %v2667
  %v2669 = vmul.f32 %v2665, %v2668
  %v2670 = vadd.f32 %v2661, %v2669
  %v2671 = vld [vmem:[%s1138] sm:$0xff]
  %v2672 = vsub.f32 %v2671, %v2616
  %v2673 = vmul.f32 %v2672, 1.442695
  %v2674 = vpow.pop %v2673
  %v2675 = vadd.f32 %v2666, %v2674
  %v2676 = vld [vmem:[%s67] sm:$0xf]
  %v2677 = vunpack.c.l.bf16 %v2676
  %v2678 = vmul.f32 %v2674, %v2677
  %v2679 = vadd.f32 %v2670, %v2678
  %v2680 = vld [vmem:[%s1261] sm:$0xff]
  %v2681 = vsub.f32 %v2680, %v2616
  %v2682 = vmul.f32 %v2681, 1.442695
  %v2683 = vpow.pop %v2682
  %v2684 = vadd.f32 %v2675, %v2683
  %v2685 = vld [vmem:[%s71] sm:$0xf]
  %v2686 = vunpack.c.l.bf16 %v2685
  %v2687 = vmul.f32 %v2683, %v2686
  %v2688 = vadd.f32 %v2679, %v2687
  %v2689 = vld [vmem:[%s1384] sm:$0xff]
  %v2690 = vsub.f32 %v2689, %v2616
  %v2691 = vmul.f32 %v2690, 1.442695
  %v2692 = vpow.pop %v2691
  %v2693 = vadd.f32 %v2684, %v2692
  %v2694 = vld [vmem:[%s75] sm:$0xf]
  %v2695 = vunpack.c.l.bf16 %v2694
  %v2696 = vmul.f32 %v2692, %v2695
  %v2697 = vadd.f32 %v2688, %v2696
  %v2698 = vld [vmem:[%s1507] sm:$0xff]
  %v2699 = vsub.f32 %v2698, %v2616
  %v2700 = vmul.f32 %v2699, 1.442695
  %v2701 = vpow.pop %v2700
  %v2702 = vadd.f32 %v2693, %v2701
  %v2703 = vld [vmem:[%s79] sm:$0xf]
  %v2704 = vunpack.c.l.bf16 %v2703
  %v2705 = vmul.f32 %v2701, %v2704
  %v2706 = vadd.f32 %v2697, %v2705
  %v2707 = vld [vmem:[%s1630] sm:$0xff]
  %v2708 = vsub.f32 %v2707, %v2616
  %v2709 = vmul.f32 %v2708, 1.442695
  %v2710 = vpow.pop %v2709
  %v2711 = vadd.f32 %v2702, %v2710
  %v2712 = vld [vmem:[%s83] sm:$0xf]
  %v2713 = vunpack.c.l.bf16 %v2712
  %v2714 = vmul.f32 %v2710, %v2713
  %v2715 = vadd.f32 %v2706, %v2714
  %v2716 = vld [vmem:[%s1753] sm:$0xff]
  %v2717 = vsub.f32 %v2716, %v2616
  %v2718 = vmul.f32 %v2717, 1.442695
  %v2719 = vpow.pop %v2718
  %v2720 = vadd.f32 %v2711, %v2719
  %v2721 = vld [vmem:[%s87] sm:$0xf]
  %v2722 = vunpack.c.l.bf16 %v2721
  %v2723 = vmul.f32 %v2719, %v2722
  %v2724 = vadd.f32 %v2715, %v2723
  %v2725 = vld [vmem:[%s1876] sm:$0xff]
  %v2726 = vsub.f32 %v2725, %v2616
  %v2727 = vmul.f32 %v2726, 1.442695
  %v2728 = vpow.pop %v2727
  %v2729 = vadd.f32 %v2720, %v2728
  %v2730 = vld [vmem:[%s91] sm:$0xf]
  %v2731 = vunpack.c.l.bf16 %v2730
  %v2732 = vmul.f32 %v2728, %v2731
  %v2733 = vadd.f32 %v2724, %v2732
  %v2734 = vld [vmem:[%s1999] sm:$0xff]
  %v2735 = vsub.f32 %v2734, %v2616
  %v2736 = vmul.f32 %v2735, 1.442695
  %v2737 = vpow.pop %v2736
  %v2738 = vadd.f32 %v2729, %v2737
  %v2739 = vld [vmem:[%s95] sm:$0xf]
  %v2740 = vunpack.c.l.bf16 %v2739
  %v2741 = vmul.f32 %v2737, %v2740
  %v2742 = vadd.f32 %v2733, %v2741
  %v2743 = vld [vmem:[%s2122] sm:$0xff]
  %v2744 = vsub.f32 %v2743, %v2616
  %v2745 = vmul.f32 %v2744, 1.442695
  %v2746 = vpow.pop %v2745
  %v2747 = vadd.f32 %v2738, %v2746
  %v2748 = vld [vmem:[%s99] sm:$0xf]
  %v2749 = vunpack.c.l.bf16 %v2748
  %v2750 = vmul.f32 %v2746, %v2749
  %v2751 = vadd.f32 %v2742, %v2750
  %v2752 = vld [vmem:[%s2245] sm:$0xff]
  %v2753 = vsub.f32 %v2752, %v2616
  %v2754 = vmul.f32 %v2753, 1.442695
  %v2755 = vpow.pop %v2754
  %v2756 = vadd.f32 %v2747, %v2755
  %v2757 = vld [vmem:[%s103] sm:$0xf]
  %v2758 = vunpack.c.l.bf16 %v2757
  %v2759 = vmul.f32 %v2755, %v2758
  %v2760 = vadd.f32 %v2751, %v2759
  %v2761 = vld [vmem:[%s2368] sm:$0xff]
  %v2762 = vsub.f32 %v2761, %v2616
  %v2763 = vmul.f32 %v2762, 1.442695
  %v2764 = vpow.pop %v2763
  %v2765 = vadd.f32 %v2756, %v2764
  %v2766 = vld [vmem:[%s107] sm:$0xf]
  %v2767 = vunpack.c.l.bf16 %v2766
  %v2768 = vmul.f32 %v2764, %v2767
  %v2769 = vadd.f32 %v2760, %v2768
  %v2770 = vld [vmem:[%s2491] sm:$0xff]
  %v2771 = vsub.f32 %v2770, %v2616
  %v2772 = vmul.f32 %v2771, 1.442695
  %v2773 = vpow.pop %v2772
  %v2774 = vadd.f32 %v2765, %v2773
  %v2775 = vld [vmem:[%s111] sm:$0xf]
  %v2776 = vunpack.c.l.bf16 %v2775
  %v2777 = vmul.f32 %v2773, %v2776
  %v2778 = vadd.f32 %v2769, %v2777
  %v2779 = vld [vmem:[%s2614] sm:$0xff]
  %v2780 = vsub.f32 %v2779, %v2616
  %v2781 = vmul.f32 %v2780, 1.442695
  %v2782 = vpow.pop %v2781
  %v2783 = vadd.f32 %v2774, %v2782
  %v2784 = vld [vmem:[%s115] sm:$0xf]
  %v2785 = vunpack.c.l.bf16 %v2784
  %v2786 = vmul.f32 %v2782, %v2785
  %v2787 = vadd.f32 %v2778, %v2786
  %v2788 = vrcp.pop %v2783
  %v2789 = vmul.f32 %v2787, %v2788
  %2790 = vst.msk [vmem:[%s13] sm:$0xff] %vm143, %v2789
  // Predicated region
  $region54: #{selective_ts_with_g_forward.1} parent=0 // pred_check
    _
  $region55: #{selective_ts_with_g_forward.1} parent=0 // pred_check_branch
    %2792 = sbr.rel (0) target = $region57
  $region56: #{selective_ts_with_g_forward.1} parent=0 // pred_region
    _
  $region57: #{selective_ts_with_g_forward.1} parent=0 // pred_fallthru
    _
  // Predicated region
  $region58: #{selective_ts_with_g_forward.1} parent=0 // pred_check
    _
  $region59: #{selective_ts_with_g_forward.1} parent=0 // pred_check_branch
    %2794 = sbr.rel (0) target = $region61
  $region60: #{selective_ts_with_g_forward.1} parent=0 // pred_region
    _
  $region61: #{selective_ts_with_g_forward.1} parent=0 // pred_fallthru
    _

</llo_original>
